<compile_context>
chip_gen: v7x
topology: tpu7x:2x2x1
jax: 0.10.0
libtpu: 0.0.40
codegen_flags: <defaults>
</compile_context>

<pallas_src>
import functools

import numpy as np
import jax
import jax.numpy as jnp
from jax import lax
from jax.experimental import pallas as pl
from jax.experimental.pallas import tpu as pltpu


# ----------------------------------------------------------------------------
# Mask generation (verbatim port of SBSMFeature.generate_masks, numpy glue)
# ----------------------------------------------------------------------------
def generate_masks(input_size, window_size=1, stride=1):
    rows = np.arange(0 + stride - window_size, input_size[0], stride)
    cols = np.arange(0 + stride - window_size, input_size[1], stride)
    mask_num = len(rows) * len(cols)
    masks = np.ones((mask_num, input_size[0], input_size[1]), dtype=np.uint8)
    i = 0
    for r in rows:
        for c in cols:
            r1 = 0 if r < 0 else r
            r2 = input_size[0] if r + window_size > input_size[0] else r + window_size
            c1 = 0 if c < 0 else c
            c2 = input_size[1] if c + window_size > input_size[1] else c + window_size
            masks[i, r1:r2, c1:c2] = 0
            i += 1
    return masks.reshape(-1, 1, *input_size)  # (N, 1, S, S) uint8


# ----------------------------------------------------------------------------
# Bilinear interpolation matrix, matching torch F.interpolate(mode='bilinear',
# align_corners=False). out = Wy @ sal @ Wx.T   (glue, precomputed once)
# ----------------------------------------------------------------------------
def bilinear_matrix(out_size, in_size):
    scale = in_size / out_size
    i = np.arange(out_size)
    src = (i + 0.5) * scale - 0.5
    src = np.where(src < 0.0, 0.0, src)
    i0 = np.clip(np.floor(src).astype(np.int64), 0, in_size - 1)
    i1 = np.minimum(i0 + 1, in_size - 1)
    lam = (src - i0).astype(np.float32)
    W = np.zeros((out_size, in_size), dtype=np.float32)
    W[np.arange(out_size), i0] += (1.0 - lam)
    W[np.arange(out_size), i1] += lam
    return W


# ----------------------------------------------------------------------------
# Pallas kernel: stack, cdist x2, K contraction, weighted_avg, separable
# bilinear upsample -- all fused.
# ----------------------------------------------------------------------------
def sbsm_kernel(masks_ref, feats_ref, small_ref, cinv_ref, wxt_ref, wy_ref,
                out_ref, cu_ref, *, Bq, C, S, H, x0_row):
    # masks_ref : (N, S*S)      bf16, 1 = keep, 0 = masked window
    # feats_ref : (C, S*S)      bf16, feats[1] pre-scaled by 1/(S*S - 1)
    # small_ref : (x0_row+C, D) f32 packed tiny operands:
    #               rows [0, Bq)      -> x_q_feat
    #               row  Bq           -> x_r
    #               rows [x0_row,+C)  -> x[0] stored in column 0
    # cinv_ref  : (1, S*S)      f32, 1 / count  (count = N - masks.sum(0))
    # wxt_ref   : (S, W)        f32, Wx^T   (bilinear, align_corners=False)
    # wy_ref    : (H, S)        f32, Wy
    # out_ref   : (Bq*H, W)     f32 saliency, row-blocked per query
    # cu_ref    : (S, W)        f32 VMEM scratch (column-upsampled saliency)
    masks = masks_ref[...]
    feats = feats_ref[...]

    # stack^T[c, n] = sum_s feats[c, s] * masks[n, s]   (lane-dense over N)
    stack_t = lax.dot_general(feats, masks, (((1,), (1,)), ((), ())),
                              preferred_element_type=jnp.float32)        # (C, N)

    # m_dist = cdist(x[0:1], stack) -> (1, N)
    x0_col = small_ref[x0_row:x0_row + C, 0:1]                           # (C, 1)
    d = stack_t - x0_col
    m_dist = jnp.sqrt(jnp.sum(d * d, axis=0, keepdims=True))             # (1, N)

    # o_dist = cdist(x_q_feat, x_r) -> (Bq, 1)   (single reference sample)
    dq = small_ref[0:Bq, :] - small_ref[Bq:Bq + 1, :]                    # (Bq, D)
    o_dist = jnp.sqrt(jnp.sum(dq * dq, axis=1, keepdims=True))           # (Bq, 1)

    # w[b, n] = relu(m_dist[n] - o_dist[b]); cast to bf16 so the masks
    # contraction runs as a native bf16 MXU matmul (f32 accumulation).
    # wsum is computed from the *rounded* values so the wsum - w@masks
    # identity cancels the quantization error.
    w = jnp.maximum(m_dist - o_dist, 0.0).astype(jnp.bfloat16)           # (Bq, N)
    wsum = jnp.sum(w.astype(jnp.float32), axis=1, keepdims=True)         # (Bq, 1)

    # ksum[b, s] = sum_n (1 - masks[n, s]) * w[b, n] = wsum - w @ masks
    ksum = wsum - jnp.dot(w, masks, preferred_element_type=jnp.float32)  # (Bq, SS)
    sal = ksum * cinv_ref[...]                                           # (Bq, SS)

    # separable bilinear upsample: out_b = Wy @ sal_b(S, S) @ Wx^T
    wxt = wxt_ref[...]                                                   # (S, W)
    wy = wy_ref[...]                                                     # (H, S)
    for b in range(Bq):
        for r in range(S):
            sal_br = sal[b:b + 1, r * S:(r + 1) * S]                     # (1, S)
            cu_ref[r:r + 1, :] = jnp.dot(sal_br, wxt,
                                         preferred_element_type=jnp.float32)
        out_ref[b * H:(b + 1) * H, :] = jnp.dot(
            wy, cu_ref[...], preferred_element_type=jnp.float32)         # (H, W)


def sbsm_pallas(masks_bf, feats_bf, small, cinv, wxt, wy, *, Bq, C, S, H, x0_row):
    W = wxt.shape[1]
    kernel = functools.partial(sbsm_kernel, Bq=Bq, C=C, S=S, H=H, x0_row=x0_row)

    def full(shape):
        return pl.BlockSpec(shape, lambda i: (0, 0))

    out = pl.pallas_call(
        kernel,
        out_shape=jax.ShapeDtypeStruct((Bq * H, W), jnp.float32),
        grid=(1,),
        in_specs=[full(masks_bf.shape), full(feats_bf.shape), full(small.shape),
                  full(cinv.shape), full(wxt.shape), full(wy.shape)],
        out_specs=pl.BlockSpec((Bq * H, W), lambda i: (0, 0)),
        scratch_shapes=[pltpu.VMEM((S, W), jnp.float32)],
        compiler_params=pltpu.CompilerParams(
            dimension_semantics=("arbitrary",)),
    )(masks_bf, feats_bf, small, cinv, wxt, wy)
    return out.reshape(Bq, H, W)


# ----------------------------------------------------------------------------
# Plain-JAX reference following the PyTorch forward literally (for checking)
# ----------------------------------------------------------------------------
def forward_ref(masks4_u8, feats, x_q_feat, x_r, x, wy, wx):
    masks = jnp.asarray(masks4_u8, jnp.float32)                       # (N,1,S,S)
    N, _, S, _ = masks.shape
    feats1 = feats[1]                                                 # (C,S,S)
    o_dist = jnp.sqrt(jnp.sum((x_q_feat[:, None, :] - x_r[None, :, :]) ** 2, -1))  # (Bq, 1)
    stack = jnp.sum(masks * feats1, axis=(2, 3)) / (S * S - 1)        # (N, C)
    x0 = x[0][None, :]                                                # (1, C)
    m_dist = jnp.sqrt(jnp.sum((x0[:, None, :] - stack[None, :, :]) ** 2, -1))       # (1, N)
    K = jnp.transpose(1.0 - masks, (2, 3, 1, 0)) * jnp.maximum(m_dist - o_dist, 0.0)
    count = N - jnp.sum(masks, axis=(0, 1))                           # (S, S)
    sal = jnp.transpose(jnp.sum(K, axis=-1), (2, 0, 1)) / count       # (Bq, S, S)
    sal_up = jnp.einsum('hr,brc,wc->bhw', wy, sal, wx,
                        precision=lax.Precision.HIGHEST)              # (Bq, H, W)
    return sal_up


if __name__ == "__main__":
    key = jax.random.PRNGKey(0)
    kq, kx, k1, k2 = jax.random.split(key, 4)

    Bq, Cin, H, W = 2, 4, 32, 32   # query image batch (x_q), NCHW
    Cf, D = 8, 32                  # feature-map channels, model embedding dim
    S = 16                         # feature spatial size (stride-2 conv)

    x_q = jax.random.normal(kq, (Bq, Cin, H, W), jnp.float32)
    # reference input `x` lives in feature space (the literal forward needs
    # x[0].unsqueeze(0) to be cdist-compatible with the (N, Cf) stack)
    x = jax.random.normal(kx, (1, Cf), jnp.float32)

    # deterministic stand-in parameters for the external model / extractor
    conv_w = jax.random.normal(k1, (Cf, Cin, 3, 3), jnp.float32) * 0.1   # OIHW
    head_w = jax.random.normal(k2, (D, Cf), jnp.float32) * 0.1
    head_b = jnp.zeros((D,), jnp.float32)

    # "extractor(x_q)" stand-in: A[-1] = conv feature map, x_q_feat = head output
    feats = lax.conv_general_dilated(
        x_q, conv_w, window_strides=(2, 2), padding='SAME',
        dimension_numbers=('NCHW', 'OIHW', 'NCHW'))                   # (Bq, Cf, S, S)
    xq_feat = feats.mean(axis=(2, 3)) @ head_w.T + head_b             # (Bq, D)
    # "model(x)" stand-in
    x_r = x @ head_w.T + head_b                                       # (1, D)

    # masks (window_size=1, stride=1 over the feature grid)
    masks4 = generate_masks((S, S), window_size=1, stride=1)          # (N,1,S,S) uint8
    N = masks4.shape[0]
    masks_flat = masks4.reshape(N, S * S).astype(np.float32)

    # kernel operands (masks are 0/1 -> exact in bf16)
    masks_bf = jnp.asarray(masks_flat, jnp.bfloat16)                  # (N, S*S)
    feats1_bf = jnp.asarray(feats[1].reshape(Cf, S * S) / (S * S - 1),
                            jnp.bfloat16)                             # (Cf, S*S)

    # static weighted_avg denominator precomputed on the host.
    # (count == 0 would give inf, same as the reference; for the default
    #  window_size=1 / stride=1 configuration count is identically 1.)
    count = float(N) - masks_flat.sum(axis=0)                         # (S*S,)
    cinv = jnp.asarray((1.0 / count).reshape(1, S * S), jnp.float32)

    # packed tiny operands: x_q_feat rows, x_r row, x[0] as an aligned column
    x0_row = ((Bq + 1 + 7) // 8) * 8
    small = jnp.zeros((x0_row + Cf, D), jnp.float32)
    small = small.at[0:Bq, :].set(xq_feat)
    small = small.at[Bq, :].set(x_r[0])
    small = small.at[x0_row:x0_row + Cf, 0].set(x[0])

    # separable bilinear weights (align_corners=False)
    wy = bilinear_matrix(H, S)                                        # (H, S)
    wx = bilinear_matrix(W, S)                                        # (W, S)
    wxt = jnp.asarray(wx.T, jnp.float32)                              # (S, W)
    wy_j = jnp.asarray(wy, jnp.float32)                               # (H, S)

    sal = sbsm_pallas(masks_bf, feats1_bf, small, cinv, wxt, wy_j,
                      Bq=Bq, C=Cf, S=S, H=H, x0_row=x0_row)           # (Bq, H, W)
    jax.block_until_ready(sal)

    ref = forward_ref(masks4, feats, xq_feat, x_r, x,
                      jnp.asarray(wy), jnp.asarray(wx))
    np.testing.assert_allclose(np.asarray(sal), np.asarray(ref),
                               rtol=1e-2, atol=1e-2)

    # TODO(synk): the wrapped `model`/`ModelOutputs` extractor are external
    # black boxes; deterministic conv+linear stand-ins are used instead.
    print("KERNEL_OK")
</pallas_src>

<mosaic_0001>
module attributes {stable_mosaic.version = 11 : i64} {
  func.func @sbsm_kernel(%arg0: i32, %arg1: memref<256x256xbf16, #tpu.memory_space<vmem>>, %arg2: memref<8x256xbf16, #tpu.memory_space<vmem>>, %arg3: memref<16x32xf32, #tpu.memory_space<vmem>>, %arg4: memref<1x256xf32, #tpu.memory_space<vmem>>, %arg5: memref<16x32xf32, #tpu.memory_space<vmem>>, %arg6: memref<32x16xf32, #tpu.memory_space<vmem>>, %arg7: memref<64x32xf32, #tpu.memory_space<vmem>>, %arg8: memref<16x32xf32, #tpu.memory_space<vmem>>) attributes {dimension_semantics = [#tpu.dimension_semantics<arbitrary>], iteration_bounds = array<i64: 1>, scalar_prefetch = 0 : i64, scratch_operands = 1 : i64, tpu.core_type = #tpu.core_type<tc>, window_params = [{pipeline_mode = #tpu.pipeline_mode<synchronous>, transform_indices = @transform_0, window_bounds = array<i64: 256, 256>}, {pipeline_mode = #tpu.pipeline_mode<synchronous>, transform_indices = @transform_1, window_bounds = array<i64: 8, 256>}, {pipeline_mode = #tpu.pipeline_mode<synchronous>, transform_indices = @transform_2, window_bounds = array<i64: 16, 32>}, {pipeline_mode = #tpu.pipeline_mode<synchronous>, transform_indices = @transform_3, window_bounds = array<i64: 1, 256>}, {pipeline_mode = #tpu.pipeline_mode<synchronous>, transform_indices = @transform_4, window_bounds = array<i64: 16, 32>}, {pipeline_mode = #tpu.pipeline_mode<synchronous>, transform_indices = @transform_5, window_bounds = array<i64: 32, 16>}, {pipeline_mode = #tpu.pipeline_mode<synchronous>, transform_indices = @transform_6, window_bounds = array<i64: 64, 32>}]} {
    %c0 = arith.constant 0 : index
    %c0_0 = arith.constant 0 : index
    %0 = vector.load %arg1[%c0, %c0_0] : memref<256x256xbf16, #tpu.memory_space<vmem>>, vector<256x256xbf16>
    %c0_1 = arith.constant 0 : index
    %c0_2 = arith.constant 0 : index
    %1 = vector.load %arg2[%c0_1, %c0_2] : memref<8x256xbf16, #tpu.memory_space<vmem>>, vector<8x256xbf16>
    %cst = arith.constant dense<0.000000e+00> : vector<8x256xf32>
    %2 = tpu.matmul %1, %0, %cst {dimension_numbers = #tpu.dot_dimension_numbers<[1], [1], [0], [0], [0, 0, 1, 0], [], []>} : vector<8x256xbf16>, vector<256x256xbf16>, vector<8x256xf32> -> vector<8x256xf32>
    %c8 = arith.constant 8 : index
    %c0_3 = arith.constant 0 : index
    %3 = vector.load %arg3[%c8, %c0_3] : memref<16x32xf32, #tpu.memory_space<vmem>>, vector<8x1xf32>
    %4 = vector.broadcast %3 : vector<8x1xf32> to vector<8x256xf32>
    %5 = arith.subf %2, %4 : vector<8x256xf32>
    %6 = arith.mulf %5, %5 : vector<8x256xf32>
    %cst_4 = arith.constant dense<0.000000e+00> : vector<256xf32>
    %7 = vector.multi_reduction <add>, %6, %cst_4 [0] : vector<8x256xf32> to vector<256xf32>
    %8 = vector.shape_cast %7 : vector<256xf32> to vector<1x256xf32>
    %9 = math.sqrt %8 : vector<1x256xf32>
    %c0_5 = arith.constant 0 : index
    %c0_6 = arith.constant 0 : index
    %10 = vector.load %arg3[%c0_5, %c0_6] : memref<16x32xf32, #tpu.memory_space<vmem>>, vector<2x32xf32>
    %c2 = arith.constant 2 : index
    %c0_7 = arith.constant 0 : index
    %11 = vector.load %arg3[%c2, %c0_7] : memref<16x32xf32, #tpu.memory_space<vmem>>, vector<1x32xf32>
    %12 = vector.broadcast %11 : vector<1x32xf32> to vector<2x32xf32>
    %13 = arith.subf %10, %12 : vector<2x32xf32>
    %14 = arith.mulf %13, %13 : vector<2x32xf32>
    %cst_8 = arith.constant dense<0.000000e+00> : vector<2xf32>
    %15 = vector.multi_reduction <add>, %14, %cst_8 [1] : vector<2x32xf32> to vector<2xf32>
    %16 = vector.shape_cast %15 : vector<2xf32> to vector<2x1xf32>
    %17 = math.sqrt %16 : vector<2x1xf32>
    %18 = vector.broadcast %9 : vector<1x256xf32> to vector<2x256xf32>
    %19 = vector.broadcast %17 : vector<2x1xf32> to vector<2x256xf32>
    %20 = arith.subf %18, %19 : vector<2x256xf32>
    %cst_9 = arith.constant 0.000000e+00 : f32
    %21 = vector.broadcast %cst_9 : f32 to vector<2x256xf32>
    %22 = arith.maximumf %20, %21 : vector<2x256xf32>
    %23 = arith.truncf %22 : vector<2x256xf32> to vector<2x256xbf16>
    %24 = arith.extf %23 : vector<2x256xbf16> to vector<2x256xf32>
    %cst_10 = arith.constant dense<0.000000e+00> : vector<2xf32>
    %25 = vector.multi_reduction <add>, %24, %cst_10 [1] : vector<2x256xf32> to vector<2xf32>
    %26 = vector.shape_cast %25 : vector<2xf32> to vector<2x1xf32>
    %cst_11 = arith.constant dense<0.000000e+00> : vector<2x256xf32>
    %27 = tpu.matmul %23, %0, %cst_11 {dimension_numbers = #tpu.dot_dimension_numbers<[1], [0], [0], [1], [0, 0, 1, 1], [], []>} : vector<2x256xbf16>, vector<256x256xbf16>, vector<2x256xf32> -> vector<2x256xf32>
    %28 = vector.broadcast %26 : vector<2x1xf32> to vector<2x256xf32>
    %29 = arith.subf %28, %27 : vector<2x256xf32>
    %c0_12 = arith.constant 0 : index
    %c0_13 = arith.constant 0 : index
    %30 = vector.load %arg4[%c0_12, %c0_13] : memref<1x256xf32, #tpu.memory_space<vmem>>, vector<1x256xf32>
    %31 = vector.broadcast %30 : vector<1x256xf32> to vector<2x256xf32>
    %32 = arith.mulf %29, %31 : vector<2x256xf32>
    %c0_14 = arith.constant 0 : index
    %c0_15 = arith.constant 0 : index
    %33 = vector.load %arg5[%c0_14, %c0_15] : memref<16x32xf32, #tpu.memory_space<vmem>>, vector<16x32xf32>
    %c0_16 = arith.constant 0 : index
    %c0_17 = arith.constant 0 : index
    %34 = vector.load %arg6[%c0_16, %c0_17] : memref<32x16xf32, #tpu.memory_space<vmem>>, vector<32x16xf32>
    %35 = vector.extract_strided_slice %32 {offsets = [0, 0], sizes = [1, 16], strides = [1, 1]} : vector<2x256xf32> to vector<1x16xf32>
    %cst_18 = arith.constant dense<0.000000e+00> : vector<1x32xf32>
    %36 = tpu.matmul %35, %33, %cst_18 {dimension_numbers = #tpu.dot_dimension_numbers<[1], [0], [0], [1], [0, 0, 1, 1], [], []>} : vector<1x16xf32>, vector<16x32xf32>, vector<1x32xf32> -> vector<1x32xf32>
    %c0_19 = arith.constant 0 : index
    %c0_20 = arith.constant 0 : index
    %37 = vector.load %arg8[%c0_19, %c0_20] : memref<16x32xf32, #tpu.memory_space<vmem>>, vector<1x32xf32>
    tpu.vector_store %arg8[%c0_19, %c0_20], %36 {strides = array<i32>} : memref<16x32xf32, #tpu.memory_space<vmem>>, vector<1x32xf32>,
    %38 = vector.extract_strided_slice %32 {offsets = [0, 16], sizes = [1, 16], strides = [1, 1]} : vector<2x256xf32> to vector<1x16xf32>
    %cst_21 = arith.constant dense<0.000000e+00> : vector<1x32xf32>
    %39 = tpu.matmul %38, %33, %cst_21 {dimension_numbers = #tpu.dot_dimension_numbers<[1], [0], [0], [1], [0, 0, 1, 1], [], []>} : vector<1x16xf32>, vector<16x32xf32>, vector<1x32xf32> -> vector<1x32xf32>
    %c1 = arith.constant 1 : index
    %c0_22 = arith.constant 0 : index
    %40 = vector.load %arg8[%c1, %c0_22] : memref<16x32xf32, #tpu.memory_space<vmem>>, vector<1x32xf32>
    tpu.vector_store %arg8[%c1, %c0_22], %39 {strides = array<i32>} : memref<16x32xf32, #tpu.memory_space<vmem>>, vector<1x32xf32>,
    %41 = vector.extract_strided_slice %32 {offsets = [0, 32], sizes = [1, 16], strides = [1, 1]} : vector<2x256xf32> to vector<1x16xf32>
    %cst_23 = arith.constant dense<0.000000e+00> : vector<1x32xf32>
    %42 = tpu.matmul %41, %33, %cst_23 {dimension_numbers = #tpu.dot_dimension_numbers<[1], [0], [0], [1], [0, 0, 1, 1], [], []>} : vector<1x16xf32>, vector<16x32xf32>, vector<1x32xf32> -> vector<1x32xf32>
    %c2_24 = arith.constant 2 : index
    %c0_25 = arith.constant 0 : index
    %43 = vector.load %arg8[%c2_24, %c0_25] : memref<16x32xf32, #tpu.memory_space<vmem>>, vector<1x32xf32>
    tpu.vector_store %arg8[%c2_24, %c0_25], %42 {strides = array<i32>} : memref<16x32xf32, #tpu.memory_space<vmem>>, vector<1x32xf32>,
    %44 = vector.extract_strided_slice %32 {offsets = [0, 48], sizes = [1, 16], strides = [1, 1]} : vector<2x256xf32> to vector<1x16xf32>
    %cst_26 = arith.constant dense<0.000000e+00> : vector<1x32xf32>
    %45 = tpu.matmul %44, %33, %cst_26 {dimension_numbers = #tpu.dot_dimension_numbers<[1], [0], [0], [1], [0, 0, 1, 1], [], []>} : vector<1x16xf32>, vector<16x32xf32>, vector<1x32xf32> -> vector<1x32xf32>
    %c3 = arith.constant 3 : index
    %c0_27 = arith.constant 0 : index
    %46 = vector.load %arg8[%c3, %c0_27] : memref<16x32xf32, #tpu.memory_space<vmem>>, vector<1x32xf32>
    tpu.vector_store %arg8[%c3, %c0_27], %45 {strides = array<i32>} : memref<16x32xf32, #tpu.memory_space<vmem>>, vector<1x32xf32>,
    %47 = vector.extract_strided_slice %32 {offsets = [0, 64], sizes = [1, 16], strides = [1, 1]} : vector<2x256xf32> to vector<1x16xf32>
    %cst_28 = arith.constant dense<0.000000e+00> : vector<1x32xf32>
    %48 = tpu.matmul %47, %33, %cst_28 {dimension_numbers = #tpu.dot_dimension_numbers<[1], [0], [0], [1], [0, 0, 1, 1], [], []>} : vector<1x16xf32>, vector<16x32xf32>, vector<1x32xf32> -> vector<1x32xf32>
    %c4 = arith.constant 4 : index
    %c0_29 = arith.constant 0 : index
    %49 = vector.load %arg8[%c4, %c0_29] : memref<16x32xf32, #tpu.memory_space<vmem>>, vector<1x32xf32>
    tpu.vector_store %arg8[%c4, %c0_29], %48 {strides = array<i32>} : memref<16x32xf32, #tpu.memory_space<vmem>>, vector<1x32xf32>,
    %50 = vector.extract_strided_slice %32 {offsets = [0, 80], sizes = [1, 16], strides = [1, 1]} : vector<2x256xf32> to vector<1x16xf32>
    %cst_30 = arith.constant dense<0.000000e+00> : vector<1x32xf32>
    %51 = tpu.matmul %50, %33, %cst_30 {dimension_numbers = #tpu.dot_dimension_numbers<[1], [0], [0], [1], [0, 0, 1, 1], [], []>} : vector<1x16xf32>, vector<16x32xf32>, vector<1x32xf32> -> vector<1x32xf32>
    %c5 = arith.constant 5 : index
    %c0_31 = arith.constant 0 : index
    %52 = vector.load %arg8[%c5, %c0_31] : memref<16x32xf32, #tpu.memory_space<vmem>>, vector<1x32xf32>
    tpu.vector_store %arg8[%c5, %c0_31], %51 {strides = array<i32>} : memref<16x32xf32, #tpu.memory_space<vmem>>, vector<1x32xf32>,
    %53 = vector.extract_strided_slice %32 {offsets = [0, 96], sizes = [1, 16], strides = [1, 1]} : vector<2x256xf32> to vector<1x16xf32>
    %cst_32 = arith.constant dense<0.000000e+00> : vector<1x32xf32>
    %54 = tpu.matmul %53, %33, %cst_32 {dimension_numbers = #tpu.dot_dimension_numbers<[1], [0], [0], [1], [0, 0, 1, 1], [], []>} : vector<1x16xf32>, vector<16x32xf32>, vector<1x32xf32> -> vector<1x32xf32>
    %c6 = arith.constant 6 : index
    %c0_33 = arith.constant 0 : index
    %55 = vector.load %arg8[%c6, %c0_33] : memref<16x32xf32, #tpu.memory_space<vmem>>, vector<1x32xf32>
    tpu.vector_store %arg8[%c6, %c0_33], %54 {strides = array<i32>} : memref<16x32xf32, #tpu.memory_space<vmem>>, vector<1x32xf32>,
    %56 = vector.extract_strided_slice %32 {offsets = [0, 112], sizes = [1, 16], strides = [1, 1]} : vector<2x256xf32> to vector<1x16xf32>
    %cst_34 = arith.constant dense<0.000000e+00> : vector<1x32xf32>
    %57 = tpu.matmul %56, %33, %cst_34 {dimension_numbers = #tpu.dot_dimension_numbers<[1], [0], [0], [1], [0, 0, 1, 1], [], []>} : vector<1x16xf32>, vector<16x32xf32>, vector<1x32xf32> -> vector<1x32xf32>
    %c7 = arith.constant 7 : index
    %c0_35 = arith.constant 0 : index
    %58 = vector.load %arg8[%c7, %c0_35] : memref<16x32xf32, #tpu.memory_space<vmem>>, vector<1x32xf32>
    tpu.vector_store %arg8[%c7, %c0_35], %57 {strides = array<i32>} : memref<16x32xf32, #tpu.memory_space<vmem>>, vector<1x32xf32>,
    %59 = vector.extract_strided_slice %32 {offsets = [0, 128], sizes = [1, 16], strides = [1, 1]} : vector<2x256xf32> to vector<1x16xf32>
    %cst_36 = arith.constant dense<0.000000e+00> : vector<1x32xf32>
    %60 = tpu.matmul %59, %33, %cst_36 {dimension_numbers = #tpu.dot_dimension_numbers<[1], [0], [0], [1], [0, 0, 1, 1], [], []>} : vector<1x16xf32>, vector<16x32xf32>, vector<1x32xf32> -> vector<1x32xf32>
    %c8_37 = arith.constant 8 : index
    %c0_38 = arith.constant 0 : index
    %61 = vector.load %arg8[%c8_37, %c0_38] : memref<16x32xf32, #tpu.memory_space<vmem>>, vector<1x32xf32>
    tpu.vector_store %arg8[%c8_37, %c0_38], %60 {strides = array<i32>} : memref<16x32xf32, #tpu.memory_space<vmem>>, vector<1x32xf32>,
    %62 = vector.extract_strided_slice %32 {offsets = [0, 144], sizes = [1, 16], strides = [1, 1]} : vector<2x256xf32> to vector<1x16xf32>
    %cst_39 = arith.constant dense<0.000000e+00> : vector<1x32xf32>
    %63 = tpu.matmul %62, %33, %cst_39 {dimension_numbers = #tpu.dot_dimension_numbers<[1], [0], [0], [1], [0, 0, 1, 1], [], []>} : vector<1x16xf32>, vector<16x32xf32>, vector<1x32xf32> -> vector<1x32xf32>
    %c9 = arith.constant 9 : index
    %c0_40 = arith.constant 0 : index
    %64 = vector.load %arg8[%c9, %c0_40] : memref<16x32xf32, #tpu.memory_space<vmem>>, vector<1x32xf32>
    tpu.vector_store %arg8[%c9, %c0_40], %63 {strides = array<i32>} : memref<16x32xf32, #tpu.memory_space<vmem>>, vector<1x32xf32>,
    %65 = vector.extract_strided_slice %32 {offsets = [0, 160], sizes = [1, 16], strides = [1, 1]} : vector<2x256xf32> to vector<1x16xf32>
    %cst_41 = arith.constant dense<0.000000e+00> : vector<1x32xf32>
    %66 = tpu.matmul %65, %33, %cst_41 {dimension_numbers = #tpu.dot_dimension_numbers<[1], [0], [0], [1], [0, 0, 1, 1], [], []>} : vector<1x16xf32>, vector<16x32xf32>, vector<1x32xf32> -> vector<1x32xf32>
    %c10 = arith.constant 10 : index
    %c0_42 = arith.constant 0 : index
    %67 = vector.load %arg8[%c10, %c0_42] : memref<16x32xf32, #tpu.memory_space<vmem>>, vector<1x32xf32>
    tpu.vector_store %arg8[%c10, %c0_42], %66 {strides = array<i32>} : memref<16x32xf32, #tpu.memory_space<vmem>>, vector<1x32xf32>,
    %68 = vector.extract_strided_slice %32 {offsets = [0, 176], sizes = [1, 16], strides = [1, 1]} : vector<2x256xf32> to vector<1x16xf32>
    %cst_43 = arith.constant dense<0.000000e+00> : vector<1x32xf32>
    %69 = tpu.matmul %68, %33, %cst_43 {dimension_numbers = #tpu.dot_dimension_numbers<[1], [0], [0], [1], [0, 0, 1, 1], [], []>} : vector<1x16xf32>, vector<16x32xf32>, vector<1x32xf32> -> vector<1x32xf32>
    %c11 = arith.constant 11 : index
    %c0_44 = arith.constant 0 : index
    %70 = vector.load %arg8[%c11, %c0_44] : memref<16x32xf32, #tpu.memory_space<vmem>>, vector<1x32xf32>
    tpu.vector_store %arg8[%c11, %c0_44], %69 {strides = array<i32>} : memref<16x32xf32, #tpu.memory_space<vmem>>, vector<1x32xf32>,
    %71 = vector.extract_strided_slice %32 {offsets = [0, 192], sizes = [1, 16], strides = [1, 1]} : vector<2x256xf32> to vector<1x16xf32>
    %cst_45 = arith.constant dense<0.000000e+00> : vector<1x32xf32>
    %72 = tpu.matmul %71, %33, %cst_45 {dimension_numbers = #tpu.dot_dimension_numbers<[1], [0], [0], [1], [0, 0, 1, 1], [], []>} : vector<1x16xf32>, vector<16x32xf32>, vector<1x32xf32> -> vector<1x32xf32>
    %c12 = arith.constant 12 : index
    %c0_46 = arith.constant 0 : index
    %73 = vector.load %arg8[%c12, %c0_46] : memref<16x32xf32, #tpu.memory_space<vmem>>, vector<1x32xf32>
    tpu.vector_store %arg8[%c12, %c0_46], %72 {strides = array<i32>} : memref<16x32xf32, #tpu.memory_space<vmem>>, vector<1x32xf32>,
    %74 = vector.extract_strided_slice %32 {offsets = [0, 208], sizes = [1, 16], strides = [1, 1]} : vector<2x256xf32> to vector<1x16xf32>
    %cst_47 = arith.constant dense<0.000000e+00> : vector<1x32xf32>
    %75 = tpu.matmul %74, %33, %cst_47 {dimension_numbers = #tpu.dot_dimension_numbers<[1], [0], [0], [1], [0, 0, 1, 1], [], []>} : vector<1x16xf32>, vector<16x32xf32>, vector<1x32xf32> -> vector<1x32xf32>
    %c13 = arith.constant 13 : index
    %c0_48 = arith.constant 0 : index
    %76 = vector.load %arg8[%c13, %c0_48] : memref<16x32xf32, #tpu.memory_space<vmem>>, vector<1x32xf32>
    tpu.vector_store %arg8[%c13, %c0_48], %75 {strides = array<i32>} : memref<16x32xf32, #tpu.memory_space<vmem>>, vector<1x32xf32>,
    %77 = vector.extract_strided_slice %32 {offsets = [0, 224], sizes = [1, 16], strides = [1, 1]} : vector<2x256xf32> to vector<1x16xf32>
    %cst_49 = arith.constant dense<0.000000e+00> : vector<1x32xf32>
    %78 = tpu.matmul %77, %33, %cst_49 {dimension_numbers = #tpu.dot_dimension_numbers<[1], [0], [0], [1], [0, 0, 1, 1], [], []>} : vector<1x16xf32>, vector<16x32xf32>, vector<1x32xf32> -> vector<1x32xf32>
    %c14 = arith.constant 14 : index
    %c0_50 = arith.constant 0 : index
    %79 = vector.load %arg8[%c14, %c0_50] : memref<16x32xf32, #tpu.memory_space<vmem>>, vector<1x32xf32>
    tpu.vector_store %arg8[%c14, %c0_50], %78 {strides = array<i32>} : memref<16x32xf32, #tpu.memory_space<vmem>>, vector<1x32xf32>,
    %80 = vector.extract_strided_slice %32 {offsets = [0, 240], sizes = [1, 16], strides = [1, 1]} : vector<2x256xf32> to vector<1x16xf32>
    %cst_51 = arith.constant dense<0.000000e+00> : vector<1x32xf32>
    %81 = tpu.matmul %80, %33, %cst_51 {dimension_numbers = #tpu.dot_dimension_numbers<[1], [0], [0], [1], [0, 0, 1, 1], [], []>} : vector<1x16xf32>, vector<16x32xf32>, vector<1x32xf32> -> vector<1x32xf32>
    %c15 = arith.constant 15 : index
    %c0_52 = arith.constant 0 : index
    %82 = vector.load %arg8[%c15, %c0_52] : memref<16x32xf32, #tpu.memory_space<vmem>>, vector<1x32xf32>
    tpu.vector_store %arg8[%c15, %c0_52], %81 {strides = array<i32>} : memref<16x32xf32, #tpu.memory_space<vmem>>, vector<1x32xf32>,
    %c0_53 = arith.constant 0 : index
    %c0_54 = arith.constant 0 : index
    %83 = vector.load %arg8[%c0_53, %c0_54] : memref<16x32xf32, #tpu.memory_space<vmem>>, vector<16x32xf32>
    %cst_55 = arith.constant dense<0.000000e+00> : vector<32x32xf32>
    %84 = tpu.matmul %34, %83, %cst_55 {dimension_numbers = #tpu.dot_dimension_numbers<[1], [0], [0], [1], [0, 0, 1, 1], [], []>} : vector<32x16xf32>, vector<16x32xf32>, vector<32x32xf32> -> vector<32x32xf32>
    %c0_56 = arith.constant 0 : index
    %c0_57 = arith.constant 0 : index
    %85 = vector.load %arg7[%c0_56, %c0_57] : memref<64x32xf32, #tpu.memory_space<vmem>>, vector<32x32xf32>
    tpu.vector_store %arg7[%c0_56, %c0_57], %84 {strides = array<i32>} : memref<64x32xf32, #tpu.memory_space<vmem>>, vector<32x32xf32>,
    %86 = vector.extract_strided_slice %32 {offsets = [1, 0], sizes = [1, 16], strides = [1, 1]} : vector<2x256xf32> to vector<1x16xf32>
    %cst_58 = arith.constant dense<0.000000e+00> : vector<1x32xf32>
    %87 = tpu.matmul %86, %33, %cst_58 {dimension_numbers = #tpu.dot_dimension_numbers<[1], [0], [0], [1], [0, 0, 1, 1], [], []>} : vector<1x16xf32>, vector<16x32xf32>, vector<1x32xf32> -> vector<1x32xf32>
    %c0_59 = arith.constant 0 : index
    %c0_60 = arith.constant 0 : index
    %88 = vector.load %arg8[%c0_59, %c0_60] : memref<16x32xf32, #tpu.memory_space<vmem>>, vector<1x32xf32>
    tpu.vector_store %arg8[%c0_59, %c0_60], %87 {strides = array<i32>} : memref<16x32xf32, #tpu.memory_space<vmem>>, vector<1x32xf32>,
    %89 = vector.extract_strided_slice %32 {offsets = [1, 16], sizes = [1, 16], strides = [1, 1]} : vector<2x256xf32> to vector<1x16xf32>
    %cst_61 = arith.constant dense<0.000000e+00> : vector<1x32xf32>
    %90 = tpu.matmul %89, %33, %cst_61 {dimension_numbers = #tpu.dot_dimension_numbers<[1], [0], [0], [1], [0, 0, 1, 1], [], []>} : vector<1x16xf32>, vector<16x32xf32>, vector<1x32xf32> -> vector<1x32xf32>
    %c1_62 = arith.constant 1 : index
    %c0_63 = arith.constant 0 : index
    %91 = vector.load %arg8[%c1_62, %c0_63] : memref<16x32xf32, #tpu.memory_space<vmem>>, vector<1x32xf32>
    tpu.vector_store %arg8[%c1_62, %c0_63], %90 {strides = array<i32>} : memref<16x32xf32, #tpu.memory_space<vmem>>, vector<1x32xf32>,
    %92 = vector.extract_strided_slice %32 {offsets = [1, 32], sizes = [1, 16], strides = [1, 1]} : vector<2x256xf32> to vector<1x16xf32>
    %cst_64 = arith.constant dense<0.000000e+00> : vector<1x32xf32>
    %93 = tpu.matmul %92, %33, %cst_64 {dimension_numbers = #tpu.dot_dimension_numbers<[1], [0], [0], [1], [0, 0, 1, 1], [], []>} : vector<1x16xf32>, vector<16x32xf32>, vector<1x32xf32> -> vector<1x32xf32>
    %c2_65 = arith.constant 2 : index
    %c0_66 = arith.constant 0 : index
    %94 = vector.load %arg8[%c2_65, %c0_66] : memref<16x32xf32, #tpu.memory_space<vmem>>, vector<1x32xf32>
    tpu.vector_store %arg8[%c2_65, %c0_66], %93 {strides = array<i32>} : memref<16x32xf32, #tpu.memory_space<vmem>>, vector<1x32xf32>,
    %95 = vector.extract_strided_slice %32 {offsets = [1, 48], sizes = [1, 16], strides = [1, 1]} : vector<2x256xf32> to vector<1x16xf32>
    %cst_67 = arith.constant dense<0.000000e+00> : vector<1x32xf32>
    %96 = tpu.matmul %95, %33, %cst_67 {dimension_numbers = #tpu.dot_dimension_numbers<[1], [0], [0], [1], [0, 0, 1, 1], [], []>} : vector<1x16xf32>, vector<16x32xf32>, vector<1x32xf32> -> vector<1x32xf32>
    %c3_68 = arith.constant 3 : index
    %c0_69 = arith.constant 0 : index
    %97 = vector.load %arg8[%c3_68, %c0_69] : memref<16x32xf32, #tpu.memory_space<vmem>>, vector<1x32xf32>
    tpu.vector_store %arg8[%c3_68, %c0_69], %96 {strides = array<i32>} : memref<16x32xf32, #tpu.memory_space<vmem>>, vector<1x32xf32>,
    %98 = vector.extract_strided_slice %32 {offsets = [1, 64], sizes = [1, 16], strides = [1, 1]} : vector<2x256xf32> to vector<1x16xf32>
    %cst_70 = arith.constant dense<0.000000e+00> : vector<1x32xf32>
    %99 = tpu.matmul %98, %33, %cst_70 {dimension_numbers = #tpu.dot_dimension_numbers<[1], [0], [0], [1], [0, 0, 1, 1], [], []>} : vector<1x16xf32>, vector<16x32xf32>, vector<1x32xf32> -> vector<1x32xf32>
    %c4_71 = arith.constant 4 : index
    %c0_72 = arith.constant 0 : index
    %100 = vector.load %arg8[%c4_71, %c0_72] : memref<16x32xf32, #tpu.memory_space<vmem>>, vector<1x32xf32>
    tpu.vector_store %arg8[%c4_71, %c0_72], %99 {strides = array<i32>} : memref<16x32xf32, #tpu.memory_space<vmem>>, vector<1x32xf32>,
    %101 = vector.extract_strided_slice %32 {offsets = [1, 80], sizes = [1, 16], strides = [1, 1]} : vector<2x256xf32> to vector<1x16xf32>
    %cst_73 = arith.constant dense<0.000000e+00> : vector<1x32xf32>
    %102 = tpu.matmul %101, %33, %cst_73 {dimension_numbers = #tpu.dot_dimension_numbers<[1], [0], [0], [1], [0, 0, 1, 1], [], []>} : vector<1x16xf32>, vector<16x32xf32>, vector<1x32xf32> -> vector<1x32xf32>
    %c5_74 = arith.constant 5 : index
    %c0_75 = arith.constant 0 : index
    %103 = vector.load %arg8[%c5_74, %c0_75] : memref<16x32xf32, #tpu.memory_space<vmem>>, vector<1x32xf32>
    tpu.vector_store %arg8[%c5_74, %c0_75], %102 {strides = array<i32>} : memref<16x32xf32, #tpu.memory_space<vmem>>, vector<1x32xf32>,
    %104 = vector.extract_strided_slice %32 {offsets = [1, 96], sizes = [1, 16], strides = [1, 1]} : vector<2x256xf32> to vector<1x16xf32>
    %cst_76 = arith.constant dense<0.000000e+00> : vector<1x32xf32>
    %105 = tpu.matmul %104, %33, %cst_76 {dimension_numbers = #tpu.dot_dimension_numbers<[1], [0], [0], [1], [0, 0, 1, 1], [], []>} : vector<1x16xf32>, vector<16x32xf32>, vector<1x32xf32> -> vector<1x32xf32>
    %c6_77 = arith.constant 6 : index
    %c0_78 = arith.constant 0 : index
    %106 = vector.load %arg8[%c6_77, %c0_78] : memref<16x32xf32, #tpu.memory_space<vmem>>, vector<1x32xf32>
    tpu.vector_store %arg8[%c6_77, %c0_78], %105 {strides = array<i32>} : memref<16x32xf32, #tpu.memory_space<vmem>>, vector<1x32xf32>,
    %107 = vector.extract_strided_slice %32 {offsets = [1, 112], sizes = [1, 16], strides = [1, 1]} : vector<2x256xf32> to vector<1x16xf32>
    %cst_79 = arith.constant dense<0.000000e+00> : vector<1x32xf32>
    %108 = tpu.matmul %107, %33, %cst_79 {dimension_numbers = #tpu.dot_dimension_numbers<[1], [0], [0], [1], [0, 0, 1, 1], [], []>} : vector<1x16xf32>, vector<16x32xf32>, vector<1x32xf32> -> vector<1x32xf32>
    %c7_80 = arith.constant 7 : index
    %c0_81 = arith.constant 0 : index
    %109 = vector.load %arg8[%c7_80, %c0_81] : memref<16x32xf32, #tpu.memory_space<vmem>>, vector<1x32xf32>
    tpu.vector_store %arg8[%c7_80, %c0_81], %108 {strides = array<i32>} : memref<16x32xf32, #tpu.memory_space<vmem>>, vector<1x32xf32>,
    %110 = vector.extract_strided_slice %32 {offsets = [1, 128], sizes = [1, 16], strides = [1, 1]} : vector<2x256xf32> to vector<1x16xf32>
    %cst_82 = arith.constant dense<0.000000e+00> : vector<1x32xf32>
    %111 = tpu.matmul %110, %33, %cst_82 {dimension_numbers = #tpu.dot_dimension_numbers<[1], [0], [0], [1], [0, 0, 1, 1], [], []>} : vector<1x16xf32>, vector<16x32xf32>, vector<1x32xf32> -> vector<1x32xf32>
    %c8_83 = arith.constant 8 : index
    %c0_84 = arith.constant 0 : index
    %112 = vector.load %arg8[%c8_83, %c0_84] : memref<16x32xf32, #tpu.memory_space<vmem>>, vector<1x32xf32>
    tpu.vector_store %arg8[%c8_83, %c0_84], %111 {strides = array<i32>} : memref<16x32xf32, #tpu.memory_space<vmem>>, vector<1x32xf32>,
    %113 = vector.extract_strided_slice %32 {offsets = [1, 144], sizes = [1, 16], strides = [1, 1]} : vector<2x256xf32> to vector<1x16xf32>
    %cst_85 = arith.constant dense<0.000000e+00> : vector<1x32xf32>
    %114 = tpu.matmul %113, %33, %cst_85 {dimension_numbers = #tpu.dot_dimension_numbers<[1], [0], [0], [1], [0, 0, 1, 1], [], []>} : vector<1x16xf32>, vector<16x32xf32>, vector<1x32xf32> -> vector<1x32xf32>
    %c9_86 = arith.constant 9 : index
    %c0_87 = arith.constant 0 : index
    %115 = vector.load %arg8[%c9_86, %c0_87] : memref<16x32xf32, #tpu.memory_space<vmem>>, vector<1x32xf32>
    tpu.vector_store %arg8[%c9_86, %c0_87], %114 {strides = array<i32>} : memref<16x32xf32, #tpu.memory_space<vmem>>, vector<1x32xf32>,
    %116 = vector.extract_strided_slice %32 {offsets = [1, 160], sizes = [1, 16], strides = [1, 1]} : vector<2x256xf32> to vector<1x16xf32>
    %cst_88 = arith.constant dense<0.000000e+00> : vector<1x32xf32>
    %117 = tpu.matmul %116, %33, %cst_88 {dimension_numbers = #tpu.dot_dimension_numbers<[1], [0], [0], [1], [0, 0, 1, 1], [], []>} : vector<1x16xf32>, vector<16x32xf32>, vector<1x32xf32> -> vector<1x32xf32>
    %c10_89 = arith.constant 10 : index
    %c0_90 = arith.constant 0 : index
    %118 = vector.load %arg8[%c10_89, %c0_90] : memref<16x32xf32, #tpu.memory_space<vmem>>, vector<1x32xf32>
    tpu.vector_store %arg8[%c10_89, %c0_90], %117 {strides = array<i32>} : memref<16x32xf32, #tpu.memory_space<vmem>>, vector<1x32xf32>,
    %119 = vector.extract_strided_slice %32 {offsets = [1, 176], sizes = [1, 16], strides = [1, 1]} : vector<2x256xf32> to vector<1x16xf32>
    %cst_91 = arith.constant dense<0.000000e+00> : vector<1x32xf32>
    %120 = tpu.matmul %119, %33, %cst_91 {dimension_numbers = #tpu.dot_dimension_numbers<[1], [0], [0], [1], [0, 0, 1, 1], [], []>} : vector<1x16xf32>, vector<16x32xf32>, vector<1x32xf32> -> vector<1x32xf32>
    %c11_92 = arith.constant 11 : index
    %c0_93 = arith.constant 0 : index
    %121 = vector.load %arg8[%c11_92, %c0_93] : memref<16x32xf32, #tpu.memory_space<vmem>>, vector<1x32xf32>
    tpu.vector_store %arg8[%c11_92, %c0_93], %120 {strides = array<i32>} : memref<16x32xf32, #tpu.memory_space<vmem>>, vector<1x32xf32>,
    %122 = vector.extract_strided_slice %32 {offsets = [1, 192], sizes = [1, 16], strides = [1, 1]} : vector<2x256xf32> to vector<1x16xf32>
    %cst_94 = arith.constant dense<0.000000e+00> : vector<1x32xf32>
    %123 = tpu.matmul %122, %33, %cst_94 {dimension_numbers = #tpu.dot_dimension_numbers<[1], [0], [0], [1], [0, 0, 1, 1], [], []>} : vector<1x16xf32>, vector<16x32xf32>, vector<1x32xf32> -> vector<1x32xf32>
    %c12_95 = arith.constant 12 : index
    %c0_96 = arith.constant 0 : index
    %124 = vector.load %arg8[%c12_95, %c0_96] : memref<16x32xf32, #tpu.memory_space<vmem>>, vector<1x32xf32>
    tpu.vector_store %arg8[%c12_95, %c0_96], %123 {strides = array<i32>} : memref<16x32xf32, #tpu.memory_space<vmem>>, vector<1x32xf32>,
    %125 = vector.extract_strided_slice %32 {offsets = [1, 208], sizes = [1, 16], strides = [1, 1]} : vector<2x256xf32> to vector<1x16xf32>
    %cst_97 = arith.constant dense<0.000000e+00> : vector<1x32xf32>
    %126 = tpu.matmul %125, %33, %cst_97 {dimension_numbers = #tpu.dot_dimension_numbers<[1], [0], [0], [1], [0, 0, 1, 1], [], []>} : vector<1x16xf32>, vector<16x32xf32>, vector<1x32xf32> -> vector<1x32xf32>
    %c13_98 = arith.constant 13 : index
    %c0_99 = arith.constant 0 : index
    %127 = vector.load %arg8[%c13_98, %c0_99] : memref<16x32xf32, #tpu.memory_space<vmem>>, vector<1x32xf32>
    tpu.vector_store %arg8[%c13_98, %c0_99], %126 {strides = array<i32>} : memref<16x32xf32, #tpu.memory_space<vmem>>, vector<1x32xf32>,
    %128 = vector.extract_strided_slice %32 {offsets = [1, 224], sizes = [1, 16], strides = [1, 1]} : vector<2x256xf32> to vector<1x16xf32>
    %cst_100 = arith.constant dense<0.000000e+00> : vector<1x32xf32>
    %129 = tpu.matmul %128, %33, %cst_100 {dimension_numbers = #tpu.dot_dimension_numbers<[1], [0], [0], [1], [0, 0, 1, 1], [], []>} : vector<1x16xf32>, vector<16x32xf32>, vector<1x32xf32> -> vector<1x32xf32>
    %c14_101 = arith.constant 14 : index
    %c0_102 = arith.constant 0 : index
    %130 = vector.load %arg8[%c14_101, %c0_102] : memref<16x32xf32, #tpu.memory_space<vmem>>, vector<1x32xf32>
    tpu.vector_store %arg8[%c14_101, %c0_102], %129 {strides = array<i32>} : memref<16x32xf32, #tpu.memory_space<vmem>>, vector<1x32xf32>,
    %131 = vector.extract_strided_slice %32 {offsets = [1, 240], sizes = [1, 16], strides = [1, 1]} : vector<2x256xf32> to vector<1x16xf32>
    %cst_103 = arith.constant dense<0.000000e+00> : vector<1x32xf32>
    %132 = tpu.matmul %131, %33, %cst_103 {dimension_numbers = #tpu.dot_dimension_numbers<[1], [0], [0], [1], [0, 0, 1, 1], [], []>} : vector<1x16xf32>, vector<16x32xf32>, vector<1x32xf32> -> vector<1x32xf32>
    %c15_104 = arith.constant 15 : index
    %c0_105 = arith.constant 0 : index
    %133 = vector.load %arg8[%c15_104, %c0_105] : memref<16x32xf32, #tpu.memory_space<vmem>>, vector<1x32xf32>
    tpu.vector_store %arg8[%c15_104, %c0_105], %132 {strides = array<i32>} : memref<16x32xf32, #tpu.memory_space<vmem>>, vector<1x32xf32>,
    %c0_106 = arith.constant 0 : index
    %c0_107 = arith.constant 0 : index
    %134 = vector.load %arg8[%c0_106, %c0_107] : memref<16x32xf32, #tpu.memory_space<vmem>>, vector<16x32xf32>
    %cst_108 = arith.constant dense<0.000000e+00> : vector<32x32xf32>
    %135 = tpu.matmul %34, %134, %cst_108 {dimension_numbers = #tpu.dot_dimension_numbers<[1], [0], [0], [1], [0, 0, 1, 1], [], []>} : vector<32x16xf32>, vector<16x32xf32>, vector<32x32xf32> -> vector<32x32xf32>
    %c32 = arith.constant 32 : index
    %c0_109 = arith.constant 0 : index
    %136 = vector.load %arg7[%c32, %c0_109] : memref<64x32xf32, #tpu.memory_space<vmem>>, vector<32x32xf32>
    tpu.vector_store %arg7[%c32, %c0_109], %135 {strides = array<i32>} : memref<64x32xf32, #tpu.memory_space<vmem>>, vector<32x32xf32>,
    return
  }
  func.func @transform_0(%arg0: i32) -> (i32, i32) {
    %c0_i32 = arith.constant 0 : i32
    %c0_i32_0 = arith.constant 0 : i32
    %c0_i32_1 = arith.constant 0 : i32
    return %c0_i32, %c0_i32_0 : i32, i32
  }
  func.func @transform_1(%arg0: i32) -> (i32, i32) {
    %c0_i32 = arith.constant 0 : i32
    %c0_i32_0 = arith.constant 0 : i32
    %c0_i32_1 = arith.constant 0 : i32
    return %c0_i32, %c0_i32_0 : i32, i32
  }
  func.func @transform_2(%arg0: i32) -> (i32, i32) {
    %c0_i32 = arith.constant 0 : i32
    %c0_i32_0 = arith.constant 0 : i32
    %c0_i32_1 = arith.constant 0 : i32
    return %c0_i32, %c0_i32_0 : i32, i32
  }
  func.func @transform_3(%arg0: i32) -> (i32, i32) {
    %c0_i32 = arith.constant 0 : i32
    %c0_i32_0 = arith.constant 0 : i32
    %c0_i32_1 = arith.constant 0 : i32
    return %c0_i32, %c0_i32_0 : i32, i32
  }
  func.func @transform_4(%arg0: i32) -> (i32, i32) {
    %c0_i32 = arith.constant 0 : i32
    %c0_i32_0 = arith.constant 0 : i32
    %c0_i32_1 = arith.constant 0 : i32
    return %c0_i32, %c0_i32_0 : i32, i32
  }
  func.func @transform_5(%arg0: i32) -> (i32, i32) {
    %c0_i32 = arith.constant 0 : i32
    %c0_i32_0 = arith.constant 0 : i32
    %c0_i32_1 = arith.constant 0 : i32
    return %c0_i32, %c0_i32_0 : i32, i32
  }
  func.func @transform_6(%arg0: i32) -> (i32, i32) {
    %c0_i32 = arith.constant 0 : i32
    %c0_i32_0 = arith.constant 0 : i32
    %c0_i32_1 = arith.constant 0 : i32
    return %c0_i32, %c0_i32_0 : i32, i32
  }
}

</mosaic_0001>

<llo_original>
// kernel: tpu_custom_call.1
$region0: #{tpu_custom_call.1}
  #allocation0 [shape = 'u32[]', space=smem, size = 0x4, offset = 0x4, fixed_abs, tag = 'smem constant byte address 0x4 - core index']
  #allocation1 [shape = 'u32[144,128]{1,0:T(1,128)}', space=vmem, size = 0x12000, scoped, tag = 'internal scratch']
  #allocation2 [shape = 'f32[16,32]{1,0:T(8,128)}', space=vmem, size = 0x2000, scoped, tag = 'scratch operand']
  %s0 = inlined_call_operand.hbm [shape: bf16[256,256], index: 0, kind: input, shape index: {}]
  %s1 = inlined_call_operand.vmem [shape: bf16[8,256], index: 1, kind: input, shape index: {}]
  %s2 = inlined_call_operand.vmem [shape: f32[16,32], index: 2, kind: input, shape index: {}]
  %s3 = inlined_call_operand.vmem [shape: f32[1,256], index: 3, kind: input, shape index: {}]
  %s4 = inlined_call_operand.vmem [shape: f32[16,32], index: 4, kind: input, shape index: {}]
  %s5 = inlined_call_operand.vmem [shape: f32[32,16], index: 5, kind: input, shape index: {}]
  %s6 = inlined_call_operand.vmem [shape: f32[64,32], index: 6, kind: output, shape index: {}]
  %s7 = sld [smem:[#allocation0]]
  $region38: #{tpu_custom_call.1} parent=0
    _
  %s9 = ssub.s32 1, %s7
  %s10 = scalar_select 0, %s9, %s7
  $region1: #{tpu_custom_call.1} parent=0
    #allocation3 [shape = 'u8[131072]{0}', space=vmem, size = 0x20000, scoped, tag = 'input window, operand 0, single buffered']
    #allocation4 [shape = 's32[1]{0}', space=sflag, size = 0x4, scoped, tag = 'scoped memory for tpu_custom_call.1']
    %11 = vsyncpa [#allocation4], 0
    // Predicated region
    $region2: #{tpu_custom_call.1} parent=1 // pred_check
      _
    $region3: #{tpu_custom_call.1} parent=1 // pred_check_branch
      %13 = sbr.rel (0) target = $region5
    $region4: #{tpu_custom_call.1} parent=1 // pred_region
      %s15 = ssub.s32 4096, 4096
      %16 = vsyncadd [#allocation4], %s15
      %s17 = sshll.u32 [#allocation3], 4
      %s18 = int_to_ptr.vmem [resolvable:$true] %s17
      %23 = dma.hbm_to_vmem [thread:$0]  %s0, 4096, %s18, [#allocation4], 128, 128, 8
    $region5: #{tpu_custom_call.1} parent=1 // pred_fallthru
      _
    // Predicated region
    $region6: #{tpu_custom_call.1} parent=1 // pred_check
      _
    $region7: #{tpu_custom_call.1} parent=1 // pred_check_branch
      %25 = sbr.rel (0) target = $region9
    $region8: #{tpu_custom_call.1} parent=1 // pred_region
      _
    $region9: #{tpu_custom_call.1} parent=1 // pred_fallthru
      _
    // Predicated region
    $region10: #{tpu_custom_call.1} parent=1 // pred_check
      _
    $region11: #{tpu_custom_call.1} parent=1 // pred_check_branch
      %27 = sbr.rel (0) target = $region13
    $region12: #{tpu_custom_call.1} parent=1 // pred_region
      _
    $region13: #{tpu_custom_call.1} parent=1 // pred_fallthru
      _
    // Predicated region
    $region14: #{tpu_custom_call.1} parent=1 // pred_check
      _
    $region15: #{tpu_custom_call.1} parent=1 // pred_check_branch
      %29 = sbr.rel (0) target = $region17
    $region16: #{tpu_custom_call.1} parent=1 // pred_region
      _
    $region17: #{tpu_custom_call.1} parent=1 // pred_fallthru
      _
    // Predicated region
    $region18: #{tpu_custom_call.1} parent=1 // pred_check
      _
    $region19: #{tpu_custom_call.1} parent=1 // pred_check_branch
      %31 = sbr.rel (0) target = $region21
    $region20: #{tpu_custom_call.1} parent=1 // pred_region
      _
    $region21: #{tpu_custom_call.1} parent=1 // pred_fallthru
      _
    // Predicated region
    $region22: #{tpu_custom_call.1} parent=1 // pred_check
      _
    $region23: #{tpu_custom_call.1} parent=1 // pred_check_branch
      %33 = sbr.rel (0) target = $region25
    $region24: #{tpu_custom_call.1} parent=1 // pred_region
      _
    $region25: #{tpu_custom_call.1} parent=1 // pred_fallthru
      _
    // Predicated region
    $region26: #{tpu_custom_call.1} parent=1 // pred_check
      _
    $region27: #{tpu_custom_call.1} parent=1 // pred_check_branch
      %35 = sbr.rel (0) target = $region29
    $region28: #{tpu_custom_call.1} parent=1 // pred_region
      %36 = dma.done [#allocation4], 4096
    $region29: #{tpu_custom_call.1} parent=1 // pred_fallthru
      _
    %v37 = vld [vmem:[#allocation3] sm:$0xff]
    %v38 = vld [vmem:[#allocation3 + $0x8] sm:$0xff]
    %v39 = vld [vmem:[#allocation3 + $0x10] sm:$0xff]
    %v40 = vld [vmem:[#allocation3 + $0x18] sm:$0xff]
    %v41 = vld [vmem:[#allocation3 + $0x20] sm:$0xff]
    %v42 = vld [vmem:[#allocation3 + $0x28] sm:$0xff]
    %v43 = vld [vmem:[#allocation3 + $0x30] sm:$0xff]
    %v44 = vld [vmem:[#allocation3 + $0x38] sm:$0xff]
    %v45 = vld [vmem:[#allocation3 + $0x40] sm:$0xff]
    %v46 = vld [vmem:[#allocation3 + $0x48] sm:$0xff]
    %v47 = vld [vmem:[#allocation3 + $0x50] sm:$0xff]
    %v48 = vld [vmem:[#allocation3 + $0x58] sm:$0xff]
    %v49 = vld [vmem:[#allocation3 + $0x60] sm:$0xff]
    %v50 = vld [vmem:[#allocation3 + $0x68] sm:$0xff]
    %v51 = vld [vmem:[#allocation3 + $0x70] sm:$0xff]
    %v52 = vld [vmem:[#allocation3 + $0x78] sm:$0xff]
    %v53 = vld [vmem:[#allocation3 + $0x80] sm:$0xff]
    %v54 = vld [vmem:[#allocation3 + $0x88] sm:$0xff]
    %v55 = vld [vmem:[#allocation3 + $0x90] sm:$0xff]
    %v56 = vld [vmem:[#allocation3 + $0x98] sm:$0xff]
    %v57 = vld [vmem:[#allocation3 + $0xa0] sm:$0xff]
    %v58 = vld [vmem:[#allocation3 + $0xa8] sm:$0xff]
    %v59 = vld [vmem:[#allocation3 + $0xb0] sm:$0xff]
    %v60 = vld [vmem:[#allocation3 + $0xb8] sm:$0xff]
    %v61 = vld [vmem:[#allocation3 + $0xc0] sm:$0xff]
    %v62 = vld [vmem:[#allocation3 + $0xc8] sm:$0xff]
    %v63 = vld [vmem:[#allocation3 + $0xd0] sm:$0xff]
    %v64 = vld [vmem:[#allocation3 + $0xd8] sm:$0xff]
    %v65 = vld [vmem:[#allocation3 + $0xe0] sm:$0xff]
    %v66 = vld [vmem:[#allocation3 + $0xe8] sm:$0xff]
    %v67 = vld [vmem:[#allocation3 + $0xf0] sm:$0xff]
    %v68 = vld [vmem:[#allocation3 + $0xf8] sm:$0xff]
    %v69 = vld [vmem:[%s1] sm:$0xff]
    %v71 = vunpack.c.l.b16 %v69
    %v72 = vunpack.c.h.b16 %v69
    %v73 = vpack.c.b16 %v71, %v71
    %v74 = vpack.c.b16 %v72, %v72
    %v109 = vunpack.c.l.b16 %v37
    %v110 = vunpack.c.h.b16 %v37
    %v111 = vunpack.c.l.b16 %v38
    %v112 = vunpack.c.h.b16 %v38
    %v113 = vunpack.c.l.b16 %v39
    %v114 = vunpack.c.h.b16 %v39
    %v115 = vunpack.c.l.b16 %v40
    %v116 = vunpack.c.h.b16 %v40
    %v117 = vunpack.c.l.b16 %v41
    %v118 = vunpack.c.h.b16 %v41
    %v119 = vunpack.c.l.b16 %v42
    %v120 = vunpack.c.h.b16 %v42
    %v121 = vunpack.c.l.b16 %v43
    %v122 = vunpack.c.h.b16 %v43
    %v123 = vunpack.c.l.b16 %v44
    %v124 = vunpack.c.h.b16 %v44
    %v125 = vunpack.c.l.b16 %v45
    %v126 = vunpack.c.h.b16 %v45
    %v127 = vunpack.c.l.b16 %v46
    %v128 = vunpack.c.h.b16 %v46
    %v129 = vunpack.c.l.b16 %v47
    %v130 = vunpack.c.h.b16 %v47
    %v131 = vunpack.c.l.b16 %v48
    %v132 = vunpack.c.h.b16 %v48
    %v133 = vunpack.c.l.b16 %v49
    %v134 = vunpack.c.h.b16 %v49
    %v135 = vunpack.c.l.b16 %v50
    %v136 = vunpack.c.h.b16 %v50
    %v137 = vunpack.c.l.b16 %v51
    %v138 = vunpack.c.h.b16 %v51
    %v139 = vunpack.c.l.b16 %v52
    %v140 = vunpack.c.h.b16 %v52
    %v141 = vunpack.c.l.b16 %v53
    %v142 = vunpack.c.h.b16 %v53
    %v143 = vunpack.c.l.b16 %v54
    %v144 = vunpack.c.h.b16 %v54
    %v145 = vunpack.c.l.b16 %v55
    %v146 = vunpack.c.h.b16 %v55
    %v147 = vunpack.c.l.b16 %v56
    %v148 = vunpack.c.h.b16 %v56
    %v149 = vunpack.c.l.b16 %v57
    %v150 = vunpack.c.h.b16 %v57
    %v151 = vunpack.c.l.b16 %v58
    %v152 = vunpack.c.h.b16 %v58
    %v153 = vunpack.c.l.b16 %v59
    %v154 = vunpack.c.h.b16 %v59
    %v155 = vunpack.c.l.b16 %v60
    %v156 = vunpack.c.h.b16 %v60
    %v157 = vunpack.c.l.b16 %v61
    %v158 = vunpack.c.h.b16 %v61
    %v159 = vunpack.c.l.b16 %v62
    %v160 = vunpack.c.h.b16 %v62
    %v161 = vunpack.c.l.b16 %v63
    %v162 = vunpack.c.h.b16 %v63
    %v163 = vunpack.c.l.b16 %v64
    %v164 = vunpack.c.h.b16 %v64
    %v165 = vunpack.c.l.b16 %v65
    %v166 = vunpack.c.h.b16 %v65
    %v167 = vunpack.c.l.b16 %v66
    %v168 = vunpack.c.h.b16 %v66
    %v169 = vunpack.c.l.b16 %v67
    %v170 = vunpack.c.h.b16 %v67
    %v171 = vunpack.c.l.b16 %v68
    %v172 = vunpack.c.h.b16 %v68
    %v173 = vpack.c.b16 %v111, %v109
    %v174 = vpack.c.b16 %v112, %v110
    %v175 = vpack.c.b16 %v115, %v113
    %v176 = vpack.c.b16 %v116, %v114
    %v177 = vpack.c.b16 %v119, %v117
    %v178 = vpack.c.b16 %v120, %v118
    %v179 = vpack.c.b16 %v123, %v121
    %v180 = vpack.c.b16 %v124, %v122
    %v181 = vpack.c.b16 %v127, %v125
    %v182 = vpack.c.b16 %v128, %v126
    %v183 = vpack.c.b16 %v131, %v129
    %v184 = vpack.c.b16 %v132, %v130
    %v185 = vpack.c.b16 %v135, %v133
    %v186 = vpack.c.b16 %v136, %v134
    %v187 = vpack.c.b16 %v139, %v137
    %v188 = vpack.c.b16 %v140, %v138
    %v189 = vpack.c.b16 %v143, %v141
    %v190 = vpack.c.b16 %v144, %v142
    %v191 = vpack.c.b16 %v147, %v145
    %v192 = vpack.c.b16 %v148, %v146
    %v193 = vpack.c.b16 %v151, %v149
    %v194 = vpack.c.b16 %v152, %v150
    %v195 = vpack.c.b16 %v155, %v153
    %v196 = vpack.c.b16 %v156, %v154
    %v197 = vpack.c.b16 %v159, %v157
    %v198 = vpack.c.b16 %v160, %v158
    %v199 = vpack.c.b16 %v163, %v161
    %v200 = vpack.c.b16 %v164, %v162
    %v201 = vpack.c.b16 %v167, %v165
    %v202 = vpack.c.b16 %v168, %v166
    %v203 = vpack.c.b16 %v171, %v169
    %v204 = vpack.c.b16 %v172, %v170
    %237 = vmatprep.subr.bf16.mxu0 %v174
    %238 = vmatpush1.bf16.xpose.msra.mxu0 %v173
    %239 = vmatprep.subr.bf16.mxu0 %v176
    %240 = vmatpush1.bf16.xpose.msra.mxu0 %v175
    %241 = vmatprep.subr.bf16.mxu0 %v178
    %242 = vmatpush1.bf16.xpose.msra.mxu0 %v177
    %243 = vmatprep.subr.bf16.mxu0 %v180
    %244 = vmatpush1.bf16.xpose.msra.mxu0 %v179
    %245 = vmatprep.subr.bf16.mxu0 %v182
    %246 = vmatpush1.bf16.xpose.msra.mxu0 %v181
    %247 = vmatprep.subr.bf16.mxu0 %v184
    %248 = vmatpush1.bf16.xpose.msra.mxu0 %v183
    %249 = vmatprep.subr.bf16.mxu0 %v186
    %250 = vmatpush1.bf16.xpose.msra.mxu0 %v185
    %251 = vmatprep.subr.bf16.mxu0 %v188
    %252 = vmatpush1.bf16.xpose.msra.mxu0 %v187
    %253 = vmatprep.subr.bf16.mxu0 %v190
    %254 = vmatpush1.bf16.xpose.msra.mxu0 %v189
    %255 = vmatprep.subr.bf16.mxu0 %v192
    %256 = vmatpush1.bf16.xpose.msra.mxu0 %v191
    %257 = vmatprep.subr.bf16.mxu0 %v194
    %258 = vmatpush1.bf16.xpose.msra.mxu0 %v193
    %259 = vmatprep.subr.bf16.mxu0 %v196
    %260 = vmatpush1.bf16.xpose.msra.mxu0 %v195
    %261 = vmatprep.subr.bf16.mxu0 %v198
    %262 = vmatpush1.bf16.xpose.msra.mxu0 %v197
    %263 = vmatprep.subr.bf16.mxu0 %v200
    %264 = vmatpush1.bf16.xpose.msra.mxu0 %v199
    %265 = vmatprep.subr.bf16.mxu0 %v202
    %266 = vmatpush1.bf16.xpose.msra.mxu0 %v201
    %267 = vmatprep.subr.bf16.mxu0 %v204
    %268 = vmatpush1.bf16.xpose.msra.mxu0 %v203
    %269 = vmatprep.mubr.bf16.mxu0 %v74
    %270 = vmatmul.mubr.bf16.gmra.mrb[0].mxu0 %v73
    %v271 = vpop.f32.mrb[0].mxu0
    %v272 = vadd.f32 0.0, %v271
    %v273 = vpop.f32.mrb[0].mxu0
    %v274 = vadd.f32 0.0, %v273
    %v275 = vpop.f32.mrb[0].mxu0
    %v276 = vpop.f32.mrb[0].mxu0
    %277 = vdwg.mxu0
    %v278 = vld [vmem:[%s2 + $0x8] sm:$0xff]
    %280 = vset.pattern.permute.xlu0 0
    %281 = vperm.xlu0 %280, %v278
    %v282 = vpop.permute.xlu0 %281
    %v284 = vsub.f32 %v272, %v282
    %v285 = vsub.f32 %v274, %v282
    %v286 = vmul.f32 %v284, %v284
    %v287 = vmul.f32 %v285, %v285
    %v288 = vrot.slane %v286, 4
    %v289 = vadd.f32 %v286, %v288
    %v290 = vrot.slane %v289, 2
    %v291 = vadd.f32 %v289, %v290
    %v292 = vrot.slane %v291, 1
    %v293 = vadd.f32 %v291, %v292
    %v294 = vrot.slane %v287, 4
    %v295 = vadd.f32 %v287, %v294
    %v296 = vrot.slane %v295, 2
    %v297 = vadd.f32 %v295, %v296
    %v298 = vrot.slane %v297, 1
    %v299 = vadd.f32 %v297, %v298
    %v300 = vrsqrt.pop %v293
    %v301 = vmul.f32 %v293, %v300
    %vm302 = vcmp.eq.f32.partialorder %v293, inf
    %v303 = vsel %vm302, %v293, %v301
    %vm304 = vcmp.eq.f32.partialorder %v293, 0.0
    %v305 = vand.u32 %v293, 2147483648
    %v306 = vsel %vm304, %v305, %v303
    %v307 = vrsqrt.pop %v299
    %v308 = vmul.f32 %v299, %v307
    %vm309 = vcmp.eq.f32.partialorder %v299, inf
    %v310 = vsel %vm309, %v299, %v308
    %vm311 = vcmp.eq.f32.partialorder %v299, 0.0
    %v312 = vand.u32 %v299, 2147483648
    %v313 = vsel %vm311, %v312, %v310
    %v314 = vld [vmem:[%s2] sm:$0x3]
    %v315 = vld [vmem:[%s2 + $0x2] sm:$0x1]
    %v316 = vlaneseq
    %v317 = vshrl.u32 %v316, 7
    %v318 = vsub.s32 0, %v317
    %v319 = vrot.slane %v315, %v318
    %v320 = vsub.f32 %v314, %v319
    %v321 = vmul.f32 %v320, %v320
    %vm322 = vcmask 254976
    %v323 = vsel %vm322, %v321, 0.0
    %324 = vadd.xlane.f32.xlu0 %v323
    %v325 = vpop.xlane.xlu0 %324
    %v326 = vrsqrt.pop %v325
    %v327 = vmul.f32 %v325, %v326
    %vm328 = vcmp.eq.f32.partialorder %v325, inf
    %v329 = vsel %vm328, %v325, %v327
    %vm330 = vcmp.eq.f32.partialorder %v325, 0.0
    %v331 = vand.u32 %v325, 2147483648
    %v332 = vsel %vm330, %v331, %v329
    %v333 = vsub.f32 %v306, %v332
    %v334 = vsub.f32 %v313, %v332
    %v335 = vmax.f32 %v333, 0.0
    %v336 = vmax.f32 %v334, 0.0
    %v337 = vpack.c.bf16 %v335, %v335
    %v338 = vpack.c.bf16 %v336, %v336
    %v339 = vunpack.c.l.bf16 %v337
    %v340 = vunpack.c.l.bf16 %v338
    %vm341 = vcmask 1041408
    %v342 = vsel %vm341, %v339, 0.0
    %v343 = vsel %vm341, %v340, 0.0
    %v344 = vadd.f32 %v342, %v343
    %345 = vadd.xlane.f32.xlu0 %v344
    %v346 = vpop.xlane.xlu0 %345
    %347 = vmatprep.subr.bf16.mxu0 %v174
    %348 = vmatpush1.bf16.msra.mxu0 %v173
    %349 = vmatprep.subr.bf16.mxu0 %v176
    %350 = vmatpush1.bf16.msra.mxu0 %v175
    %351 = vmatprep.subr.bf16.mxu0 %v178
    %352 = vmatpush1.bf16.msra.mxu0 %v177
    %353 = vmatprep.subr.bf16.mxu0 %v180
    %354 = vmatpush1.bf16.msra.mxu0 %v179
    %355 = vmatprep.subr.bf16.mxu0 %v182
    %356 = vmatpush1.bf16.msra.mxu0 %v181
    %357 = vmatprep.subr.bf16.mxu0 %v184
    %358 = vmatpush1.bf16.msra.mxu0 %v183
    %359 = vmatprep.subr.bf16.mxu0 %v186
    %360 = vmatpush1.bf16.msra.mxu0 %v185
    %361 = vmatprep.subr.bf16.mxu0 %v188
    %362 = vmatpush1.bf16.msra.mxu0 %v187
    %363 = vmatprep.subr.bf16.mxu0 %v190
    %364 = vmatpush1.bf16.msra.mxu0 %v189
    %365 = vmatprep.subr.bf16.mxu0 %v192
    %366 = vmatpush1.bf16.msra.mxu0 %v191
    %367 = vmatprep.subr.bf16.mxu0 %v194
    %368 = vmatpush1.bf16.msra.mxu0 %v193
    %369 = vmatprep.subr.bf16.mxu0 %v196
    %370 = vmatpush1.bf16.msra.mxu0 %v195
    %371 = vmatprep.subr.bf16.mxu0 %v198
    %372 = vmatpush1.bf16.msra.mxu0 %v197
    %373 = vmatprep.subr.bf16.mxu0 %v200
    %374 = vmatpush1.bf16.msra.mxu0 %v199
    %375 = vmatprep.subr.bf16.mxu0 %v202
    %376 = vmatpush1.bf16.msra.mxu0 %v201
    %377 = vmatprep.subr.bf16.mxu0 %v204
    %378 = vmatpush1.bf16.msra.mxu0 %v203
    %379 = vmatprep.mubr.bf16.mxu0 %v338
    %380 = vmatmul.mubr.bf16.gmra.mrb[0].mxu0 %v337
    %v381 = vpop.f32.mrb[0].mxu0
    %v382 = vadd.f32 0.0, %v381
    %v383 = vpop.f32.mrb[0].mxu0
    %v384 = vadd.f32 0.0, %v383
    %v385 = vpop.f32.mrb[0].mxu0
    %v386 = vpop.f32.mrb[0].mxu0
    %387 = vdwg.mxu0
    %v388 = vsub.f32 %v346, %v382
    %v389 = vsub.f32 %v346, %v384
    %v390 = vld [vmem:[%s3] sm:$0x3]
    %v392 = vlaneseq
    %v393 = vshrl.u32 %v392, 7
    %v394 = vsub.s32 0, %v393
    %v395 = vrot.slane %v390, %v394
    %v396 = vlaneseq
    %v397 = vshrl.u32 %v396, 7
    %v398 = vsub.s32 1, %v397
    %v399 = vrot.slane %v390, %v398
    %v402 = vmul.f32 %v388, %v395
    %v403 = vmul.f32 %v389, %v399
    %v404 = vld [vmem:[%s4] sm:$0xff]
    %v405 = vld [vmem:[%s4 + $0x8] sm:$0xff]
    %v406 = vld [vmem:[%s5] sm:$0xff]
    %v407 = vld [vmem:[%s5 + $0x8] sm:$0xff]
    %v408 = vld [vmem:[%s5 + $0x10] sm:$0xff]
    %v409 = vld [vmem:[%s5 + $0x18] sm:$0xff]
    %vm410 = vcmask 130048
    %v412 = vsel %vm410, %v402, 0
    %414 = vmatprep.subr.mxu0 0.0
    %415 = vmatpush1.msra.mxu0 %v404
    %416 = vmatprep.subr.mxu0 0.0
    %417 = vmatpush1.msra.mxu0 %v405
    %418 = vmatprep.subr.mxu0 0.0
    %419 = vmatpush1.msra.mxu0 0.0
    %420 = vmatprep.subr.mxu0 0.0
    %421 = vmatpush1.msra.mxu0 0.0
    %422 = vmatprep.subr.mxu0 0.0
    %423 = vmatpush1.msra.mxu0 0.0
    %424 = vmatprep.subr.mxu0 0.0
    %425 = vmatpush1.msra.mxu0 0.0
    %426 = vmatprep.subr.mxu0 0.0
    %427 = vmatpush1.msra.mxu0 0.0
    %428 = vmatprep.subr.mxu0 0.0
    %429 = vmatpush1.msra.mxu0 0.0
    %430 = vmatprep.subr.mxu0 0.0
    %431 = vmatpush1.msra.mxu0 0.0
    %432 = vmatprep.subr.mxu0 0.0
    %433 = vmatpush1.msra.mxu0 0.0
    %434 = vmatprep.subr.mxu0 0.0
    %435 = vmatpush1.msra.mxu0 0.0
    %436 = vmatprep.subr.mxu0 0.0
    %437 = vmatpush1.msra.mxu0 0.0
    %438 = vmatprep.subr.mxu0 0.0
    %439 = vmatpush1.msra.mxu0 0.0
    %440 = vmatprep.subr.mxu0 0.0
    %441 = vmatpush1.msra.mxu0 0.0
    %442 = vmatprep.subr.mxu0 0.0
    %443 = vmatpush1.msra.mxu0 0.0
    %444 = vmatprep.subr.mxu0 0.0
    %445 = vmatpush1.msra.mxu0 0.0
    %446 = vmatprep.subr.mxu0 0.0
    %447 = vmatpush1.msra.mxu0 0.0
    %448 = vmatprep.subr.mxu0 0.0
    %449 = vmatpush1.msra.mxu0 0.0
    %450 = vmatprep.subr.mxu0 0.0
    %451 = vmatpush1.msra.mxu0 0.0
    %452 = vmatprep.subr.mxu0 0.0
    %453 = vmatpush1.msra.mxu0 0.0
    %454 = vmatprep.subr.mxu0 0.0
    %455 = vmatpush1.msra.mxu0 0.0
    %456 = vmatprep.subr.mxu0 0.0
    %457 = vmatpush1.msra.mxu0 0.0
    %458 = vmatprep.subr.mxu0 0.0
    %459 = vmatpush1.msra.mxu0 0.0
    %460 = vmatprep.subr.mxu0 0.0
    %461 = vmatpush1.msra.mxu0 0.0
    %462 = vmatprep.subr.mxu0 0.0
    %463 = vmatpush1.msra.mxu0 0.0
    %464 = vmatprep.subr.mxu0 0.0
    %465 = vmatpush1.msra.mxu0 0.0
    %466 = vmatprep.subr.mxu0 0.0
    %467 = vmatpush1.msra.mxu0 0.0
    %468 = vmatprep.subr.mxu0 0.0
    %469 = vmatpush1.msra.mxu0 0.0
    %470 = vmatprep.subr.mxu0 0.0
    %471 = vmatpush1.msra.mxu0 0.0
    %472 = vmatprep.subr.mxu0 0.0
    %473 = vmatpush1.msra.mxu0 0.0
    %474 = vmatprep.subr.mxu0 0.0
    %475 = vmatpush1.msra.mxu0 0.0
    %476 = vmatprep.subr.mxu0 0.0
    %477 = vmatpush1.msra.mxu0 0.0
    %478 = vmatprep.mubr.f32.mxu0 0.0
    %479 = vmatmul.mubr.f32.gmra.mrb[0].mxu0 %v412
    %v480 = vpop.f32.mrb[0].mxu0
    %v481 = vadd.f32 0.0, %v480
    %v482 = vpop.f32.mrb[0].mxu0
    %483 = vdwg.mxu0
    %vm484 = vcmask 253952
    %485 = vst.msk [vmem:[#allocation2] sm:$0x1] %vm484, %v481
    %486 = vrot.lane.b32.xlu0 %v402, 112
    %v487 = vpop.permute.xlu0 %486
    %v488 = vsel %vm410, %v487, 0
    %490 = vmatprep.subr.mxu0 0.0
    %491 = vmatpush1.msra.mxu0 %v404
    %492 = vmatprep.subr.mxu0 0.0
    %493 = vmatpush1.msra.mxu0 %v405
    %494 = vmatprep.subr.mxu0 0.0
    %495 = vmatpush1.msra.mxu0 0.0
    %496 = vmatprep.subr.mxu0 0.0
    %497 = vmatpush1.msra.mxu0 0.0
    %498 = vmatprep.subr.mxu0 0.0
    %499 = vmatpush1.msra.mxu0 0.0
    %500 = vmatprep.subr.mxu0 0.0
    %501 = vmatpush1.msra.mxu0 0.0
    %502 = vmatprep.subr.mxu0 0.0
    %503 = vmatpush1.msra.mxu0 0.0
    %504 = vmatprep.subr.mxu0 0.0
    %505 = vmatpush1.msra.mxu0 0.0
    %506 = vmatprep.subr.mxu0 0.0
    %507 = vmatpush1.msra.mxu0 0.0
    %508 = vmatprep.subr.mxu0 0.0
    %509 = vmatpush1.msra.mxu0 0.0
    %510 = vmatprep.subr.mxu0 0.0
    %511 = vmatpush1.msra.mxu0 0.0
    %512 = vmatprep.subr.mxu0 0.0
    %513 = vmatpush1.msra.mxu0 0.0
    %514 = vmatprep.subr.mxu0 0.0
    %515 = vmatpush1.msra.mxu0 0.0
    %516 = vmatprep.subr.mxu0 0.0
    %517 = vmatpush1.msra.mxu0 0.0
    %518 = vmatprep.subr.mxu0 0.0
    %519 = vmatpush1.msra.mxu0 0.0
    %520 = vmatprep.subr.mxu0 0.0
    %521 = vmatpush1.msra.mxu0 0.0
    %522 = vmatprep.subr.mxu0 0.0
    %523 = vmatpush1.msra.mxu0 0.0
    %524 = vmatprep.subr.mxu0 0.0
    %525 = vmatpush1.msra.mxu0 0.0
    %526 = vmatprep.subr.mxu0 0.0
    %527 = vmatpush1.msra.mxu0 0.0
    %528 = vmatprep.subr.mxu0 0.0
    %529 = vmatpush1.msra.mxu0 0.0
    %530 = vmatprep.subr.mxu0 0.0
    %531 = vmatpush1.msra.mxu0 0.0
    %532 = vmatprep.subr.mxu0 0.0
    %533 = vmatpush1.msra.mxu0 0.0
    %534 = vmatprep.subr.mxu0 0.0
    %535 = vmatpush1.msra.mxu0 0.0
    %536 = vmatprep.subr.mxu0 0.0
    %537 = vmatpush1.msra.mxu0 0.0
    %538 = vmatprep.subr.mxu0 0.0
    %539 = vmatpush1.msra.mxu0 0.0
    %540 = vmatprep.subr.mxu0 0.0
    %541 = vmatpush1.msra.mxu0 0.0
    %542 = vmatprep.subr.mxu0 0.0
    %543 = vmatpush1.msra.mxu0 0.0
    %544 = vmatprep.subr.mxu0 0.0
    %545 = vmatpush1.msra.mxu0 0.0
    %546 = vmatprep.subr.mxu0 0.0
    %547 = vmatpush1.msra.mxu0 0.0
    %548 = vmatprep.subr.mxu0 0.0
    %549 = vmatpush1.msra.mxu0 0.0
    %550 = vmatprep.subr.mxu0 0.0
    %551 = vmatpush1.msra.mxu0 0.0
    %552 = vmatprep.subr.mxu0 0.0
    %553 = vmatpush1.msra.mxu0 0.0
    %554 = vmatprep.mubr.f32.mxu0 0.0
    %555 = vmatmul.mubr.f32.gmra.mrb[0].mxu0 %v488
    %v556 = vpop.f32.mrb[0].mxu0
    %v557 = vadd.f32 0.0, %v556
    %v558 = vpop.f32.mrb[0].mxu0
    %559 = vdwg.mxu0
    %560 = vst.msk [vmem:[#allocation2 + $0x1] sm:$0x1] %vm484, %v557
    %561 = vrot.lane.b32.xlu0 %v402, 96
    %v562 = vpop.permute.xlu0 %561
    %v563 = vsel %vm410, %v562, 0
    %565 = vmatprep.subr.mxu0 0.0
    %566 = vmatpush1.msra.mxu0 %v404
    %567 = vmatprep.subr.mxu0 0.0
    %568 = vmatpush1.msra.mxu0 %v405
    %569 = vmatprep.subr.mxu0 0.0
    %570 = vmatpush1.msra.mxu0 0.0
    %571 = vmatprep.subr.mxu0 0.0
    %572 = vmatpush1.msra.mxu0 0.0
    %573 = vmatprep.subr.mxu0 0.0
    %574 = vmatpush1.msra.mxu0 0.0
    %575 = vmatprep.subr.mxu0 0.0
    %576 = vmatpush1.msra.mxu0 0.0
    %577 = vmatprep.subr.mxu0 0.0
    %578 = vmatpush1.msra.mxu0 0.0
    %579 = vmatprep.subr.mxu0 0.0
    %580 = vmatpush1.msra.mxu0 0.0
    %581 = vmatprep.subr.mxu0 0.0
    %582 = vmatpush1.msra.mxu0 0.0
    %583 = vmatprep.subr.mxu0 0.0
    %584 = vmatpush1.msra.mxu0 0.0
    %585 = vmatprep.subr.mxu0 0.0
    %586 = vmatpush1.msra.mxu0 0.0
    %587 = vmatprep.subr.mxu0 0.0
    %588 = vmatpush1.msra.mxu0 0.0
    %589 = vmatprep.subr.mxu0 0.0
    %590 = vmatpush1.msra.mxu0 0.0
    %591 = vmatprep.subr.mxu0 0.0
    %592 = vmatpush1.msra.mxu0 0.0
    %593 = vmatprep.subr.mxu0 0.0
    %594 = vmatpush1.msra.mxu0 0.0
    %595 = vmatprep.subr.mxu0 0.0
    %596 = vmatpush1.msra.mxu0 0.0
    %597 = vmatprep.subr.mxu0 0.0
    %598 = vmatpush1.msra.mxu0 0.0
    %599 = vmatprep.subr.mxu0 0.0
    %600 = vmatpush1.msra.mxu0 0.0
    %601 = vmatprep.subr.mxu0 0.0
    %602 = vmatpush1.msra.mxu0 0.0
    %603 = vmatprep.subr.mxu0 0.0
    %604 = vmatpush1.msra.mxu0 0.0
    %605 = vmatprep.subr.mxu0 0.0
    %606 = vmatpush1.msra.mxu0 0.0
    %607 = vmatprep.subr.mxu0 0.0
    %608 = vmatpush1.msra.mxu0 0.0
    %609 = vmatprep.subr.mxu0 0.0
    %610 = vmatpush1.msra.mxu0 0.0
    %611 = vmatprep.subr.mxu0 0.0
    %612 = vmatpush1.msra.mxu0 0.0
    %613 = vmatprep.subr.mxu0 0.0
    %614 = vmatpush1.msra.mxu0 0.0
    %615 = vmatprep.subr.mxu0 0.0
    %616 = vmatpush1.msra.mxu0 0.0
    %617 = vmatprep.subr.mxu0 0.0
    %618 = vmatpush1.msra.mxu0 0.0
    %619 = vmatprep.subr.mxu0 0.0
    %620 = vmatpush1.msra.mxu0 0.0
    %621 = vmatprep.subr.mxu0 0.0
    %622 = vmatpush1.msra.mxu0 0.0
    %623 = vmatprep.subr.mxu0 0.0
    %624 = vmatpush1.msra.mxu0 0.0
    %625 = vmatprep.subr.mxu0 0.0
    %626 = vmatpush1.msra.mxu0 0.0
    %627 = vmatprep.subr.mxu0 0.0
    %628 = vmatpush1.msra.mxu0 0.0
    %629 = vmatprep.mubr.f32.mxu0 0.0
    %630 = vmatmul.mubr.f32.gmra.mrb[0].mxu0 %v563
    %v631 = vpop.f32.mrb[0].mxu0
    %v632 = vadd.f32 0.0, %v631
    %v633 = vpop.f32.mrb[0].mxu0
    %634 = vdwg.mxu0
    %635 = vst.msk [vmem:[#allocation2 + $0x2] sm:$0x1] %vm484, %v632
    %636 = vrot.lane.b32.xlu0 %v402, 80
    %v637 = vpop.permute.xlu0 %636
    %v638 = vsel %vm410, %v637, 0
    %640 = vmatprep.subr.mxu0 0.0
    %641 = vmatpush1.msra.mxu0 %v404
    %642 = vmatprep.subr.mxu0 0.0
    %643 = vmatpush1.msra.mxu0 %v405
    %644 = vmatprep.subr.mxu0 0.0
    %645 = vmatpush1.msra.mxu0 0.0
    %646 = vmatprep.subr.mxu0 0.0
    %647 = vmatpush1.msra.mxu0 0.0
    %648 = vmatprep.subr.mxu0 0.0
    %649 = vmatpush1.msra.mxu0 0.0
    %650 = vmatprep.subr.mxu0 0.0
    %651 = vmatpush1.msra.mxu0 0.0
    %652 = vmatprep.subr.mxu0 0.0
    %653 = vmatpush1.msra.mxu0 0.0
    %654 = vmatprep.subr.mxu0 0.0
    %655 = vmatpush1.msra.mxu0 0.0
    %656 = vmatprep.subr.mxu0 0.0
    %657 = vmatpush1.msra.mxu0 0.0
    %658 = vmatprep.subr.mxu0 0.0
    %659 = vmatpush1.msra.mxu0 0.0
    %660 = vmatprep.subr.mxu0 0.0
    %661 = vmatpush1.msra.mxu0 0.0
    %662 = vmatprep.subr.mxu0 0.0
    %663 = vmatpush1.msra.mxu0 0.0
    %664 = vmatprep.subr.mxu0 0.0
    %665 = vmatpush1.msra.mxu0 0.0
    %666 = vmatprep.subr.mxu0 0.0
    %667 = vmatpush1.msra.mxu0 0.0
    %668 = vmatprep.subr.mxu0 0.0
    %669 = vmatpush1.msra.mxu0 0.0
    %670 = vmatprep.subr.mxu0 0.0
    %671 = vmatpush1.msra.mxu0 0.0
    %672 = vmatprep.subr.mxu0 0.0
    %673 = vmatpush1.msra.mxu0 0.0
    %674 = vmatprep.subr.mxu0 0.0
    %675 = vmatpush1.msra.mxu0 0.0
    %676 = vmatprep.subr.mxu0 0.0
    %677 = vmatpush1.msra.mxu0 0.0
    %678 = vmatprep.subr.mxu0 0.0
    %679 = vmatpush1.msra.mxu0 0.0
    %680 = vmatprep.subr.mxu0 0.0
    %681 = vmatpush1.msra.mxu0 0.0
    %682 = vmatprep.subr.mxu0 0.0
    %683 = vmatpush1.msra.mxu0 0.0
    %684 = vmatprep.subr.mxu0 0.0
    %685 = vmatpush1.msra.mxu0 0.0
    %686 = vmatprep.subr.mxu0 0.0
    %687 = vmatpush1.msra.mxu0 0.0
    %688 = vmatprep.subr.mxu0 0.0
    %689 = vmatpush1.msra.mxu0 0.0
    %690 = vmatprep.subr.mxu0 0.0
    %691 = vmatpush1.msra.mxu0 0.0
    %692 = vmatprep.subr.mxu0 0.0
    %693 = vmatpush1.msra.mxu0 0.0
    %694 = vmatprep.subr.mxu0 0.0
    %695 = vmatpush1.msra.mxu0 0.0
    %696 = vmatprep.subr.mxu0 0.0
    %697 = vmatpush1.msra.mxu0 0.0
    %698 = vmatprep.subr.mxu0 0.0
    %699 = vmatpush1.msra.mxu0 0.0
    %700 = vmatprep.subr.mxu0 0.0
    %701 = vmatpush1.msra.mxu0 0.0
    %702 = vmatprep.subr.mxu0 0.0
    %703 = vmatpush1.msra.mxu0 0.0
    %704 = vmatprep.mubr.f32.mxu0 0.0
    %705 = vmatmul.mubr.f32.gmra.mrb[0].mxu0 %v638
    %v706 = vpop.f32.mrb[0].mxu0
    %v707 = vadd.f32 0.0, %v706
    %v708 = vpop.f32.mrb[0].mxu0
    %709 = vdwg.mxu0
    %710 = vst.msk [vmem:[#allocation2 + $0x3] sm:$0x1] %vm484, %v707
    %711 = vrot.lane.b32.xlu0 %v402, 64
    %v712 = vpop.permute.xlu0 %711
    %v713 = vsel %vm410, %v712, 0
    %715 = vmatprep.subr.mxu0 0.0
    %716 = vmatpush1.msra.mxu0 %v404
    %717 = vmatprep.subr.mxu0 0.0
    %718 = vmatpush1.msra.mxu0 %v405
    %719 = vmatprep.subr.mxu0 0.0
    %720 = vmatpush1.msra.mxu0 0.0
    %721 = vmatprep.subr.mxu0 0.0
    %722 = vmatpush1.msra.mxu0 0.0
    %723 = vmatprep.subr.mxu0 0.0
    %724 = vmatpush1.msra.mxu0 0.0
    %725 = vmatprep.subr.mxu0 0.0
    %726 = vmatpush1.msra.mxu0 0.0
    %727 = vmatprep.subr.mxu0 0.0
    %728 = vmatpush1.msra.mxu0 0.0
    %729 = vmatprep.subr.mxu0 0.0
    %730 = vmatpush1.msra.mxu0 0.0
    %731 = vmatprep.subr.mxu0 0.0
    %732 = vmatpush1.msra.mxu0 0.0
    %733 = vmatprep.subr.mxu0 0.0
    %734 = vmatpush1.msra.mxu0 0.0
    %735 = vmatprep.subr.mxu0 0.0
    %736 = vmatpush1.msra.mxu0 0.0
    %737 = vmatprep.subr.mxu0 0.0
    %738 = vmatpush1.msra.mxu0 0.0
    %739 = vmatprep.subr.mxu0 0.0
    %740 = vmatpush1.msra.mxu0 0.0
    %741 = vmatprep.subr.mxu0 0.0
    %742 = vmatpush1.msra.mxu0 0.0
    %743 = vmatprep.subr.mxu0 0.0
    %744 = vmatpush1.msra.mxu0 0.0
    %745 = vmatprep.subr.mxu0 0.0
    %746 = vmatpush1.msra.mxu0 0.0
    %747 = vmatprep.subr.mxu0 0.0
    %748 = vmatpush1.msra.mxu0 0.0
    %749 = vmatprep.subr.mxu0 0.0
    %750 = vmatpush1.msra.mxu0 0.0
    %751 = vmatprep.subr.mxu0 0.0
    %752 = vmatpush1.msra.mxu0 0.0
    %753 = vmatprep.subr.mxu0 0.0
    %754 = vmatpush1.msra.mxu0 0.0
    %755 = vmatprep.subr.mxu0 0.0
    %756 = vmatpush1.msra.mxu0 0.0
    %757 = vmatprep.subr.mxu0 0.0
    %758 = vmatpush1.msra.mxu0 0.0
    %759 = vmatprep.subr.mxu0 0.0
    %760 = vmatpush1.msra.mxu0 0.0
    %761 = vmatprep.subr.mxu0 0.0
    %762 = vmatpush1.msra.mxu0 0.0
    %763 = vmatprep.subr.mxu0 0.0
    %764 = vmatpush1.msra.mxu0 0.0
    %765 = vmatprep.subr.mxu0 0.0
    %766 = vmatpush1.msra.mxu0 0.0
    %767 = vmatprep.subr.mxu0 0.0
    %768 = vmatpush1.msra.mxu0 0.0
    %769 = vmatprep.subr.mxu0 0.0
    %770 = vmatpush1.msra.mxu0 0.0
    %771 = vmatprep.subr.mxu0 0.0
    %772 = vmatpush1.msra.mxu0 0.0
    %773 = vmatprep.subr.mxu0 0.0
    %774 = vmatpush1.msra.mxu0 0.0
    %775 = vmatprep.subr.mxu0 0.0
    %776 = vmatpush1.msra.mxu0 0.0
    %777 = vmatprep.subr.mxu0 0.0
    %778 = vmatpush1.msra.mxu0 0.0
    %779 = vmatprep.mubr.f32.mxu0 0.0
    %780 = vmatmul.mubr.f32.gmra.mrb[0].mxu0 %v713
    %v781 = vpop.f32.mrb[0].mxu0
    %v782 = vadd.f32 0.0, %v781
    %v783 = vpop.f32.mrb[0].mxu0
    %784 = vdwg.mxu0
    %785 = vst.msk [vmem:[#allocation2 + $0x4] sm:$0x1] %vm484, %v782
    %786 = vrot.lane.b32.xlu0 %v402, 48
    %v787 = vpop.permute.xlu0 %786
    %v788 = vsel %vm410, %v787, 0
    %790 = vmatprep.subr.mxu0 0.0
    %791 = vmatpush1.msra.mxu0 %v404
    %792 = vmatprep.subr.mxu0 0.0
    %793 = vmatpush1.msra.mxu0 %v405
    %794 = vmatprep.subr.mxu0 0.0
    %795 = vmatpush1.msra.mxu0 0.0
    %796 = vmatprep.subr.mxu0 0.0
    %797 = vmatpush1.msra.mxu0 0.0
    %798 = vmatprep.subr.mxu0 0.0
    %799 = vmatpush1.msra.mxu0 0.0
    %800 = vmatprep.subr.mxu0 0.0
    %801 = vmatpush1.msra.mxu0 0.0
    %802 = vmatprep.subr.mxu0 0.0
    %803 = vmatpush1.msra.mxu0 0.0
    %804 = vmatprep.subr.mxu0 0.0
    %805 = vmatpush1.msra.mxu0 0.0
    %806 = vmatprep.subr.mxu0 0.0
    %807 = vmatpush1.msra.mxu0 0.0
    %808 = vmatprep.subr.mxu0 0.0
    %809 = vmatpush1.msra.mxu0 0.0
    %810 = vmatprep.subr.mxu0 0.0
    %811 = vmatpush1.msra.mxu0 0.0
    %812 = vmatprep.subr.mxu0 0.0
    %813 = vmatpush1.msra.mxu0 0.0
    %814 = vmatprep.subr.mxu0 0.0
    %815 = vmatpush1.msra.mxu0 0.0
    %816 = vmatprep.subr.mxu0 0.0
    %817 = vmatpush1.msra.mxu0 0.0
    %818 = vmatprep.subr.mxu0 0.0
    %819 = vmatpush1.msra.mxu0 0.0
    %820 = vmatprep.subr.mxu0 0.0
    %821 = vmatpush1.msra.mxu0 0.0
    %822 = vmatprep.subr.mxu0 0.0
    %823 = vmatpush1.msra.mxu0 0.0
    %824 = vmatprep.subr.mxu0 0.0
    %825 = vmatpush1.msra.mxu0 0.0
    %826 = vmatprep.subr.mxu0 0.0
    %827 = vmatpush1.msra.mxu0 0.0
    %828 = vmatprep.subr.mxu0 0.0
    %829 = vmatpush1.msra.mxu0 0.0
    %830 = vmatprep.subr.mxu0 0.0
    %831 = vmatpush1.msra.mxu0 0.0
    %832 = vmatprep.subr.mxu0 0.0
    %833 = vmatpush1.msra.mxu0 0.0
    %834 = vmatprep.subr.mxu0 0.0
    %835 = vmatpush1.msra.mxu0 0.0
    %836 = vmatprep.subr.mxu0 0.0
    %837 = vmatpush1.msra.mxu0 0.0
    %838 = vmatprep.subr.mxu0 0.0
    %839 = vmatpush1.msra.mxu0 0.0
    %840 = vmatprep.subr.mxu0 0.0
    %841 = vmatpush1.msra.mxu0 0.0
    %842 = vmatprep.subr.mxu0 0.0
    %843 = vmatpush1.msra.mxu0 0.0
    %844 = vmatprep.subr.mxu0 0.0
    %845 = vmatpush1.msra.mxu0 0.0
    %846 = vmatprep.subr.mxu0 0.0
    %847 = vmatpush1.msra.mxu0 0.0
    %848 = vmatprep.subr.mxu0 0.0
    %849 = vmatpush1.msra.mxu0 0.0
    %850 = vmatprep.subr.mxu0 0.0
    %851 = vmatpush1.msra.mxu0 0.0
    %852 = vmatprep.subr.mxu0 0.0
    %853 = vmatpush1.msra.mxu0 0.0
    %854 = vmatprep.mubr.f32.mxu0 0.0
    %855 = vmatmul.mubr.f32.gmra.mrb[0].mxu0 %v788
    %v856 = vpop.f32.mrb[0].mxu0
    %v857 = vadd.f32 0.0, %v856
    %v858 = vpop.f32.mrb[0].mxu0
    %859 = vdwg.mxu0
    %860 = vst.msk [vmem:[#allocation2 + $0x5] sm:$0x1] %vm484, %v857
    %861 = vrot.lane.b32.xlu0 %v402, 32
    %v862 = vpop.permute.xlu0 %861
    %v863 = vsel %vm410, %v862, 0
    %865 = vmatprep.subr.mxu0 0.0
    %866 = vmatpush1.msra.mxu0 %v404
    %867 = vmatprep.subr.mxu0 0.0
    %868 = vmatpush1.msra.mxu0 %v405
    %869 = vmatprep.subr.mxu0 0.0
    %870 = vmatpush1.msra.mxu0 0.0
    %871 = vmatprep.subr.mxu0 0.0
    %872 = vmatpush1.msra.mxu0 0.0
    %873 = vmatprep.subr.mxu0 0.0
    %874 = vmatpush1.msra.mxu0 0.0
    %875 = vmatprep.subr.mxu0 0.0
    %876 = vmatpush1.msra.mxu0 0.0
    %877 = vmatprep.subr.mxu0 0.0
    %878 = vmatpush1.msra.mxu0 0.0
    %879 = vmatprep.subr.mxu0 0.0
    %880 = vmatpush1.msra.mxu0 0.0
    %881 = vmatprep.subr.mxu0 0.0
    %882 = vmatpush1.msra.mxu0 0.0
    %883 = vmatprep.subr.mxu0 0.0
    %884 = vmatpush1.msra.mxu0 0.0
    %885 = vmatprep.subr.mxu0 0.0
    %886 = vmatpush1.msra.mxu0 0.0
    %887 = vmatprep.subr.mxu0 0.0
    %888 = vmatpush1.msra.mxu0 0.0
    %889 = vmatprep.subr.mxu0 0.0
    %890 = vmatpush1.msra.mxu0 0.0
    %891 = vmatprep.subr.mxu0 0.0
    %892 = vmatpush1.msra.mxu0 0.0
    %893 = vmatprep.subr.mxu0 0.0
    %894 = vmatpush1.msra.mxu0 0.0
    %895 = vmatprep.subr.mxu0 0.0
    %896 = vmatpush1.msra.mxu0 0.0
    %897 = vmatprep.subr.mxu0 0.0
    %898 = vmatpush1.msra.mxu0 0.0
    %899 = vmatprep.subr.mxu0 0.0
    %900 = vmatpush1.msra.mxu0 0.0
    %901 = vmatprep.subr.mxu0 0.0
    %902 = vmatpush1.msra.mxu0 0.0
    %903 = vmatprep.subr.mxu0 0.0
    %904 = vmatpush1.msra.mxu0 0.0
    %905 = vmatprep.subr.mxu0 0.0
    %906 = vmatpush1.msra.mxu0 0.0
    %907 = vmatprep.subr.mxu0 0.0
    %908 = vmatpush1.msra.mxu0 0.0
    %909 = vmatprep.subr.mxu0 0.0
    %910 = vmatpush1.msra.mxu0 0.0
    %911 = vmatprep.subr.mxu0 0.0
    %912 = vmatpush1.msra.mxu0 0.0
    %913 = vmatprep.subr.mxu0 0.0
    %914 = vmatpush1.msra.mxu0 0.0
    %915 = vmatprep.subr.mxu0 0.0
    %916 = vmatpush1.msra.mxu0 0.0
    %917 = vmatprep.subr.mxu0 0.0
    %918 = vmatpush1.msra.mxu0 0.0
    %919 = vmatprep.subr.mxu0 0.0
    %920 = vmatpush1.msra.mxu0 0.0
    %921 = vmatprep.subr.mxu0 0.0
    %922 = vmatpush1.msra.mxu0 0.0
    %923 = vmatprep.subr.mxu0 0.0
    %924 = vmatpush1.msra.mxu0 0.0
    %925 = vmatprep.subr.mxu0 0.0
    %926 = vmatpush1.msra.mxu0 0.0
    %927 = vmatprep.subr.mxu0 0.0
    %928 = vmatpush1.msra.mxu0 0.0
    %929 = vmatprep.mubr.f32.mxu0 0.0
    %930 = vmatmul.mubr.f32.gmra.mrb[0].mxu0 %v863
    %v931 = vpop.f32.mrb[0].mxu0
    %v932 = vadd.f32 0.0, %v931
    %v933 = vpop.f32.mrb[0].mxu0
    %934 = vdwg.mxu0
    %935 = vst.msk [vmem:[#allocation2 + $0x6] sm:$0x1] %vm484, %v932
    %936 = vrot.lane.b32.xlu0 %v402, 16
    %v937 = vpop.permute.xlu0 %936
    %v938 = vsel %vm410, %v937, 0
    %940 = vmatprep.subr.mxu0 0.0
    %941 = vmatpush1.msra.mxu0 %v404
    %942 = vmatprep.subr.mxu0 0.0
    %943 = vmatpush1.msra.mxu0 %v405
    %944 = vmatprep.subr.mxu0 0.0
    %945 = vmatpush1.msra.mxu0 0.0
    %946 = vmatprep.subr.mxu0 0.0
    %947 = vmatpush1.msra.mxu0 0.0
    %948 = vmatprep.subr.mxu0 0.0
    %949 = vmatpush1.msra.mxu0 0.0
    %950 = vmatprep.subr.mxu0 0.0
    %951 = vmatpush1.msra.mxu0 0.0
    %952 = vmatprep.subr.mxu0 0.0
    %953 = vmatpush1.msra.mxu0 0.0
    %954 = vmatprep.subr.mxu0 0.0
    %955 = vmatpush1.msra.mxu0 0.0
    %956 = vmatprep.subr.mxu0 0.0
    %957 = vmatpush1.msra.mxu0 0.0
    %958 = vmatprep.subr.mxu0 0.0
    %959 = vmatpush1.msra.mxu0 0.0
    %960 = vmatprep.subr.mxu0 0.0
    %961 = vmatpush1.msra.mxu0 0.0
    %962 = vmatprep.subr.mxu0 0.0
    %963 = vmatpush1.msra.mxu0 0.0
    %964 = vmatprep.subr.mxu0 0.0
    %965 = vmatpush1.msra.mxu0 0.0
    %966 = vmatprep.subr.mxu0 0.0
    %967 = vmatpush1.msra.mxu0 0.0
    %968 = vmatprep.subr.mxu0 0.0
    %969 = vmatpush1.msra.mxu0 0.0
    %970 = vmatprep.subr.mxu0 0.0
    %971 = vmatpush1.msra.mxu0 0.0
    %972 = vmatprep.subr.mxu0 0.0
    %973 = vmatpush1.msra.mxu0 0.0
    %974 = vmatprep.subr.mxu0 0.0
    %975 = vmatpush1.msra.mxu0 0.0
    %976 = vmatprep.subr.mxu0 0.0
    %977 = vmatpush1.msra.mxu0 0.0
    %978 = vmatprep.subr.mxu0 0.0
    %979 = vmatpush1.msra.mxu0 0.0
    %980 = vmatprep.subr.mxu0 0.0
    %981 = vmatpush1.msra.mxu0 0.0
    %982 = vmatprep.subr.mxu0 0.0
    %983 = vmatpush1.msra.mxu0 0.0
    %984 = vmatprep.subr.mxu0 0.0
    %985 = vmatpush1.msra.mxu0 0.0
    %986 = vmatprep.subr.mxu0 0.0
    %987 = vmatpush1.msra.mxu0 0.0
    %988 = vmatprep.subr.mxu0 0.0
    %989 = vmatpush1.msra.mxu0 0.0
    %990 = vmatprep.subr.mxu0 0.0
    %991 = vmatpush1.msra.mxu0 0.0
    %992 = vmatprep.subr.mxu0 0.0
    %993 = vmatpush1.msra.mxu0 0.0
    %994 = vmatprep.subr.mxu0 0.0
    %995 = vmatpush1.msra.mxu0 0.0
    %996 = vmatprep.subr.mxu0 0.0
    %997 = vmatpush1.msra.mxu0 0.0
    %998 = vmatprep.subr.mxu0 0.0
    %999 = vmatpush1.msra.mxu0 0.0
    %1000 = vmatprep.subr.mxu0 0.0
    %1001 = vmatpush1.msra.mxu0 0.0
    %1002 = vmatprep.subr.mxu0 0.0
    %1003 = vmatpush1.msra.mxu0 0.0
    %1004 = vmatprep.mubr.f32.mxu0 0.0
    %1005 = vmatmul.mubr.f32.gmra.mrb[0].mxu0 %v938
    %v1006 = vpop.f32.mrb[0].mxu0
    %v1007 = vadd.f32 0.0, %v1006
    %v1008 = vpop.f32.mrb[0].mxu0
    %1009 = vdwg.mxu0
    %1010 = vst.msk [vmem:[#allocation2 + $0x7] sm:$0x1] %vm484, %v1007
    %v1012 = vsel %vm410, %v403, 0
    %1014 = vmatprep.subr.mxu0 0.0
    %1015 = vmatpush1.msra.mxu0 %v404
    %1016 = vmatprep.subr.mxu0 0.0
    %1017 = vmatpush1.msra.mxu0 %v405
    %1018 = vmatprep.subr.mxu0 0.0
    %1019 = vmatpush1.msra.mxu0 0.0
    %1020 = vmatprep.subr.mxu0 0.0
    %1021 = vmatpush1.msra.mxu0 0.0
    %1022 = vmatprep.subr.mxu0 0.0
    %1023 = vmatpush1.msra.mxu0 0.0
    %1024 = vmatprep.subr.mxu0 0.0
    %1025 = vmatpush1.msra.mxu0 0.0
    %1026 = vmatprep.subr.mxu0 0.0
    %1027 = vmatpush1.msra.mxu0 0.0
    %1028 = vmatprep.subr.mxu0 0.0
    %1029 = vmatpush1.msra.mxu0 0.0
    %1030 = vmatprep.subr.mxu0 0.0
    %1031 = vmatpush1.msra.mxu0 0.0
    %1032 = vmatprep.subr.mxu0 0.0
    %1033 = vmatpush1.msra.mxu0 0.0
    %1034 = vmatprep.subr.mxu0 0.0
    %1035 = vmatpush1.msra.mxu0 0.0
    %1036 = vmatprep.subr.mxu0 0.0
    %1037 = vmatpush1.msra.mxu0 0.0
    %1038 = vmatprep.subr.mxu0 0.0
    %1039 = vmatpush1.msra.mxu0 0.0
    %1040 = vmatprep.subr.mxu0 0.0
    %1041 = vmatpush1.msra.mxu0 0.0
    %1042 = vmatprep.subr.mxu0 0.0
    %1043 = vmatpush1.msra.mxu0 0.0
    %1044 = vmatprep.subr.mxu0 0.0
    %1045 = vmatpush1.msra.mxu0 0.0
    %1046 = vmatprep.subr.mxu0 0.0
    %1047 = vmatpush1.msra.mxu0 0.0
    %1048 = vmatprep.subr.mxu0 0.0
    %1049 = vmatpush1.msra.mxu0 0.0
    %1050 = vmatprep.subr.mxu0 0.0
    %1051 = vmatpush1.msra.mxu0 0.0
    %1052 = vmatprep.subr.mxu0 0.0
    %1053 = vmatpush1.msra.mxu0 0.0
    %1054 = vmatprep.subr.mxu0 0.0
    %1055 = vmatpush1.msra.mxu0 0.0
    %1056 = vmatprep.subr.mxu0 0.0
    %1057 = vmatpush1.msra.mxu0 0.0
    %1058 = vmatprep.subr.mxu0 0.0
    %1059 = vmatpush1.msra.mxu0 0.0
    %1060 = vmatprep.subr.mxu0 0.0
    %1061 = vmatpush1.msra.mxu0 0.0
    %1062 = vmatprep.subr.mxu0 0.0
    %1063 = vmatpush1.msra.mxu0 0.0
    %1064 = vmatprep.subr.mxu0 0.0
    %1065 = vmatpush1.msra.mxu0 0.0
    %1066 = vmatprep.subr.mxu0 0.0
    %1067 = vmatpush1.msra.mxu0 0.0
    %1068 = vmatprep.subr.mxu0 0.0
    %1069 = vmatpush1.msra.mxu0 0.0
    %1070 = vmatprep.subr.mxu0 0.0
    %1071 = vmatpush1.msra.mxu0 0.0
    %1072 = vmatprep.subr.mxu0 0.0
    %1073 = vmatpush1.msra.mxu0 0.0
    %1074 = vmatprep.subr.mxu0 0.0
    %1075 = vmatpush1.msra.mxu0 0.0
    %1076 = vmatprep.subr.mxu0 0.0
    %1077 = vmatpush1.msra.mxu0 0.0
    %1078 = vmatprep.mubr.f32.mxu0 0.0
    %1079 = vmatmul.mubr.f32.gmra.mrb[0].mxu0 %v1012
    %v1080 = vpop.f32.mrb[0].mxu0
    %v1081 = vadd.f32 0.0, %v1080
    %v1082 = vpop.f32.mrb[0].mxu0
    %1083 = vdwg.mxu0
    %1084 = vst.msk [vmem:[#allocation2 + $0x8] sm:$0x1] %vm484, %v1081
    %1085 = vrot.lane.b32.xlu0 %v403, 112
    %v1086 = vpop.permute.xlu0 %1085
    %v1087 = vsel %vm410, %v1086, 0
    %1089 = vmatprep.subr.mxu0 0.0
    %1090 = vmatpush1.msra.mxu0 %v404
    %1091 = vmatprep.subr.mxu0 0.0
    %1092 = vmatpush1.msra.mxu0 %v405
    %1093 = vmatprep.subr.mxu0 0.0
    %1094 = vmatpush1.msra.mxu0 0.0
    %1095 = vmatprep.subr.mxu0 0.0
    %1096 = vmatpush1.msra.mxu0 0.0
    %1097 = vmatprep.subr.mxu0 0.0
    %1098 = vmatpush1.msra.mxu0 0.0
    %1099 = vmatprep.subr.mxu0 0.0
    %1100 = vmatpush1.msra.mxu0 0.0
    %1101 = vmatprep.subr.mxu0 0.0
    %1102 = vmatpush1.msra.mxu0 0.0
    %1103 = vmatprep.subr.mxu0 0.0
    %1104 = vmatpush1.msra.mxu0 0.0
    %1105 = vmatprep.subr.mxu0 0.0
    %1106 = vmatpush1.msra.mxu0 0.0
    %1107 = vmatprep.subr.mxu0 0.0
    %1108 = vmatpush1.msra.mxu0 0.0
    %1109 = vmatprep.subr.mxu0 0.0
    %1110 = vmatpush1.msra.mxu0 0.0
    %1111 = vmatprep.subr.mxu0 0.0
    %1112 = vmatpush1.msra.mxu0 0.0
    %1113 = vmatprep.subr.mxu0 0.0
    %1114 = vmatpush1.msra.mxu0 0.0
    %1115 = vmatprep.subr.mxu0 0.0
    %1116 = vmatpush1.msra.mxu0 0.0
    %1117 = vmatprep.subr.mxu0 0.0
    %1118 = vmatpush1.msra.mxu0 0.0
    %1119 = vmatprep.subr.mxu0 0.0
    %1120 = vmatpush1.msra.mxu0 0.0
    %1121 = vmatprep.subr.mxu0 0.0
    %1122 = vmatpush1.msra.mxu0 0.0
    %1123 = vmatprep.subr.mxu0 0.0
    %1124 = vmatpush1.msra.mxu0 0.0
    %1125 = vmatprep.subr.mxu0 0.0
    %1126 = vmatpush1.msra.mxu0 0.0
    %1127 = vmatprep.subr.mxu0 0.0
    %1128 = vmatpush1.msra.mxu0 0.0
    %1129 = vmatprep.subr.mxu0 0.0
    %1130 = vmatpush1.msra.mxu0 0.0
    %1131 = vmatprep.subr.mxu0 0.0
    %1132 = vmatpush1.msra.mxu0 0.0
    %1133 = vmatprep.subr.mxu0 0.0
    %1134 = vmatpush1.msra.mxu0 0.0
    %1135 = vmatprep.subr.mxu0 0.0
    %1136 = vmatpush1.msra.mxu0 0.0
    %1137 = vmatprep.subr.mxu0 0.0
    %1138 = vmatpush1.msra.mxu0 0.0
    %1139 = vmatprep.subr.mxu0 0.0
    %1140 = vmatpush1.msra.mxu0 0.0
    %1141 = vmatprep.subr.mxu0 0.0
    %1142 = vmatpush1.msra.mxu0 0.0
    %1143 = vmatprep.subr.mxu0 0.0
    %1144 = vmatpush1.msra.mxu0 0.0
    %1145 = vmatprep.subr.mxu0 0.0
    %1146 = vmatpush1.msra.mxu0 0.0
    %1147 = vmatprep.subr.mxu0 0.0
    %1148 = vmatpush1.msra.mxu0 0.0
    %1149 = vmatprep.subr.mxu0 0.0
    %1150 = vmatpush1.msra.mxu0 0.0
    %1151 = vmatprep.subr.mxu0 0.0
    %1152 = vmatpush1.msra.mxu0 0.0
    %1153 = vmatprep.mubr.f32.mxu0 0.0
    %1154 = vmatmul.mubr.f32.gmra.mrb[0].mxu0 %v1087
    %v1155 = vpop.f32.mrb[0].mxu0
    %v1156 = vadd.f32 0.0, %v1155
    %v1157 = vpop.f32.mrb[0].mxu0
    %1158 = vdwg.mxu0
    %1159 = vst.msk [vmem:[#allocation2 + $0x9] sm:$0x1] %vm484, %v1156
    %1160 = vrot.lane.b32.xlu0 %v403, 96
    %v1161 = vpop.permute.xlu0 %1160
    %v1162 = vsel %vm410, %v1161, 0
    %1164 = vmatprep.subr.mxu0 0.0
    %1165 = vmatpush1.msra.mxu0 %v404
    %1166 = vmatprep.subr.mxu0 0.0
    %1167 = vmatpush1.msra.mxu0 %v405
    %1168 = vmatprep.subr.mxu0 0.0
    %1169 = vmatpush1.msra.mxu0 0.0
    %1170 = vmatprep.subr.mxu0 0.0
    %1171 = vmatpush1.msra.mxu0 0.0
    %1172 = vmatprep.subr.mxu0 0.0
    %1173 = vmatpush1.msra.mxu0 0.0
    %1174 = vmatprep.subr.mxu0 0.0
    %1175 = vmatpush1.msra.mxu0 0.0
    %1176 = vmatprep.subr.mxu0 0.0
    %1177 = vmatpush1.msra.mxu0 0.0
    %1178 = vmatprep.subr.mxu0 0.0
    %1179 = vmatpush1.msra.mxu0 0.0
    %1180 = vmatprep.subr.mxu0 0.0
    %1181 = vmatpush1.msra.mxu0 0.0
    %1182 = vmatprep.subr.mxu0 0.0
    %1183 = vmatpush1.msra.mxu0 0.0
    %1184 = vmatprep.subr.mxu0 0.0
    %1185 = vmatpush1.msra.mxu0 0.0
    %1186 = vmatprep.subr.mxu0 0.0
    %1187 = vmatpush1.msra.mxu0 0.0
    %1188 = vmatprep.subr.mxu0 0.0
    %1189 = vmatpush1.msra.mxu0 0.0
    %1190 = vmatprep.subr.mxu0 0.0
    %1191 = vmatpush1.msra.mxu0 0.0
    %1192 = vmatprep.subr.mxu0 0.0
    %1193 = vmatpush1.msra.mxu0 0.0
    %1194 = vmatprep.subr.mxu0 0.0
    %1195 = vmatpush1.msra.mxu0 0.0
    %1196 = vmatprep.subr.mxu0 0.0
    %1197 = vmatpush1.msra.mxu0 0.0
    %1198 = vmatprep.subr.mxu0 0.0
    %1199 = vmatpush1.msra.mxu0 0.0
    %1200 = vmatprep.subr.mxu0 0.0
    %1201 = vmatpush1.msra.mxu0 0.0
    %1202 = vmatprep.subr.mxu0 0.0
    %1203 = vmatpush1.msra.mxu0 0.0
    %1204 = vmatprep.subr.mxu0 0.0
    %1205 = vmatpush1.msra.mxu0 0.0
    %1206 = vmatprep.subr.mxu0 0.0
    %1207 = vmatpush1.msra.mxu0 0.0
    %1208 = vmatprep.subr.mxu0 0.0
    %1209 = vmatpush1.msra.mxu0 0.0
    %1210 = vmatprep.subr.mxu0 0.0
    %1211 = vmatpush1.msra.mxu0 0.0
    %1212 = vmatprep.subr.mxu0 0.0
    %1213 = vmatpush1.msra.mxu0 0.0
    %1214 = vmatprep.subr.mxu0 0.0
    %1215 = vmatpush1.msra.mxu0 0.0
    %1216 = vmatprep.subr.mxu0 0.0
    %1217 = vmatpush1.msra.mxu0 0.0
    %1218 = vmatprep.subr.mxu0 0.0
    %1219 = vmatpush1.msra.mxu0 0.0
    %1220 = vmatprep.subr.mxu0 0.0
    %1221 = vmatpush1.msra.mxu0 0.0
    %1222 = vmatprep.subr.mxu0 0.0
    %1223 = vmatpush1.msra.mxu0 0.0
    %1224 = vmatprep.subr.mxu0 0.0
    %1225 = vmatpush1.msra.mxu0 0.0
    %1226 = vmatprep.subr.mxu0 0.0
    %1227 = vmatpush1.msra.mxu0 0.0
    %1228 = vmatprep.mubr.f32.mxu0 0.0
    %1229 = vmatmul.mubr.f32.gmra.mrb[0].mxu0 %v1162
    %v1230 = vpop.f32.mrb[0].mxu0
    %v1231 = vadd.f32 0.0, %v1230
    %v1232 = vpop.f32.mrb[0].mxu0
    %1233 = vdwg.mxu0
    %1234 = vst.msk [vmem:[#allocation2 + $0xa] sm:$0x1] %vm484, %v1231
    %1235 = vrot.lane.b32.xlu0 %v403, 80
    %v1236 = vpop.permute.xlu0 %1235
    %v1237 = vsel %vm410, %v1236, 0
    %1239 = vmatprep.subr.mxu0 0.0
    %1240 = vmatpush1.msra.mxu0 %v404
    %1241 = vmatprep.subr.mxu0 0.0
    %1242 = vmatpush1.msra.mxu0 %v405
    %1243 = vmatprep.subr.mxu0 0.0
    %1244 = vmatpush1.msra.mxu0 0.0
    %1245 = vmatprep.subr.mxu0 0.0
    %1246 = vmatpush1.msra.mxu0 0.0
    %1247 = vmatprep.subr.mxu0 0.0
    %1248 = vmatpush1.msra.mxu0 0.0
    %1249 = vmatprep.subr.mxu0 0.0
    %1250 = vmatpush1.msra.mxu0 0.0
    %1251 = vmatprep.subr.mxu0 0.0
    %1252 = vmatpush1.msra.mxu0 0.0
    %1253 = vmatprep.subr.mxu0 0.0
    %1254 = vmatpush1.msra.mxu0 0.0
    %1255 = vmatprep.subr.mxu0 0.0
    %1256 = vmatpush1.msra.mxu0 0.0
    %1257 = vmatprep.subr.mxu0 0.0
    %1258 = vmatpush1.msra.mxu0 0.0
    %1259 = vmatprep.subr.mxu0 0.0
    %1260 = vmatpush1.msra.mxu0 0.0
    %1261 = vmatprep.subr.mxu0 0.0
    %1262 = vmatpush1.msra.mxu0 0.0
    %1263 = vmatprep.subr.mxu0 0.0
    %1264 = vmatpush1.msra.mxu0 0.0
    %1265 = vmatprep.subr.mxu0 0.0
    %1266 = vmatpush1.msra.mxu0 0.0
    %1267 = vmatprep.subr.mxu0 0.0
    %1268 = vmatpush1.msra.mxu0 0.0
    %1269 = vmatprep.subr.mxu0 0.0
    %1270 = vmatpush1.msra.mxu0 0.0
    %1271 = vmatprep.subr.mxu0 0.0
    %1272 = vmatpush1.msra.mxu0 0.0
    %1273 = vmatprep.subr.mxu0 0.0
    %1274 = vmatpush1.msra.mxu0 0.0
    %1275 = vmatprep.subr.mxu0 0.0
    %1276 = vmatpush1.msra.mxu0 0.0
    %1277 = vmatprep.subr.mxu0 0.0
    %1278 = vmatpush1.msra.mxu0 0.0
    %1279 = vmatprep.subr.mxu0 0.0
    %1280 = vmatpush1.msra.mxu0 0.0
    %1281 = vmatprep.subr.mxu0 0.0
    %1282 = vmatpush1.msra.mxu0 0.0
    %1283 = vmatprep.subr.mxu0 0.0
    %1284 = vmatpush1.msra.mxu0 0.0
    %1285 = vmatprep.subr.mxu0 0.0
    %1286 = vmatpush1.msra.mxu0 0.0
    %1287 = vmatprep.subr.mxu0 0.0
    %1288 = vmatpush1.msra.mxu0 0.0
    %1289 = vmatprep.subr.mxu0 0.0
    %1290 = vmatpush1.msra.mxu0 0.0
    %1291 = vmatprep.subr.mxu0 0.0
    %1292 = vmatpush1.msra.mxu0 0.0
    %1293 = vmatprep.subr.mxu0 0.0
    %1294 = vmatpush1.msra.mxu0 0.0
    %1295 = vmatprep.subr.mxu0 0.0
    %1296 = vmatpush1.msra.mxu0 0.0
    %1297 = vmatprep.subr.mxu0 0.0
    %1298 = vmatpush1.msra.mxu0 0.0
    %1299 = vmatprep.subr.mxu0 0.0
    %1300 = vmatpush1.msra.mxu0 0.0
    %1301 = vmatprep.subr.mxu0 0.0
    %1302 = vmatpush1.msra.mxu0 0.0
    %1303 = vmatprep.mubr.f32.mxu0 0.0
    %1304 = vmatmul.mubr.f32.gmra.mrb[0].mxu0 %v1237
    %v1305 = vpop.f32.mrb[0].mxu0
    %v1306 = vadd.f32 0.0, %v1305
    %v1307 = vpop.f32.mrb[0].mxu0
    %1308 = vdwg.mxu0
    %1309 = vst.msk [vmem:[#allocation2 + $0xb] sm:$0x1] %vm484, %v1306
    %1310 = vrot.lane.b32.xlu0 %v403, 64
    %v1311 = vpop.permute.xlu0 %1310
    %v1312 = vsel %vm410, %v1311, 0
    %1314 = vmatprep.subr.mxu0 0.0
    %1315 = vmatpush1.msra.mxu0 %v404
    %1316 = vmatprep.subr.mxu0 0.0
    %1317 = vmatpush1.msra.mxu0 %v405
    %1318 = vmatprep.subr.mxu0 0.0
    %1319 = vmatpush1.msra.mxu0 0.0
    %1320 = vmatprep.subr.mxu0 0.0
    %1321 = vmatpush1.msra.mxu0 0.0
    %1322 = vmatprep.subr.mxu0 0.0
    %1323 = vmatpush1.msra.mxu0 0.0
    %1324 = vmatprep.subr.mxu0 0.0
    %1325 = vmatpush1.msra.mxu0 0.0
    %1326 = vmatprep.subr.mxu0 0.0
    %1327 = vmatpush1.msra.mxu0 0.0
    %1328 = vmatprep.subr.mxu0 0.0
    %1329 = vmatpush1.msra.mxu0 0.0
    %1330 = vmatprep.subr.mxu0 0.0
    %1331 = vmatpush1.msra.mxu0 0.0
    %1332 = vmatprep.subr.mxu0 0.0
    %1333 = vmatpush1.msra.mxu0 0.0
    %1334 = vmatprep.subr.mxu0 0.0
    %1335 = vmatpush1.msra.mxu0 0.0
    %1336 = vmatprep.subr.mxu0 0.0
    %1337 = vmatpush1.msra.mxu0 0.0
    %1338 = vmatprep.subr.mxu0 0.0
    %1339 = vmatpush1.msra.mxu0 0.0
    %1340 = vmatprep.subr.mxu0 0.0
    %1341 = vmatpush1.msra.mxu0 0.0
    %1342 = vmatprep.subr.mxu0 0.0
    %1343 = vmatpush1.msra.mxu0 0.0
    %1344 = vmatprep.subr.mxu0 0.0
    %1345 = vmatpush1.msra.mxu0 0.0
    %1346 = vmatprep.subr.mxu0 0.0
    %1347 = vmatpush1.msra.mxu0 0.0
    %1348 = vmatprep.subr.mxu0 0.0
    %1349 = vmatpush1.msra.mxu0 0.0
    %1350 = vmatprep.subr.mxu0 0.0
    %1351 = vmatpush1.msra.mxu0 0.0
    %1352 = vmatprep.subr.mxu0 0.0
    %1353 = vmatpush1.msra.mxu0 0.0
    %1354 = vmatprep.subr.mxu0 0.0
    %1355 = vmatpush1.msra.mxu0 0.0
    %1356 = vmatprep.subr.mxu0 0.0
    %1357 = vmatpush1.msra.mxu0 0.0
    %1358 = vmatprep.subr.mxu0 0.0
    %1359 = vmatpush1.msra.mxu0 0.0
    %1360 = vmatprep.subr.mxu0 0.0
    %1361 = vmatpush1.msra.mxu0 0.0
    %1362 = vmatprep.subr.mxu0 0.0
    %1363 = vmatpush1.msra.mxu0 0.0
    %1364 = vmatprep.subr.mxu0 0.0
    %1365 = vmatpush1.msra.mxu0 0.0
    %1366 = vmatprep.subr.mxu0 0.0
    %1367 = vmatpush1.msra.mxu0 0.0
    %1368 = vmatprep.subr.mxu0 0.0
    %1369 = vmatpush1.msra.mxu0 0.0
    %1370 = vmatprep.subr.mxu0 0.0
    %1371 = vmatpush1.msra.mxu0 0.0
    %1372 = vmatprep.subr.mxu0 0.0
    %1373 = vmatpush1.msra.mxu0 0.0
    %1374 = vmatprep.subr.mxu0 0.0
    %1375 = vmatpush1.msra.mxu0 0.0
    %1376 = vmatprep.subr.mxu0 0.0
    %1377 = vmatpush1.msra.mxu0 0.0
    %1378 = vmatprep.mubr.f32.mxu0 0.0
    %1379 = vmatmul.mubr.f32.gmra.mrb[0].mxu0 %v1312
    %v1380 = vpop.f32.mrb[0].mxu0
    %v1381 = vadd.f32 0.0, %v1380
    %v1382 = vpop.f32.mrb[0].mxu0
    %1383 = vdwg.mxu0
    %1384 = vst.msk [vmem:[#allocation2 + $0xc] sm:$0x1] %vm484, %v1381
    %1385 = vrot.lane.b32.xlu0 %v403, 48
    %v1386 = vpop.permute.xlu0 %1385
    %v1387 = vsel %vm410, %v1386, 0
    %1389 = vmatprep.subr.mxu0 0.0
    %1390 = vmatpush1.msra.mxu0 %v404
    %1391 = vmatprep.subr.mxu0 0.0
    %1392 = vmatpush1.msra.mxu0 %v405
    %1393 = vmatprep.subr.mxu0 0.0
    %1394 = vmatpush1.msra.mxu0 0.0
    %1395 = vmatprep.subr.mxu0 0.0
    %1396 = vmatpush1.msra.mxu0 0.0
    %1397 = vmatprep.subr.mxu0 0.0
    %1398 = vmatpush1.msra.mxu0 0.0
    %1399 = vmatprep.subr.mxu0 0.0
    %1400 = vmatpush1.msra.mxu0 0.0
    %1401 = vmatprep.subr.mxu0 0.0
    %1402 = vmatpush1.msra.mxu0 0.0
    %1403 = vmatprep.subr.mxu0 0.0
    %1404 = vmatpush1.msra.mxu0 0.0
    %1405 = vmatprep.subr.mxu0 0.0
    %1406 = vmatpush1.msra.mxu0 0.0
    %1407 = vmatprep.subr.mxu0 0.0
    %1408 = vmatpush1.msra.mxu0 0.0
    %1409 = vmatprep.subr.mxu0 0.0
    %1410 = vmatpush1.msra.mxu0 0.0
    %1411 = vmatprep.subr.mxu0 0.0
    %1412 = vmatpush1.msra.mxu0 0.0
    %1413 = vmatprep.subr.mxu0 0.0
    %1414 = vmatpush1.msra.mxu0 0.0
    %1415 = vmatprep.subr.mxu0 0.0
    %1416 = vmatpush1.msra.mxu0 0.0
    %1417 = vmatprep.subr.mxu0 0.0
    %1418 = vmatpush1.msra.mxu0 0.0
    %1419 = vmatprep.subr.mxu0 0.0
    %1420 = vmatpush1.msra.mxu0 0.0
    %1421 = vmatprep.subr.mxu0 0.0
    %1422 = vmatpush1.msra.mxu0 0.0
    %1423 = vmatprep.subr.mxu0 0.0
    %1424 = vmatpush1.msra.mxu0 0.0
    %1425 = vmatprep.subr.mxu0 0.0
    %1426 = vmatpush1.msra.mxu0 0.0
    %1427 = vmatprep.subr.mxu0 0.0
    %1428 = vmatpush1.msra.mxu0 0.0
    %1429 = vmatprep.subr.mxu0 0.0
    %1430 = vmatpush1.msra.mxu0 0.0
    %1431 = vmatprep.subr.mxu0 0.0
    %1432 = vmatpush1.msra.mxu0 0.0
    %1433 = vmatprep.subr.mxu0 0.0
    %1434 = vmatpush1.msra.mxu0 0.0
    %1435 = vmatprep.subr.mxu0 0.0
    %1436 = vmatpush1.msra.mxu0 0.0
    %1437 = vmatprep.subr.mxu0 0.0
    %1438 = vmatpush1.msra.mxu0 0.0
    %1439 = vmatprep.subr.mxu0 0.0
    %1440 = vmatpush1.msra.mxu0 0.0
    %1441 = vmatprep.subr.mxu0 0.0
    %1442 = vmatpush1.msra.mxu0 0.0
    %1443 = vmatprep.subr.mxu0 0.0
    %1444 = vmatpush1.msra.mxu0 0.0
    %1445 = vmatprep.subr.mxu0 0.0
    %1446 = vmatpush1.msra.mxu0 0.0
    %1447 = vmatprep.subr.mxu0 0.0
    %1448 = vmatpush1.msra.mxu0 0.0
    %1449 = vmatprep.subr.mxu0 0.0
    %1450 = vmatpush1.msra.mxu0 0.0
    %1451 = vmatprep.subr.mxu0 0.0
    %1452 = vmatpush1.msra.mxu0 0.0
    %1453 = vmatprep.mubr.f32.mxu0 0.0
    %1454 = vmatmul.mubr.f32.gmra.mrb[0].mxu0 %v1387
    %v1455 = vpop.f32.mrb[0].mxu0
    %v1456 = vadd.f32 0.0, %v1455
    %v1457 = vpop.f32.mrb[0].mxu0
    %1458 = vdwg.mxu0
    %1459 = vst.msk [vmem:[#allocation2 + $0xd] sm:$0x1] %vm484, %v1456
    %1460 = vrot.lane.b32.xlu0 %v403, 32
    %v1461 = vpop.permute.xlu0 %1460
    %v1462 = vsel %vm410, %v1461, 0
    %1464 = vmatprep.subr.mxu0 0.0
    %1465 = vmatpush1.msra.mxu0 %v404
    %1466 = vmatprep.subr.mxu0 0.0
    %1467 = vmatpush1.msra.mxu0 %v405
    %1468 = vmatprep.subr.mxu0 0.0
    %1469 = vmatpush1.msra.mxu0 0.0
    %1470 = vmatprep.subr.mxu0 0.0
    %1471 = vmatpush1.msra.mxu0 0.0
    %1472 = vmatprep.subr.mxu0 0.0
    %1473 = vmatpush1.msra.mxu0 0.0
    %1474 = vmatprep.subr.mxu0 0.0
    %1475 = vmatpush1.msra.mxu0 0.0
    %1476 = vmatprep.subr.mxu0 0.0
    %1477 = vmatpush1.msra.mxu0 0.0
    %1478 = vmatprep.subr.mxu0 0.0
    %1479 = vmatpush1.msra.mxu0 0.0
    %1480 = vmatprep.subr.mxu0 0.0
    %1481 = vmatpush1.msra.mxu0 0.0
    %1482 = vmatprep.subr.mxu0 0.0
    %1483 = vmatpush1.msra.mxu0 0.0
    %1484 = vmatprep.subr.mxu0 0.0
    %1485 = vmatpush1.msra.mxu0 0.0
    %1486 = vmatprep.subr.mxu0 0.0
    %1487 = vmatpush1.msra.mxu0 0.0
    %1488 = vmatprep.subr.mxu0 0.0
    %1489 = vmatpush1.msra.mxu0 0.0
    %1490 = vmatprep.subr.mxu0 0.0
    %1491 = vmatpush1.msra.mxu0 0.0
    %1492 = vmatprep.subr.mxu0 0.0
    %1493 = vmatpush1.msra.mxu0 0.0
    %1494 = vmatprep.subr.mxu0 0.0
    %1495 = vmatpush1.msra.mxu0 0.0
    %1496 = vmatprep.subr.mxu0 0.0
    %1497 = vmatpush1.msra.mxu0 0.0
    %1498 = vmatprep.subr.mxu0 0.0
    %1499 = vmatpush1.msra.mxu0 0.0
    %1500 = vmatprep.subr.mxu0 0.0
    %1501 = vmatpush1.msra.mxu0 0.0
    %1502 = vmatprep.subr.mxu0 0.0
    %1503 = vmatpush1.msra.mxu0 0.0
    %1504 = vmatprep.subr.mxu0 0.0
    %1505 = vmatpush1.msra.mxu0 0.0
    %1506 = vmatprep.subr.mxu0 0.0
    %1507 = vmatpush1.msra.mxu0 0.0
    %1508 = vmatprep.subr.mxu0 0.0
    %1509 = vmatpush1.msra.mxu0 0.0
    %1510 = vmatprep.subr.mxu0 0.0
    %1511 = vmatpush1.msra.mxu0 0.0
    %1512 = vmatprep.subr.mxu0 0.0
    %1513 = vmatpush1.msra.mxu0 0.0
    %1514 = vmatprep.subr.mxu0 0.0
    %1515 = vmatpush1.msra.mxu0 0.0
    %1516 = vmatprep.subr.mxu0 0.0
    %1517 = vmatpush1.msra.mxu0 0.0
    %1518 = vmatprep.subr.mxu0 0.0
    %1519 = vmatpush1.msra.mxu0 0.0
    %1520 = vmatprep.subr.mxu0 0.0
    %1521 = vmatpush1.msra.mxu0 0.0
    %1522 = vmatprep.subr.mxu0 0.0
    %1523 = vmatpush1.msra.mxu0 0.0
    %1524 = vmatprep.subr.mxu0 0.0
    %1525 = vmatpush1.msra.mxu0 0.0
    %1526 = vmatprep.subr.mxu0 0.0
    %1527 = vmatpush1.msra.mxu0 0.0
    %1528 = vmatprep.mubr.f32.mxu0 0.0
    %1529 = vmatmul.mubr.f32.gmra.mrb[0].mxu0 %v1462
    %v1530 = vpop.f32.mrb[0].mxu0
    %v1531 = vadd.f32 0.0, %v1530
    %v1532 = vpop.f32.mrb[0].mxu0
    %1533 = vdwg.mxu0
    %1534 = vst.msk [vmem:[#allocation2 + $0xe] sm:$0x1] %vm484, %v1531
    %1535 = vrot.lane.b32.xlu0 %v403, 16
    %v1536 = vpop.permute.xlu0 %1535
    %v1537 = vsel %vm410, %v1536, 0
    %1539 = vmatprep.subr.mxu0 0.0
    %1540 = vmatpush1.msra.mxu0 %v404
    %1541 = vmatprep.subr.mxu0 0.0
    %1542 = vmatpush1.msra.mxu0 %v405
    %1543 = vmatprep.subr.mxu0 0.0
    %1544 = vmatpush1.msra.mxu0 0.0
    %1545 = vmatprep.subr.mxu0 0.0
    %1546 = vmatpush1.msra.mxu0 0.0
    %1547 = vmatprep.subr.mxu0 0.0
    %1548 = vmatpush1.msra.mxu0 0.0
    %1549 = vmatprep.subr.mxu0 0.0
    %1550 = vmatpush1.msra.mxu0 0.0
    %1551 = vmatprep.subr.mxu0 0.0
    %1552 = vmatpush1.msra.mxu0 0.0
    %1553 = vmatprep.subr.mxu0 0.0
    %1554 = vmatpush1.msra.mxu0 0.0
    %1555 = vmatprep.subr.mxu0 0.0
    %1556 = vmatpush1.msra.mxu0 0.0
    %1557 = vmatprep.subr.mxu0 0.0
    %1558 = vmatpush1.msra.mxu0 0.0
    %1559 = vmatprep.subr.mxu0 0.0
    %1560 = vmatpush1.msra.mxu0 0.0
    %1561 = vmatprep.subr.mxu0 0.0
    %1562 = vmatpush1.msra.mxu0 0.0
    %1563 = vmatprep.subr.mxu0 0.0
    %1564 = vmatpush1.msra.mxu0 0.0
    %1565 = vmatprep.subr.mxu0 0.0
    %1566 = vmatpush1.msra.mxu0 0.0
    %1567 = vmatprep.subr.mxu0 0.0
    %1568 = vmatpush1.msra.mxu0 0.0
    %1569 = vmatprep.subr.mxu0 0.0
    %1570 = vmatpush1.msra.mxu0 0.0
    %1571 = vmatprep.subr.mxu0 0.0
    %1572 = vmatpush1.msra.mxu0 0.0
    %1573 = vmatprep.subr.mxu0 0.0
    %1574 = vmatpush1.msra.mxu0 0.0
    %1575 = vmatprep.subr.mxu0 0.0
    %1576 = vmatpush1.msra.mxu0 0.0
    %1577 = vmatprep.subr.mxu0 0.0
    %1578 = vmatpush1.msra.mxu0 0.0
    %1579 = vmatprep.subr.mxu0 0.0
    %1580 = vmatpush1.msra.mxu0 0.0
    %1581 = vmatprep.subr.mxu0 0.0
    %1582 = vmatpush1.msra.mxu0 0.0
    %1583 = vmatprep.subr.mxu0 0.0
    %1584 = vmatpush1.msra.mxu0 0.0
    %1585 = vmatprep.subr.mxu0 0.0
    %1586 = vmatpush1.msra.mxu0 0.0
    %1587 = vmatprep.subr.mxu0 0.0
    %1588 = vmatpush1.msra.mxu0 0.0
    %1589 = vmatprep.subr.mxu0 0.0
    %1590 = vmatpush1.msra.mxu0 0.0
    %1591 = vmatprep.subr.mxu0 0.0
    %1592 = vmatpush1.msra.mxu0 0.0
    %1593 = vmatprep.subr.mxu0 0.0
    %1594 = vmatpush1.msra.mxu0 0.0
    %1595 = vmatprep.subr.mxu0 0.0
    %1596 = vmatpush1.msra.mxu0 0.0
    %1597 = vmatprep.subr.mxu0 0.0
    %1598 = vmatpush1.msra.mxu0 0.0
    %1599 = vmatprep.subr.mxu0 0.0
    %1600 = vmatpush1.msra.mxu0 0.0
    %1601 = vmatprep.subr.mxu0 0.0
    %1602 = vmatpush1.msra.mxu0 0.0
    %1603 = vmatprep.mubr.f32.mxu0 0.0
    %1604 = vmatmul.mubr.f32.gmra.mrb[0].mxu0 %v1537
    %v1605 = vpop.f32.mrb[0].mxu0
    %v1606 = vadd.f32 0.0, %v1605
    %v1607 = vpop.f32.mrb[0].mxu0
    %1608 = vdwg.mxu0
    %1609 = vst.msk [vmem:[#allocation2 + $0xf] sm:$0x1] %vm484, %v1606
    %v1610 = vld [vmem:[#allocation2] sm:$0xff]
    %v1611 = vld [vmem:[#allocation2 + $0x8] sm:$0xff]
    %v1613 = vsel %vm410, %v406, 0
    %v1616 = vsel %vm410, %v407, 0
    %v1619 = vsel %vm410, %v408, 0
    %v1622 = vsel %vm410, %v409, 0
    %1624 = vmatprep.subr.mxu0 0.0
    %1625 = vmatpush1.msra.mxu0 %v1610
    %1626 = vmatprep.subr.mxu0 0.0
    %1627 = vmatpush1.msra.mxu0 %v1611
    %1628 = vmatprep.subr.mxu0 0.0
    %1629 = vmatpush1.msra.mxu0 0.0
    %1630 = vmatprep.subr.mxu0 0.0
    %1631 = vmatpush1.msra.mxu0 0.0
    %1632 = vmatprep.subr.mxu0 0.0
    %1633 = vmatpush1.msra.mxu0 0.0
    %1634 = vmatprep.subr.mxu0 0.0
    %1635 = vmatpush1.msra.mxu0 0.0
    %1636 = vmatprep.subr.mxu0 0.0
    %1637 = vmatpush1.msra.mxu0 0.0
    %1638 = vmatprep.subr.mxu0 0.0
    %1639 = vmatpush1.msra.mxu0 0.0
    %1640 = vmatprep.subr.mxu0 0.0
    %1641 = vmatpush1.msra.mxu0 0.0
    %1642 = vmatprep.subr.mxu0 0.0
    %1643 = vmatpush1.msra.mxu0 0.0
    %1644 = vmatprep.subr.mxu0 0.0
    %1645 = vmatpush1.msra.mxu0 0.0
    %1646 = vmatprep.subr.mxu0 0.0
    %1647 = vmatpush1.msra.mxu0 0.0
    %1648 = vmatprep.subr.mxu0 0.0
    %1649 = vmatpush1.msra.mxu0 0.0
    %1650 = vmatprep.subr.mxu0 0.0
    %1651 = vmatpush1.msra.mxu0 0.0
    %1652 = vmatprep.subr.mxu0 0.0
    %1653 = vmatpush1.msra.mxu0 0.0
    %1654 = vmatprep.subr.mxu0 0.0
    %1655 = vmatpush1.msra.mxu0 0.0
    %1656 = vmatprep.subr.mxu0 0.0
    %1657 = vmatpush1.msra.mxu0 0.0
    %1658 = vmatprep.subr.mxu0 0.0
    %1659 = vmatpush1.msra.mxu0 0.0
    %1660 = vmatprep.subr.mxu0 0.0
    %1661 = vmatpush1.msra.mxu0 0.0
    %1662 = vmatprep.subr.mxu0 0.0
    %1663 = vmatpush1.msra.mxu0 0.0
    %1664 = vmatprep.subr.mxu0 0.0
    %1665 = vmatpush1.msra.mxu0 0.0
    %1666 = vmatprep.subr.mxu0 0.0
    %1667 = vmatpush1.msra.mxu0 0.0
    %1668 = vmatprep.subr.mxu0 0.0
    %1669 = vmatpush1.msra.mxu0 0.0
    %1670 = vmatprep.subr.mxu0 0.0
    %1671 = vmatpush1.msra.mxu0 0.0
    %1672 = vmatprep.subr.mxu0 0.0
    %1673 = vmatpush1.msra.mxu0 0.0
    %1674 = vmatprep.subr.mxu0 0.0
    %1675 = vmatpush1.msra.mxu0 0.0
    %1676 = vmatprep.subr.mxu0 0.0
    %1677 = vmatpush1.msra.mxu0 0.0
    %1678 = vmatprep.subr.mxu0 0.0
    %1679 = vmatpush1.msra.mxu0 0.0
    %1680 = vmatprep.subr.mxu0 0.0
    %1681 = vmatpush1.msra.mxu0 0.0
    %1682 = vmatprep.subr.mxu0 0.0
    %1683 = vmatpush1.msra.mxu0 0.0
    %1684 = vmatprep.subr.mxu0 0.0
    %1685 = vmatpush1.msra.mxu0 0.0
    %1686 = vmatprep.subr.mxu0 0.0
    %1687 = vmatpush1.msra.mxu0 0.0
    %1688 = vmatprep.mubr.f32.mxu0 0.0
    %1689 = vmatmul.mubr.f32.gmra.mrb[0].mxu0 %v1613
    %v1690 = vpop.f32.mrb[0].mxu0
    %v1691 = vadd.f32 0.0, %v1690
    %v1692 = vpop.f32.mrb[0].mxu0
    %1693 = vmatprep.mubr.f32.mxu0 0.0
    %1694 = vmatmul.mubr.f32.gmra.mrb[0].mxu0 %v1616
    %v1695 = vpop.f32.mrb[0].mxu0
    %v1696 = vadd.f32 0.0, %v1695
    %v1697 = vpop.f32.mrb[0].mxu0
    %1698 = vmatprep.mubr.f32.mxu0 0.0
    %1699 = vmatmul.mubr.f32.gmra.mrb[0].mxu0 %v1619
    %v1700 = vpop.f32.mrb[0].mxu0
    %v1701 = vadd.f32 0.0, %v1700
    %v1702 = vpop.f32.mrb[0].mxu0
    %1703 = vmatprep.mubr.f32.mxu0 0.0
    %1704 = vmatmul.mubr.f32.gmra.mrb[0].mxu0 %v1622
    %v1705 = vpop.f32.mrb[0].mxu0
    %v1706 = vadd.f32 0.0, %v1705
    %v1707 = vpop.f32.mrb[0].mxu0
    %1708 = vdwg.mxu0
    %vm1709 = vcmask 261120
    %1710 = vst.msk [vmem:[%s6] sm:$0xff] %vm1709, %v1691
    %1711 = vst.msk [vmem:[%s6 + $0x8] sm:$0xff] %vm1709, %v1696
    %1712 = vst.msk [vmem:[%s6 + $0x10] sm:$0xff] %vm1709, %v1701
    %1713 = vst.msk [vmem:[%s6 + $0x18] sm:$0xff] %vm1709, %v1706
    %v1714 = vrot.slane %v402, 1
    %v1715 = vsel %vm410, %v1714, 0
    %1717 = vmatprep.subr.mxu0 0.0
    %1718 = vmatpush1.msra.mxu0 %v404
    %1719 = vmatprep.subr.mxu0 0.0
    %1720 = vmatpush1.msra.mxu0 %v405
    %1721 = vmatprep.subr.mxu0 0.0
    %1722 = vmatpush1.msra.mxu0 0.0
    %1723 = vmatprep.subr.mxu0 0.0
    %1724 = vmatpush1.msra.mxu0 0.0
    %1725 = vmatprep.subr.mxu0 0.0
    %1726 = vmatpush1.msra.mxu0 0.0
    %1727 = vmatprep.subr.mxu0 0.0
    %1728 = vmatpush1.msra.mxu0 0.0
    %1729 = vmatprep.subr.mxu0 0.0
    %1730 = vmatpush1.msra.mxu0 0.0
    %1731 = vmatprep.subr.mxu0 0.0
    %1732 = vmatpush1.msra.mxu0 0.0
    %1733 = vmatprep.subr.mxu0 0.0
    %1734 = vmatpush1.msra.mxu0 0.0
    %1735 = vmatprep.subr.mxu0 0.0
    %1736 = vmatpush1.msra.mxu0 0.0
    %1737 = vmatprep.subr.mxu0 0.0
    %1738 = vmatpush1.msra.mxu0 0.0
    %1739 = vmatprep.subr.mxu0 0.0
    %1740 = vmatpush1.msra.mxu0 0.0
    %1741 = vmatprep.subr.mxu0 0.0
    %1742 = vmatpush1.msra.mxu0 0.0
    %1743 = vmatprep.subr.mxu0 0.0
    %1744 = vmatpush1.msra.mxu0 0.0
    %1745 = vmatprep.subr.mxu0 0.0
    %1746 = vmatpush1.msra.mxu0 0.0
    %1747 = vmatprep.subr.mxu0 0.0
    %1748 = vmatpush1.msra.mxu0 0.0
    %1749 = vmatprep.subr.mxu0 0.0
    %1750 = vmatpush1.msra.mxu0 0.0
    %1751 = vmatprep.subr.mxu0 0.0
    %1752 = vmatpush1.msra.mxu0 0.0
    %1753 = vmatprep.subr.mxu0 0.0
    %1754 = vmatpush1.msra.mxu0 0.0
    %1755 = vmatprep.subr.mxu0 0.0
    %1756 = vmatpush1.msra.mxu0 0.0
    %1757 = vmatprep.subr.mxu0 0.0
    %1758 = vmatpush1.msra.mxu0 0.0
    %1759 = vmatprep.subr.mxu0 0.0
    %1760 = vmatpush1.msra.mxu0 0.0
    %1761 = vmatprep.subr.mxu0 0.0
    %1762 = vmatpush1.msra.mxu0 0.0
    %1763 = vmatprep.subr.mxu0 0.0
    %1764 = vmatpush1.msra.mxu0 0.0
    %1765 = vmatprep.subr.mxu0 0.0
    %1766 = vmatpush1.msra.mxu0 0.0
    %1767 = vmatprep.subr.mxu0 0.0
    %1768 = vmatpush1.msra.mxu0 0.0
    %1769 = vmatprep.subr.mxu0 0.0
    %1770 = vmatpush1.msra.mxu0 0.0
    %1771 = vmatprep.subr.mxu0 0.0
    %1772 = vmatpush1.msra.mxu0 0.0
    %1773 = vmatprep.subr.mxu0 0.0
    %1774 = vmatpush1.msra.mxu0 0.0
    %1775 = vmatprep.subr.mxu0 0.0
    %1776 = vmatpush1.msra.mxu0 0.0
    %1777 = vmatprep.subr.mxu0 0.0
    %1778 = vmatpush1.msra.mxu0 0.0
    %1779 = vmatprep.subr.mxu0 0.0
    %1780 = vmatpush1.msra.mxu0 0.0
    %1781 = vmatprep.mubr.f32.mxu0 0.0
    %1782 = vmatmul.mubr.f32.gmra.mrb[0].mxu0 %v1715
    %v1783 = vpop.f32.mrb[0].mxu0
    %v1784 = vadd.f32 0.0, %v1783
    %v1785 = vpop.f32.mrb[0].mxu0
    %1786 = vdwg.mxu0
    %1787 = vst.msk [vmem:[#allocation2] sm:$0x1] %vm484, %v1784
    %1788 = vrot.lane.b32.xlu0 %v1714, 112
    %v1789 = vpop.permute.xlu0 %1788
    %v1790 = vsel %vm410, %v1789, 0
    %1792 = vmatprep.subr.mxu0 0.0
    %1793 = vmatpush1.msra.mxu0 %v404
    %1794 = vmatprep.subr.mxu0 0.0
    %1795 = vmatpush1.msra.mxu0 %v405
    %1796 = vmatprep.subr.mxu0 0.0
    %1797 = vmatpush1.msra.mxu0 0.0
    %1798 = vmatprep.subr.mxu0 0.0
    %1799 = vmatpush1.msra.mxu0 0.0
    %1800 = vmatprep.subr.mxu0 0.0
    %1801 = vmatpush1.msra.mxu0 0.0
    %1802 = vmatprep.subr.mxu0 0.0
    %1803 = vmatpush1.msra.mxu0 0.0
    %1804 = vmatprep.subr.mxu0 0.0
    %1805 = vmatpush1.msra.mxu0 0.0
    %1806 = vmatprep.subr.mxu0 0.0
    %1807 = vmatpush1.msra.mxu0 0.0
    %1808 = vmatprep.subr.mxu0 0.0
    %1809 = vmatpush1.msra.mxu0 0.0
    %1810 = vmatprep.subr.mxu0 0.0
    %1811 = vmatpush1.msra.mxu0 0.0
    %1812 = vmatprep.subr.mxu0 0.0
    %1813 = vmatpush1.msra.mxu0 0.0
    %1814 = vmatprep.subr.mxu0 0.0
    %1815 = vmatpush1.msra.mxu0 0.0
    %1816 = vmatprep.subr.mxu0 0.0
    %1817 = vmatpush1.msra.mxu0 0.0
    %1818 = vmatprep.subr.mxu0 0.0
    %1819 = vmatpush1.msra.mxu0 0.0
    %1820 = vmatprep.subr.mxu0 0.0
    %1821 = vmatpush1.msra.mxu0 0.0
    %1822 = vmatprep.subr.mxu0 0.0
    %1823 = vmatpush1.msra.mxu0 0.0
    %1824 = vmatprep.subr.mxu0 0.0
    %1825 = vmatpush1.msra.mxu0 0.0
    %1826 = vmatprep.subr.mxu0 0.0
    %1827 = vmatpush1.msra.mxu0 0.0
    %1828 = vmatprep.subr.mxu0 0.0
    %1829 = vmatpush1.msra.mxu0 0.0
    %1830 = vmatprep.subr.mxu0 0.0
    %1831 = vmatpush1.msra.mxu0 0.0
    %1832 = vmatprep.subr.mxu0 0.0
    %1833 = vmatpush1.msra.mxu0 0.0
    %1834 = vmatprep.subr.mxu0 0.0
    %1835 = vmatpush1.msra.mxu0 0.0
    %1836 = vmatprep.subr.mxu0 0.0
    %1837 = vmatpush1.msra.mxu0 0.0
    %1838 = vmatprep.subr.mxu0 0.0
    %1839 = vmatpush1.msra.mxu0 0.0
    %1840 = vmatprep.subr.mxu0 0.0
    %1841 = vmatpush1.msra.mxu0 0.0
    %1842 = vmatprep.subr.mxu0 0.0
    %1843 = vmatpush1.msra.mxu0 0.0
    %1844 = vmatprep.subr.mxu0 0.0
    %1845 = vmatpush1.msra.mxu0 0.0
    %1846 = vmatprep.subr.mxu0 0.0
    %1847 = vmatpush1.msra.mxu0 0.0
    %1848 = vmatprep.subr.mxu0 0.0
    %1849 = vmatpush1.msra.mxu0 0.0
    %1850 = vmatprep.subr.mxu0 0.0
    %1851 = vmatpush1.msra.mxu0 0.0
    %1852 = vmatprep.subr.mxu0 0.0
    %1853 = vmatpush1.msra.mxu0 0.0
    %1854 = vmatprep.subr.mxu0 0.0
    %1855 = vmatpush1.msra.mxu0 0.0
    %1856 = vmatprep.mubr.f32.mxu0 0.0
    %1857 = vmatmul.mubr.f32.gmra.mrb[0].mxu0 %v1790
    %v1858 = vpop.f32.mrb[0].mxu0
    %v1859 = vadd.f32 0.0, %v1858
    %v1860 = vpop.f32.mrb[0].mxu0
    %1861 = vdwg.mxu0
    %1862 = vst.msk [vmem:[#allocation2 + $0x1] sm:$0x1] %vm484, %v1859
    %1863 = vrot.lane.b32.xlu0 %v1714, 96
    %v1864 = vpop.permute.xlu0 %1863
    %v1865 = vsel %vm410, %v1864, 0
    %1867 = vmatprep.subr.mxu0 0.0
    %1868 = vmatpush1.msra.mxu0 %v404
    %1869 = vmatprep.subr.mxu0 0.0
    %1870 = vmatpush1.msra.mxu0 %v405
    %1871 = vmatprep.subr.mxu0 0.0
    %1872 = vmatpush1.msra.mxu0 0.0
    %1873 = vmatprep.subr.mxu0 0.0
    %1874 = vmatpush1.msra.mxu0 0.0
    %1875 = vmatprep.subr.mxu0 0.0
    %1876 = vmatpush1.msra.mxu0 0.0
    %1877 = vmatprep.subr.mxu0 0.0
    %1878 = vmatpush1.msra.mxu0 0.0
    %1879 = vmatprep.subr.mxu0 0.0
    %1880 = vmatpush1.msra.mxu0 0.0
    %1881 = vmatprep.subr.mxu0 0.0
    %1882 = vmatpush1.msra.mxu0 0.0
    %1883 = vmatprep.subr.mxu0 0.0
    %1884 = vmatpush1.msra.mxu0 0.0
    %1885 = vmatprep.subr.mxu0 0.0
    %1886 = vmatpush1.msra.mxu0 0.0
    %1887 = vmatprep.subr.mxu0 0.0
    %1888 = vmatpush1.msra.mxu0 0.0
    %1889 = vmatprep.subr.mxu0 0.0
    %1890 = vmatpush1.msra.mxu0 0.0
    %1891 = vmatprep.subr.mxu0 0.0
    %1892 = vmatpush1.msra.mxu0 0.0
    %1893 = vmatprep.subr.mxu0 0.0
    %1894 = vmatpush1.msra.mxu0 0.0
    %1895 = vmatprep.subr.mxu0 0.0
    %1896 = vmatpush1.msra.mxu0 0.0
    %1897 = vmatprep.subr.mxu0 0.0
    %1898 = vmatpush1.msra.mxu0 0.0
    %1899 = vmatprep.subr.mxu0 0.0
    %1900 = vmatpush1.msra.mxu0 0.0
    %1901 = vmatprep.subr.mxu0 0.0
    %1902 = vmatpush1.msra.mxu0 0.0
    %1903 = vmatprep.subr.mxu0 0.0
    %1904 = vmatpush1.msra.mxu0 0.0
    %1905 = vmatprep.subr.mxu0 0.0
    %1906 = vmatpush1.msra.mxu0 0.0
    %1907 = vmatprep.subr.mxu0 0.0
    %1908 = vmatpush1.msra.mxu0 0.0
    %1909 = vmatprep.subr.mxu0 0.0
    %1910 = vmatpush1.msra.mxu0 0.0
    %1911 = vmatprep.subr.mxu0 0.0
    %1912 = vmatpush1.msra.mxu0 0.0
    %1913 = vmatprep.subr.mxu0 0.0
    %1914 = vmatpush1.msra.mxu0 0.0
    %1915 = vmatprep.subr.mxu0 0.0
    %1916 = vmatpush1.msra.mxu0 0.0
    %1917 = vmatprep.subr.mxu0 0.0
    %1918 = vmatpush1.msra.mxu0 0.0
    %1919 = vmatprep.subr.mxu0 0.0
    %1920 = vmatpush1.msra.mxu0 0.0
    %1921 = vmatprep.subr.mxu0 0.0
    %1922 = vmatpush1.msra.mxu0 0.0
    %1923 = vmatprep.subr.mxu0 0.0
    %1924 = vmatpush1.msra.mxu0 0.0
    %1925 = vmatprep.subr.mxu0 0.0
    %1926 = vmatpush1.msra.mxu0 0.0
    %1927 = vmatprep.subr.mxu0 0.0
    %1928 = vmatpush1.msra.mxu0 0.0
    %1929 = vmatprep.subr.mxu0 0.0
    %1930 = vmatpush1.msra.mxu0 0.0
    %1931 = vmatprep.mubr.f32.mxu0 0.0
    %1932 = vmatmul.mubr.f32.gmra.mrb[0].mxu0 %v1865
    %v1933 = vpop.f32.mrb[0].mxu0
    %v1934 = vadd.f32 0.0, %v1933
    %v1935 = vpop.f32.mrb[0].mxu0
    %1936 = vdwg.mxu0
    %1937 = vst.msk [vmem:[#allocation2 + $0x2] sm:$0x1] %vm484, %v1934
    %1938 = vrot.lane.b32.xlu0 %v1714, 80
    %v1939 = vpop.permute.xlu0 %1938
    %v1940 = vsel %vm410, %v1939, 0
    %1942 = vmatprep.subr.mxu0 0.0
    %1943 = vmatpush1.msra.mxu0 %v404
    %1944 = vmatprep.subr.mxu0 0.0
    %1945 = vmatpush1.msra.mxu0 %v405
    %1946 = vmatprep.subr.mxu0 0.0
    %1947 = vmatpush1.msra.mxu0 0.0
    %1948 = vmatprep.subr.mxu0 0.0
    %1949 = vmatpush1.msra.mxu0 0.0
    %1950 = vmatprep.subr.mxu0 0.0
    %1951 = vmatpush1.msra.mxu0 0.0
    %1952 = vmatprep.subr.mxu0 0.0
    %1953 = vmatpush1.msra.mxu0 0.0
    %1954 = vmatprep.subr.mxu0 0.0
    %1955 = vmatpush1.msra.mxu0 0.0
    %1956 = vmatprep.subr.mxu0 0.0
    %1957 = vmatpush1.msra.mxu0 0.0
    %1958 = vmatprep.subr.mxu0 0.0
    %1959 = vmatpush1.msra.mxu0 0.0
    %1960 = vmatprep.subr.mxu0 0.0
    %1961 = vmatpush1.msra.mxu0 0.0
    %1962 = vmatprep.subr.mxu0 0.0
    %1963 = vmatpush1.msra.mxu0 0.0
    %1964 = vmatprep.subr.mxu0 0.0
    %1965 = vmatpush1.msra.mxu0 0.0
    %1966 = vmatprep.subr.mxu0 0.0
    %1967 = vmatpush1.msra.mxu0 0.0
    %1968 = vmatprep.subr.mxu0 0.0
    %1969 = vmatpush1.msra.mxu0 0.0
    %1970 = vmatprep.subr.mxu0 0.0
    %1971 = vmatpush1.msra.mxu0 0.0
    %1972 = vmatprep.subr.mxu0 0.0
    %1973 = vmatpush1.msra.mxu0 0.0
    %1974 = vmatprep.subr.mxu0 0.0
    %1975 = vmatpush1.msra.mxu0 0.0
    %1976 = vmatprep.subr.mxu0 0.0
    %1977 = vmatpush1.msra.mxu0 0.0
    %1978 = vmatprep.subr.mxu0 0.0
    %1979 = vmatpush1.msra.mxu0 0.0
    %1980 = vmatprep.subr.mxu0 0.0
    %1981 = vmatpush1.msra.mxu0 0.0
    %1982 = vmatprep.subr.mxu0 0.0
    %1983 = vmatpush1.msra.mxu0 0.0
    %1984 = vmatprep.subr.mxu0 0.0
    %1985 = vmatpush1.msra.mxu0 0.0
    %1986 = vmatprep.subr.mxu0 0.0
    %1987 = vmatpush1.msra.mxu0 0.0
    %1988 = vmatprep.subr.mxu0 0.0
    %1989 = vmatpush1.msra.mxu0 0.0
    %1990 = vmatprep.subr.mxu0 0.0
    %1991 = vmatpush1.msra.mxu0 0.0
    %1992 = vmatprep.subr.mxu0 0.0
    %1993 = vmatpush1.msra.mxu0 0.0
    %1994 = vmatprep.subr.mxu0 0.0
    %1995 = vmatpush1.msra.mxu0 0.0
    %1996 = vmatprep.subr.mxu0 0.0
    %1997 = vmatpush1.msra.mxu0 0.0
    %1998 = vmatprep.subr.mxu0 0.0
    %1999 = vmatpush1.msra.mxu0 0.0
    %2000 = vmatprep.subr.mxu0 0.0
    %2001 = vmatpush1.msra.mxu0 0.0
    %2002 = vmatprep.subr.mxu0 0.0
    %2003 = vmatpush1.msra.mxu0 0.0
    %2004 = vmatprep.subr.mxu0 0.0
    %2005 = vmatpush1.msra.mxu0 0.0
    %2006 = vmatprep.mubr.f32.mxu0 0.0
    %2007 = vmatmul.mubr.f32.gmra.mrb[0].mxu0 %v1940
    %v2008 = vpop.f32.mrb[0].mxu0
    %v2009 = vadd.f32 0.0, %v2008
    %v2010 = vpop.f32.mrb[0].mxu0
    %2011 = vdwg.mxu0
    %2012 = vst.msk [vmem:[#allocation2 + $0x3] sm:$0x1] %vm484, %v2009
    %2013 = vrot.lane.b32.xlu0 %v1714, 64
    %v2014 = vpop.permute.xlu0 %2013
    %v2015 = vsel %vm410, %v2014, 0
    %2017 = vmatprep.subr.mxu0 0.0
    %2018 = vmatpush1.msra.mxu0 %v404
    %2019 = vmatprep.subr.mxu0 0.0
    %2020 = vmatpush1.msra.mxu0 %v405
    %2021 = vmatprep.subr.mxu0 0.0
    %2022 = vmatpush1.msra.mxu0 0.0
    %2023 = vmatprep.subr.mxu0 0.0
    %2024 = vmatpush1.msra.mxu0 0.0
    %2025 = vmatprep.subr.mxu0 0.0
    %2026 = vmatpush1.msra.mxu0 0.0
    %2027 = vmatprep.subr.mxu0 0.0
    %2028 = vmatpush1.msra.mxu0 0.0
    %2029 = vmatprep.subr.mxu0 0.0
    %2030 = vmatpush1.msra.mxu0 0.0
    %2031 = vmatprep.subr.mxu0 0.0
    %2032 = vmatpush1.msra.mxu0 0.0
    %2033 = vmatprep.subr.mxu0 0.0
    %2034 = vmatpush1.msra.mxu0 0.0
    %2035 = vmatprep.subr.mxu0 0.0
    %2036 = vmatpush1.msra.mxu0 0.0
    %2037 = vmatprep.subr.mxu0 0.0
    %2038 = vmatpush1.msra.mxu0 0.0
    %2039 = vmatprep.subr.mxu0 0.0
    %2040 = vmatpush1.msra.mxu0 0.0
    %2041 = vmatprep.subr.mxu0 0.0
    %2042 = vmatpush1.msra.mxu0 0.0
    %2043 = vmatprep.subr.mxu0 0.0
    %2044 = vmatpush1.msra.mxu0 0.0
    %2045 = vmatprep.subr.mxu0 0.0
    %2046 = vmatpush1.msra.mxu0 0.0
    %2047 = vmatprep.subr.mxu0 0.0
    %2048 = vmatpush1.msra.mxu0 0.0
    %2049 = vmatprep.subr.mxu0 0.0
    %2050 = vmatpush1.msra.mxu0 0.0
    %2051 = vmatprep.subr.mxu0 0.0
    %2052 = vmatpush1.msra.mxu0 0.0
    %2053 = vmatprep.subr.mxu0 0.0
    %2054 = vmatpush1.msra.mxu0 0.0
    %2055 = vmatprep.subr.mxu0 0.0
    %2056 = vmatpush1.msra.mxu0 0.0
    %2057 = vmatprep.subr.mxu0 0.0
    %2058 = vmatpush1.msra.mxu0 0.0
    %2059 = vmatprep.subr.mxu0 0.0
    %2060 = vmatpush1.msra.mxu0 0.0
    %2061 = vmatprep.subr.mxu0 0.0
    %2062 = vmatpush1.msra.mxu0 0.0
    %2063 = vmatprep.subr.mxu0 0.0
    %2064 = vmatpush1.msra.mxu0 0.0
    %2065 = vmatprep.subr.mxu0 0.0
    %2066 = vmatpush1.msra.mxu0 0.0
    %2067 = vmatprep.subr.mxu0 0.0
    %2068 = vmatpush1.msra.mxu0 0.0
    %2069 = vmatprep.subr.mxu0 0.0
    %2070 = vmatpush1.msra.mxu0 0.0
    %2071 = vmatprep.subr.mxu0 0.0
    %2072 = vmatpush1.msra.mxu0 0.0
    %2073 = vmatprep.subr.mxu0 0.0
    %2074 = vmatpush1.msra.mxu0 0.0
    %2075 = vmatprep.subr.mxu0 0.0
    %2076 = vmatpush1.msra.mxu0 0.0
    %2077 = vmatprep.subr.mxu0 0.0
    %2078 = vmatpush1.msra.mxu0 0.0
    %2079 = vmatprep.subr.mxu0 0.0
    %2080 = vmatpush1.msra.mxu0 0.0
    %2081 = vmatprep.mubr.f32.mxu0 0.0
    %2082 = vmatmul.mubr.f32.gmra.mrb[0].mxu0 %v2015
    %v2083 = vpop.f32.mrb[0].mxu0
    %v2084 = vadd.f32 0.0, %v2083
    %v2085 = vpop.f32.mrb[0].mxu0
    %2086 = vdwg.mxu0
    %2087 = vst.msk [vmem:[#allocation2 + $0x4] sm:$0x1] %vm484, %v2084
    %2088 = vrot.lane.b32.xlu0 %v1714, 48
    %v2089 = vpop.permute.xlu0 %2088
    %v2090 = vsel %vm410, %v2089, 0
    %2092 = vmatprep.subr.mxu0 0.0
    %2093 = vmatpush1.msra.mxu0 %v404
    %2094 = vmatprep.subr.mxu0 0.0
    %2095 = vmatpush1.msra.mxu0 %v405
    %2096 = vmatprep.subr.mxu0 0.0
    %2097 = vmatpush1.msra.mxu0 0.0
    %2098 = vmatprep.subr.mxu0 0.0
    %2099 = vmatpush1.msra.mxu0 0.0
    %2100 = vmatprep.subr.mxu0 0.0
    %2101 = vmatpush1.msra.mxu0 0.0
    %2102 = vmatprep.subr.mxu0 0.0
    %2103 = vmatpush1.msra.mxu0 0.0
    %2104 = vmatprep.subr.mxu0 0.0
    %2105 = vmatpush1.msra.mxu0 0.0
    %2106 = vmatprep.subr.mxu0 0.0
    %2107 = vmatpush1.msra.mxu0 0.0
    %2108 = vmatprep.subr.mxu0 0.0
    %2109 = vmatpush1.msra.mxu0 0.0
    %2110 = vmatprep.subr.mxu0 0.0
    %2111 = vmatpush1.msra.mxu0 0.0
    %2112 = vmatprep.subr.mxu0 0.0
    %2113 = vmatpush1.msra.mxu0 0.0
    %2114 = vmatprep.subr.mxu0 0.0
    %2115 = vmatpush1.msra.mxu0 0.0
    %2116 = vmatprep.subr.mxu0 0.0
    %2117 = vmatpush1.msra.mxu0 0.0
    %2118 = vmatprep.subr.mxu0 0.0
    %2119 = vmatpush1.msra.mxu0 0.0
    %2120 = vmatprep.subr.mxu0 0.0
    %2121 = vmatpush1.msra.mxu0 0.0
    %2122 = vmatprep.subr.mxu0 0.0
    %2123 = vmatpush1.msra.mxu0 0.0
    %2124 = vmatprep.subr.mxu0 0.0
    %2125 = vmatpush1.msra.mxu0 0.0
    %2126 = vmatprep.subr.mxu0 0.0
    %2127 = vmatpush1.msra.mxu0 0.0
    %2128 = vmatprep.subr.mxu0 0.0
    %2129 = vmatpush1.msra.mxu0 0.0
    %2130 = vmatprep.subr.mxu0 0.0
    %2131 = vmatpush1.msra.mxu0 0.0
    %2132 = vmatprep.subr.mxu0 0.0
    %2133 = vmatpush1.msra.mxu0 0.0
    %2134 = vmatprep.subr.mxu0 0.0
    %2135 = vmatpush1.msra.mxu0 0.0
    %2136 = vmatprep.subr.mxu0 0.0
    %2137 = vmatpush1.msra.mxu0 0.0
    %2138 = vmatprep.subr.mxu0 0.0
    %2139 = vmatpush1.msra.mxu0 0.0
    %2140 = vmatprep.subr.mxu0 0.0
    %2141 = vmatpush1.msra.mxu0 0.0
    %2142 = vmatprep.subr.mxu0 0.0
    %2143 = vmatpush1.msra.mxu0 0.0
    %2144 = vmatprep.subr.mxu0 0.0
    %2145 = vmatpush1.msra.mxu0 0.0
    %2146 = vmatprep.subr.mxu0 0.0
    %2147 = vmatpush1.msra.mxu0 0.0
    %2148 = vmatprep.subr.mxu0 0.0
    %2149 = vmatpush1.msra.mxu0 0.0
    %2150 = vmatprep.subr.mxu0 0.0
    %2151 = vmatpush1.msra.mxu0 0.0
    %2152 = vmatprep.subr.mxu0 0.0
    %2153 = vmatpush1.msra.mxu0 0.0
    %2154 = vmatprep.subr.mxu0 0.0
    %2155 = vmatpush1.msra.mxu0 0.0
    %2156 = vmatprep.mubr.f32.mxu0 0.0
    %2157 = vmatmul.mubr.f32.gmra.mrb[0].mxu0 %v2090
    %v2158 = vpop.f32.mrb[0].mxu0
    %v2159 = vadd.f32 0.0, %v2158
    %v2160 = vpop.f32.mrb[0].mxu0
    %2161 = vdwg.mxu0
    %2162 = vst.msk [vmem:[#allocation2 + $0x5] sm:$0x1] %vm484, %v2159
    %2163 = vrot.lane.b32.xlu0 %v1714, 32
    %v2164 = vpop.permute.xlu0 %2163
    %v2165 = vsel %vm410, %v2164, 0
    %2167 = vmatprep.subr.mxu0 0.0
    %2168 = vmatpush1.msra.mxu0 %v404
    %2169 = vmatprep.subr.mxu0 0.0
    %2170 = vmatpush1.msra.mxu0 %v405
    %2171 = vmatprep.subr.mxu0 0.0
    %2172 = vmatpush1.msra.mxu0 0.0
    %2173 = vmatprep.subr.mxu0 0.0
    %2174 = vmatpush1.msra.mxu0 0.0
    %2175 = vmatprep.subr.mxu0 0.0
    %2176 = vmatpush1.msra.mxu0 0.0
    %2177 = vmatprep.subr.mxu0 0.0
    %2178 = vmatpush1.msra.mxu0 0.0
    %2179 = vmatprep.subr.mxu0 0.0
    %2180 = vmatpush1.msra.mxu0 0.0
    %2181 = vmatprep.subr.mxu0 0.0
    %2182 = vmatpush1.msra.mxu0 0.0
    %2183 = vmatprep.subr.mxu0 0.0
    %2184 = vmatpush1.msra.mxu0 0.0
    %2185 = vmatprep.subr.mxu0 0.0
    %2186 = vmatpush1.msra.mxu0 0.0
    %2187 = vmatprep.subr.mxu0 0.0
    %2188 = vmatpush1.msra.mxu0 0.0
    %2189 = vmatprep.subr.mxu0 0.0
    %2190 = vmatpush1.msra.mxu0 0.0
    %2191 = vmatprep.subr.mxu0 0.0
    %2192 = vmatpush1.msra.mxu0 0.0
    %2193 = vmatprep.subr.mxu0 0.0
    %2194 = vmatpush1.msra.mxu0 0.0
    %2195 = vmatprep.subr.mxu0 0.0
    %2196 = vmatpush1.msra.mxu0 0.0
    %2197 = vmatprep.subr.mxu0 0.0
    %2198 = vmatpush1.msra.mxu0 0.0
    %2199 = vmatprep.subr.mxu0 0.0
    %2200 = vmatpush1.msra.mxu0 0.0
    %2201 = vmatprep.subr.mxu0 0.0
    %2202 = vmatpush1.msra.mxu0 0.0
    %2203 = vmatprep.subr.mxu0 0.0
    %2204 = vmatpush1.msra.mxu0 0.0
    %2205 = vmatprep.subr.mxu0 0.0
    %2206 = vmatpush1.msra.mxu0 0.0
    %2207 = vmatprep.subr.mxu0 0.0
    %2208 = vmatpush1.msra.mxu0 0.0
    %2209 = vmatprep.subr.mxu0 0.0
    %2210 = vmatpush1.msra.mxu0 0.0
    %2211 = vmatprep.subr.mxu0 0.0
    %2212 = vmatpush1.msra.mxu0 0.0
    %2213 = vmatprep.subr.mxu0 0.0
    %2214 = vmatpush1.msra.mxu0 0.0
    %2215 = vmatprep.subr.mxu0 0.0
    %2216 = vmatpush1.msra.mxu0 0.0
    %2217 = vmatprep.subr.mxu0 0.0
    %2218 = vmatpush1.msra.mxu0 0.0
    %2219 = vmatprep.subr.mxu0 0.0
    %2220 = vmatpush1.msra.mxu0 0.0
    %2221 = vmatprep.subr.mxu0 0.0
    %2222 = vmatpush1.msra.mxu0 0.0
    %2223 = vmatprep.subr.mxu0 0.0
    %2224 = vmatpush1.msra.mxu0 0.0
    %2225 = vmatprep.subr.mxu0 0.0
    %2226 = vmatpush1.msra.mxu0 0.0
    %2227 = vmatprep.subr.mxu0 0.0
    %2228 = vmatpush1.msra.mxu0 0.0
    %2229 = vmatprep.subr.mxu0 0.0
    %2230 = vmatpush1.msra.mxu0 0.0
    %2231 = vmatprep.mubr.f32.mxu0 0.0
    %2232 = vmatmul.mubr.f32.gmra.mrb[0].mxu0 %v2165
    %v2233 = vpop.f32.mrb[0].mxu0
    %v2234 = vadd.f32 0.0, %v2233
    %v2235 = vpop.f32.mrb[0].mxu0
    %2236 = vdwg.mxu0
    %2237 = vst.msk [vmem:[#allocation2 + $0x6] sm:$0x1] %vm484, %v2234
    %2238 = vrot.lane.b32.xlu0 %v1714, 16
    %v2239 = vpop.permute.xlu0 %2238
    %v2240 = vsel %vm410, %v2239, 0
    %2242 = vmatprep.subr.mxu0 0.0
    %2243 = vmatpush1.msra.mxu0 %v404
    %2244 = vmatprep.subr.mxu0 0.0
    %2245 = vmatpush1.msra.mxu0 %v405
    %2246 = vmatprep.subr.mxu0 0.0
    %2247 = vmatpush1.msra.mxu0 0.0
    %2248 = vmatprep.subr.mxu0 0.0
    %2249 = vmatpush1.msra.mxu0 0.0
    %2250 = vmatprep.subr.mxu0 0.0
    %2251 = vmatpush1.msra.mxu0 0.0
    %2252 = vmatprep.subr.mxu0 0.0
    %2253 = vmatpush1.msra.mxu0 0.0
    %2254 = vmatprep.subr.mxu0 0.0
    %2255 = vmatpush1.msra.mxu0 0.0
    %2256 = vmatprep.subr.mxu0 0.0
    %2257 = vmatpush1.msra.mxu0 0.0
    %2258 = vmatprep.subr.mxu0 0.0
    %2259 = vmatpush1.msra.mxu0 0.0
    %2260 = vmatprep.subr.mxu0 0.0
    %2261 = vmatpush1.msra.mxu0 0.0
    %2262 = vmatprep.subr.mxu0 0.0
    %2263 = vmatpush1.msra.mxu0 0.0
    %2264 = vmatprep.subr.mxu0 0.0
    %2265 = vmatpush1.msra.mxu0 0.0
    %2266 = vmatprep.subr.mxu0 0.0
    %2267 = vmatpush1.msra.mxu0 0.0
    %2268 = vmatprep.subr.mxu0 0.0
    %2269 = vmatpush1.msra.mxu0 0.0
    %2270 = vmatprep.subr.mxu0 0.0
    %2271 = vmatpush1.msra.mxu0 0.0
    %2272 = vmatprep.subr.mxu0 0.0
    %2273 = vmatpush1.msra.mxu0 0.0
    %2274 = vmatprep.subr.mxu0 0.0
    %2275 = vmatpush1.msra.mxu0 0.0
    %2276 = vmatprep.subr.mxu0 0.0
    %2277 = vmatpush1.msra.mxu0 0.0
    %2278 = vmatprep.subr.mxu0 0.0
    %2279 = vmatpush1.msra.mxu0 0.0
    %2280 = vmatprep.subr.mxu0 0.0
    %2281 = vmatpush1.msra.mxu0 0.0
    %2282 = vmatprep.subr.mxu0 0.0
    %2283 = vmatpush1.msra.mxu0 0.0
    %2284 = vmatprep.subr.mxu0 0.0
    %2285 = vmatpush1.msra.mxu0 0.0
    %2286 = vmatprep.subr.mxu0 0.0
    %2287 = vmatpush1.msra.mxu0 0.0
    %2288 = vmatprep.subr.mxu0 0.0
    %2289 = vmatpush1.msra.mxu0 0.0
    %2290 = vmatprep.subr.mxu0 0.0
    %2291 = vmatpush1.msra.mxu0 0.0
    %2292 = vmatprep.subr.mxu0 0.0
    %2293 = vmatpush1.msra.mxu0 0.0
    %2294 = vmatprep.subr.mxu0 0.0
    %2295 = vmatpush1.msra.mxu0 0.0
    %2296 = vmatprep.subr.mxu0 0.0
    %2297 = vmatpush1.msra.mxu0 0.0
    %2298 = vmatprep.subr.mxu0 0.0
    %2299 = vmatpush1.msra.mxu0 0.0
    %2300 = vmatprep.subr.mxu0 0.0
    %2301 = vmatpush1.msra.mxu0 0.0
    %2302 = vmatprep.subr.mxu0 0.0
    %2303 = vmatpush1.msra.mxu0 0.0
    %2304 = vmatprep.subr.mxu0 0.0
    %2305 = vmatpush1.msra.mxu0 0.0
    %2306 = vmatprep.mubr.f32.mxu0 0.0
    %2307 = vmatmul.mubr.f32.gmra.mrb[0].mxu0 %v2240
    %v2308 = vpop.f32.mrb[0].mxu0
    %v2309 = vadd.f32 0.0, %v2308
    %v2310 = vpop.f32.mrb[0].mxu0
    %2311 = vdwg.mxu0
    %2312 = vst.msk [vmem:[#allocation2 + $0x7] sm:$0x1] %vm484, %v2309
    %v2313 = vrot.slane %v403, 1
    %v2314 = vsel %vm410, %v2313, 0
    %2316 = vmatprep.subr.mxu0 0.0
    %2317 = vmatpush1.msra.mxu0 %v404
    %2318 = vmatprep.subr.mxu0 0.0
    %2319 = vmatpush1.msra.mxu0 %v405
    %2320 = vmatprep.subr.mxu0 0.0
    %2321 = vmatpush1.msra.mxu0 0.0
    %2322 = vmatprep.subr.mxu0 0.0
    %2323 = vmatpush1.msra.mxu0 0.0
    %2324 = vmatprep.subr.mxu0 0.0
    %2325 = vmatpush1.msra.mxu0 0.0
    %2326 = vmatprep.subr.mxu0 0.0
    %2327 = vmatpush1.msra.mxu0 0.0
    %2328 = vmatprep.subr.mxu0 0.0
    %2329 = vmatpush1.msra.mxu0 0.0
    %2330 = vmatprep.subr.mxu0 0.0
    %2331 = vmatpush1.msra.mxu0 0.0
    %2332 = vmatprep.subr.mxu0 0.0
    %2333 = vmatpush1.msra.mxu0 0.0
    %2334 = vmatprep.subr.mxu0 0.0
    %2335 = vmatpush1.msra.mxu0 0.0
    %2336 = vmatprep.subr.mxu0 0.0
    %2337 = vmatpush1.msra.mxu0 0.0
    %2338 = vmatprep.subr.mxu0 0.0
    %2339 = vmatpush1.msra.mxu0 0.0
    %2340 = vmatprep.subr.mxu0 0.0
    %2341 = vmatpush1.msra.mxu0 0.0
    %2342 = vmatprep.subr.mxu0 0.0
    %2343 = vmatpush1.msra.mxu0 0.0
    %2344 = vmatprep.subr.mxu0 0.0
    %2345 = vmatpush1.msra.mxu0 0.0
    %2346 = vmatprep.subr.mxu0 0.0
    %2347 = vmatpush1.msra.mxu0 0.0
    %2348 = vmatprep.subr.mxu0 0.0
    %2349 = vmatpush1.msra.mxu0 0.0
    %2350 = vmatprep.subr.mxu0 0.0
    %2351 = vmatpush1.msra.mxu0 0.0
    %2352 = vmatprep.subr.mxu0 0.0
    %2353 = vmatpush1.msra.mxu0 0.0
    %2354 = vmatprep.subr.mxu0 0.0
    %2355 = vmatpush1.msra.mxu0 0.0
    %2356 = vmatprep.subr.mxu0 0.0
    %2357 = vmatpush1.msra.mxu0 0.0
    %2358 = vmatprep.subr.mxu0 0.0
    %2359 = vmatpush1.msra.mxu0 0.0
    %2360 = vmatprep.subr.mxu0 0.0
    %2361 = vmatpush1.msra.mxu0 0.0
    %2362 = vmatprep.subr.mxu0 0.0
    %2363 = vmatpush1.msra.mxu0 0.0
    %2364 = vmatprep.subr.mxu0 0.0
    %2365 = vmatpush1.msra.mxu0 0.0
    %2366 = vmatprep.subr.mxu0 0.0
    %2367 = vmatpush1.msra.mxu0 0.0
    %2368 = vmatprep.subr.mxu0 0.0
    %2369 = vmatpush1.msra.mxu0 0.0
    %2370 = vmatprep.subr.mxu0 0.0
    %2371 = vmatpush1.msra.mxu0 0.0
    %2372 = vmatprep.subr.mxu0 0.0
    %2373 = vmatpush1.msra.mxu0 0.0
    %2374 = vmatprep.subr.mxu0 0.0
    %2375 = vmatpush1.msra.mxu0 0.0
    %2376 = vmatprep.subr.mxu0 0.0
    %2377 = vmatpush1.msra.mxu0 0.0
    %2378 = vmatprep.subr.mxu0 0.0
    %2379 = vmatpush1.msra.mxu0 0.0
    %2380 = vmatprep.mubr.f32.mxu0 0.0
    %2381 = vmatmul.mubr.f32.gmra.mrb[0].mxu0 %v2314
    %v2382 = vpop.f32.mrb[0].mxu0
    %v2383 = vadd.f32 0.0, %v2382
    %v2384 = vpop.f32.mrb[0].mxu0
    %2385 = vdwg.mxu0
    %2386 = vst.msk [vmem:[#allocation2 + $0x8] sm:$0x1] %vm484, %v2383
    %2387 = vrot.lane.b32.xlu0 %v2313, 112
    %v2388 = vpop.permute.xlu0 %2387
    %v2389 = vsel %vm410, %v2388, 0
    %2391 = vmatprep.subr.mxu0 0.0
    %2392 = vmatpush1.msra.mxu0 %v404
    %2393 = vmatprep.subr.mxu0 0.0
    %2394 = vmatpush1.msra.mxu0 %v405
    %2395 = vmatprep.subr.mxu0 0.0
    %2396 = vmatpush1.msra.mxu0 0.0
    %2397 = vmatprep.subr.mxu0 0.0
    %2398 = vmatpush1.msra.mxu0 0.0
    %2399 = vmatprep.subr.mxu0 0.0
    %2400 = vmatpush1.msra.mxu0 0.0
    %2401 = vmatprep.subr.mxu0 0.0
    %2402 = vmatpush1.msra.mxu0 0.0
    %2403 = vmatprep.subr.mxu0 0.0
    %2404 = vmatpush1.msra.mxu0 0.0
    %2405 = vmatprep.subr.mxu0 0.0
    %2406 = vmatpush1.msra.mxu0 0.0
    %2407 = vmatprep.subr.mxu0 0.0
    %2408 = vmatpush1.msra.mxu0 0.0
    %2409 = vmatprep.subr.mxu0 0.0
    %2410 = vmatpush1.msra.mxu0 0.0
    %2411 = vmatprep.subr.mxu0 0.0
    %2412 = vmatpush1.msra.mxu0 0.0
    %2413 = vmatprep.subr.mxu0 0.0
    %2414 = vmatpush1.msra.mxu0 0.0
    %2415 = vmatprep.subr.mxu0 0.0
    %2416 = vmatpush1.msra.mxu0 0.0
    %2417 = vmatprep.subr.mxu0 0.0
    %2418 = vmatpush1.msra.mxu0 0.0
    %2419 = vmatprep.subr.mxu0 0.0
    %2420 = vmatpush1.msra.mxu0 0.0
    %2421 = vmatprep.subr.mxu0 0.0
    %2422 = vmatpush1.msra.mxu0 0.0
    %2423 = vmatprep.subr.mxu0 0.0
    %2424 = vmatpush1.msra.mxu0 0.0
    %2425 = vmatprep.subr.mxu0 0.0
    %2426 = vmatpush1.msra.mxu0 0.0
    %2427 = vmatprep.subr.mxu0 0.0
    %2428 = vmatpush1.msra.mxu0 0.0
    %2429 = vmatprep.subr.mxu0 0.0
    %2430 = vmatpush1.msra.mxu0 0.0
    %2431 = vmatprep.subr.mxu0 0.0
    %2432 = vmatpush1.msra.mxu0 0.0
    %2433 = vmatprep.subr.mxu0 0.0
    %2434 = vmatpush1.msra.mxu0 0.0
    %2435 = vmatprep.subr.mxu0 0.0
    %2436 = vmatpush1.msra.mxu0 0.0
    %2437 = vmatprep.subr.mxu0 0.0
    %2438 = vmatpush1.msra.mxu0 0.0
    %2439 = vmatprep.subr.mxu0 0.0
    %2440 = vmatpush1.msra.mxu0 0.0
    %2441 = vmatprep.subr.mxu0 0.0
    %2442 = vmatpush1.msra.mxu0 0.0
    %2443 = vmatprep.subr.mxu0 0.0
    %2444 = vmatpush1.msra.mxu0 0.0
    %2445 = vmatprep.subr.mxu0 0.0
    %2446 = vmatpush1.msra.mxu0 0.0
    %2447 = vmatprep.subr.mxu0 0.0
    %2448 = vmatpush1.msra.mxu0 0.0
    %2449 = vmatprep.subr.mxu0 0.0
    %2450 = vmatpush1.msra.mxu0 0.0
    %2451 = vmatprep.subr.mxu0 0.0
    %2452 = vmatpush1.msra.mxu0 0.0
    %2453 = vmatprep.subr.mxu0 0.0
    %2454 = vmatpush1.msra.mxu0 0.0
    %2455 = vmatprep.mubr.f32.mxu0 0.0
    %2456 = vmatmul.mubr.f32.gmra.mrb[0].mxu0 %v2389
    %v2457 = vpop.f32.mrb[0].mxu0
    %v2458 = vadd.f32 0.0, %v2457
    %v2459 = vpop.f32.mrb[0].mxu0
    %2460 = vdwg.mxu0
    %2461 = vst.msk [vmem:[#allocation2 + $0x9] sm:$0x1] %vm484, %v2458
    %2462 = vrot.lane.b32.xlu0 %v2313, 96
    %v2463 = vpop.permute.xlu0 %2462
    %v2464 = vsel %vm410, %v2463, 0
    %2466 = vmatprep.subr.mxu0 0.0
    %2467 = vmatpush1.msra.mxu0 %v404
    %2468 = vmatprep.subr.mxu0 0.0
    %2469 = vmatpush1.msra.mxu0 %v405
    %2470 = vmatprep.subr.mxu0 0.0
    %2471 = vmatpush1.msra.mxu0 0.0
    %2472 = vmatprep.subr.mxu0 0.0
    %2473 = vmatpush1.msra.mxu0 0.0
    %2474 = vmatprep.subr.mxu0 0.0
    %2475 = vmatpush1.msra.mxu0 0.0
    %2476 = vmatprep.subr.mxu0 0.0
    %2477 = vmatpush1.msra.mxu0 0.0
    %2478 = vmatprep.subr.mxu0 0.0
    %2479 = vmatpush1.msra.mxu0 0.0
    %2480 = vmatprep.subr.mxu0 0.0
    %2481 = vmatpush1.msra.mxu0 0.0
    %2482 = vmatprep.subr.mxu0 0.0
    %2483 = vmatpush1.msra.mxu0 0.0
    %2484 = vmatprep.subr.mxu0 0.0
    %2485 = vmatpush1.msra.mxu0 0.0
    %2486 = vmatprep.subr.mxu0 0.0
    %2487 = vmatpush1.msra.mxu0 0.0
    %2488 = vmatprep.subr.mxu0 0.0
    %2489 = vmatpush1.msra.mxu0 0.0
    %2490 = vmatprep.subr.mxu0 0.0
    %2491 = vmatpush1.msra.mxu0 0.0
    %2492 = vmatprep.subr.mxu0 0.0
    %2493 = vmatpush1.msra.mxu0 0.0
    %2494 = vmatprep.subr.mxu0 0.0
    %2495 = vmatpush1.msra.mxu0 0.0
    %2496 = vmatprep.subr.mxu0 0.0
    %2497 = vmatpush1.msra.mxu0 0.0
    %2498 = vmatprep.subr.mxu0 0.0
    %2499 = vmatpush1.msra.mxu0 0.0
    %2500 = vmatprep.subr.mxu0 0.0
    %2501 = vmatpush1.msra.mxu0 0.0
    %2502 = vmatprep.subr.mxu0 0.0
    %2503 = vmatpush1.msra.mxu0 0.0
    %2504 = vmatprep.subr.mxu0 0.0
    %2505 = vmatpush1.msra.mxu0 0.0
    %2506 = vmatprep.subr.mxu0 0.0
    %2507 = vmatpush1.msra.mxu0 0.0
    %2508 = vmatprep.subr.mxu0 0.0
    %2509 = vmatpush1.msra.mxu0 0.0
    %2510 = vmatprep.subr.mxu0 0.0
    %2511 = vmatpush1.msra.mxu0 0.0
    %2512 = vmatprep.subr.mxu0 0.0
    %2513 = vmatpush1.msra.mxu0 0.0
    %2514 = vmatprep.subr.mxu0 0.0
    %2515 = vmatpush1.msra.mxu0 0.0
    %2516 = vmatprep.subr.mxu0 0.0
    %2517 = vmatpush1.msra.mxu0 0.0
    %2518 = vmatprep.subr.mxu0 0.0
    %2519 = vmatpush1.msra.mxu0 0.0
    %2520 = vmatprep.subr.mxu0 0.0
    %2521 = vmatpush1.msra.mxu0 0.0
    %2522 = vmatprep.subr.mxu0 0.0
    %2523 = vmatpush1.msra.mxu0 0.0
    %2524 = vmatprep.subr.mxu0 0.0
    %2525 = vmatpush1.msra.mxu0 0.0
    %2526 = vmatprep.subr.mxu0 0.0
    %2527 = vmatpush1.msra.mxu0 0.0
    %2528 = vmatprep.subr.mxu0 0.0
    %2529 = vmatpush1.msra.mxu0 0.0
    %2530 = vmatprep.mubr.f32.mxu0 0.0
    %2531 = vmatmul.mubr.f32.gmra.mrb[0].mxu0 %v2464
    %v2532 = vpop.f32.mrb[0].mxu0
    %v2533 = vadd.f32 0.0, %v2532
    %v2534 = vpop.f32.mrb[0].mxu0
    %2535 = vdwg.mxu0
    %2536 = vst.msk [vmem:[#allocation2 + $0xa] sm:$0x1] %vm484, %v2533
    %2537 = vrot.lane.b32.xlu0 %v2313, 80
    %v2538 = vpop.permute.xlu0 %2537
    %v2539 = vsel %vm410, %v2538, 0
    %2541 = vmatprep.subr.mxu0 0.0
    %2542 = vmatpush1.msra.mxu0 %v404
    %2543 = vmatprep.subr.mxu0 0.0
    %2544 = vmatpush1.msra.mxu0 %v405
    %2545 = vmatprep.subr.mxu0 0.0
    %2546 = vmatpush1.msra.mxu0 0.0
    %2547 = vmatprep.subr.mxu0 0.0
    %2548 = vmatpush1.msra.mxu0 0.0
    %2549 = vmatprep.subr.mxu0 0.0
    %2550 = vmatpush1.msra.mxu0 0.0
    %2551 = vmatprep.subr.mxu0 0.0
    %2552 = vmatpush1.msra.mxu0 0.0
    %2553 = vmatprep.subr.mxu0 0.0
    %2554 = vmatpush1.msra.mxu0 0.0
    %2555 = vmatprep.subr.mxu0 0.0
    %2556 = vmatpush1.msra.mxu0 0.0
    %2557 = vmatprep.subr.mxu0 0.0
    %2558 = vmatpush1.msra.mxu0 0.0
    %2559 = vmatprep.subr.mxu0 0.0
    %2560 = vmatpush1.msra.mxu0 0.0
    %2561 = vmatprep.subr.mxu0 0.0
    %2562 = vmatpush1.msra.mxu0 0.0
    %2563 = vmatprep.subr.mxu0 0.0
    %2564 = vmatpush1.msra.mxu0 0.0
    %2565 = vmatprep.subr.mxu0 0.0
    %2566 = vmatpush1.msra.mxu0 0.0
    %2567 = vmatprep.subr.mxu0 0.0
    %2568 = vmatpush1.msra.mxu0 0.0
    %2569 = vmatprep.subr.mxu0 0.0
    %2570 = vmatpush1.msra.mxu0 0.0
    %2571 = vmatprep.subr.mxu0 0.0
    %2572 = vmatpush1.msra.mxu0 0.0
    %2573 = vmatprep.subr.mxu0 0.0
    %2574 = vmatpush1.msra.mxu0 0.0
    %2575 = vmatprep.subr.mxu0 0.0
    %2576 = vmatpush1.msra.mxu0 0.0
    %2577 = vmatprep.subr.mxu0 0.0
    %2578 = vmatpush1.msra.mxu0 0.0
    %2579 = vmatprep.subr.mxu0 0.0
    %2580 = vmatpush1.msra.mxu0 0.0
    %2581 = vmatprep.subr.mxu0 0.0
    %2582 = vmatpush1.msra.mxu0 0.0
    %2583 = vmatprep.subr.mxu0 0.0
    %2584 = vmatpush1.msra.mxu0 0.0
    %2585 = vmatprep.subr.mxu0 0.0
    %2586 = vmatpush1.msra.mxu0 0.0
    %2587 = vmatprep.subr.mxu0 0.0
    %2588 = vmatpush1.msra.mxu0 0.0
    %2589 = vmatprep.subr.mxu0 0.0
    %2590 = vmatpush1.msra.mxu0 0.0
    %2591 = vmatprep.subr.mxu0 0.0
    %2592 = vmatpush1.msra.mxu0 0.0
    %2593 = vmatprep.subr.mxu0 0.0
    %2594 = vmatpush1.msra.mxu0 0.0
    %2595 = vmatprep.subr.mxu0 0.0
    %2596 = vmatpush1.msra.mxu0 0.0
    %2597 = vmatprep.subr.mxu0 0.0
    %2598 = vmatpush1.msra.mxu0 0.0
    %2599 = vmatprep.subr.mxu0 0.0
    %2600 = vmatpush1.msra.mxu0 0.0
    %2601 = vmatprep.subr.mxu0 0.0
    %2602 = vmatpush1.msra.mxu0 0.0
    %2603 = vmatprep.subr.mxu0 0.0
    %2604 = vmatpush1.msra.mxu0 0.0
    %2605 = vmatprep.mubr.f32.mxu0 0.0
    %2606 = vmatmul.mubr.f32.gmra.mrb[0].mxu0 %v2539
    %v2607 = vpop.f32.mrb[0].mxu0
    %v2608 = vadd.f32 0.0, %v2607
    %v2609 = vpop.f32.mrb[0].mxu0
    %2610 = vdwg.mxu0
    %2611 = vst.msk [vmem:[#allocation2 + $0xb] sm:$0x1] %vm484, %v2608
    %2612 = vrot.lane.b32.xlu0 %v2313, 64
    %v2613 = vpop.permute.xlu0 %2612
    %v2614 = vsel %vm410, %v2613, 0
    %2616 = vmatprep.subr.mxu0 0.0
    %2617 = vmatpush1.msra.mxu0 %v404
    %2618 = vmatprep.subr.mxu0 0.0
    %2619 = vmatpush1.msra.mxu0 %v405
    %2620 = vmatprep.subr.mxu0 0.0
    %2621 = vmatpush1.msra.mxu0 0.0
    %2622 = vmatprep.subr.mxu0 0.0
    %2623 = vmatpush1.msra.mxu0 0.0
    %2624 = vmatprep.subr.mxu0 0.0
    %2625 = vmatpush1.msra.mxu0 0.0
    %2626 = vmatprep.subr.mxu0 0.0
    %2627 = vmatpush1.msra.mxu0 0.0
    %2628 = vmatprep.subr.mxu0 0.0
    %2629 = vmatpush1.msra.mxu0 0.0
    %2630 = vmatprep.subr.mxu0 0.0
    %2631 = vmatpush1.msra.mxu0 0.0
    %2632 = vmatprep.subr.mxu0 0.0
    %2633 = vmatpush1.msra.mxu0 0.0
    %2634 = vmatprep.subr.mxu0 0.0
    %2635 = vmatpush1.msra.mxu0 0.0
    %2636 = vmatprep.subr.mxu0 0.0
    %2637 = vmatpush1.msra.mxu0 0.0
    %2638 = vmatprep.subr.mxu0 0.0
    %2639 = vmatpush1.msra.mxu0 0.0
    %2640 = vmatprep.subr.mxu0 0.0
    %2641 = vmatpush1.msra.mxu0 0.0
    %2642 = vmatprep.subr.mxu0 0.0
    %2643 = vmatpush1.msra.mxu0 0.0
    %2644 = vmatprep.subr.mxu0 0.0
    %2645 = vmatpush1.msra.mxu0 0.0
    %2646 = vmatprep.subr.mxu0 0.0
    %2647 = vmatpush1.msra.mxu0 0.0
    %2648 = vmatprep.subr.mxu0 0.0
    %2649 = vmatpush1.msra.mxu0 0.0
    %2650 = vmatprep.subr.mxu0 0.0
    %2651 = vmatpush1.msra.mxu0 0.0
    %2652 = vmatprep.subr.mxu0 0.0
    %2653 = vmatpush1.msra.mxu0 0.0
    %2654 = vmatprep.subr.mxu0 0.0
    %2655 = vmatpush1.msra.mxu0 0.0
    %2656 = vmatprep.subr.mxu0 0.0
    %2657 = vmatpush1.msra.mxu0 0.0
    %2658 = vmatprep.subr.mxu0 0.0
    %2659 = vmatpush1.msra.mxu0 0.0
    %2660 = vmatprep.subr.mxu0 0.0
    %2661 = vmatpush1.msra.mxu0 0.0
    %2662 = vmatprep.subr.mxu0 0.0
    %2663 = vmatpush1.msra.mxu0 0.0
    %2664 = vmatprep.subr.mxu0 0.0
    %2665 = vmatpush1.msra.mxu0 0.0
    %2666 = vmatprep.subr.mxu0 0.0
    %2667 = vmatpush1.msra.mxu0 0.0
    %2668 = vmatprep.subr.mxu0 0.0
    %2669 = vmatpush1.msra.mxu0 0.0
    %2670 = vmatprep.subr.mxu0 0.0
    %2671 = vmatpush1.msra.mxu0 0.0
    %2672 = vmatprep.subr.mxu0 0.0
    %2673 = vmatpush1.msra.mxu0 0.0
    %2674 = vmatprep.subr.mxu0 0.0
    %2675 = vmatpush1.msra.mxu0 0.0
    %2676 = vmatprep.subr.mxu0 0.0
    %2677 = vmatpush1.msra.mxu0 0.0
    %2678 = vmatprep.subr.mxu0 0.0
    %2679 = vmatpush1.msra.mxu0 0.0
    %2680 = vmatprep.mubr.f32.mxu0 0.0
    %2681 = vmatmul.mubr.f32.gmra.mrb[0].mxu0 %v2614
    %v2682 = vpop.f32.mrb[0].mxu0
    %v2683 = vadd.f32 0.0, %v2682
    %v2684 = vpop.f32.mrb[0].mxu0
    %2685 = vdwg.mxu0
    %2686 = vst.msk [vmem:[#allocation2 + $0xc] sm:$0x1] %vm484, %v2683
    %2687 = vrot.lane.b32.xlu0 %v2313, 48
    %v2688 = vpop.permute.xlu0 %2687
    %v2689 = vsel %vm410, %v2688, 0
    %2691 = vmatprep.subr.mxu0 0.0
    %2692 = vmatpush1.msra.mxu0 %v404
    %2693 = vmatprep.subr.mxu0 0.0
    %2694 = vmatpush1.msra.mxu0 %v405
    %2695 = vmatprep.subr.mxu0 0.0
    %2696 = vmatpush1.msra.mxu0 0.0
    %2697 = vmatprep.subr.mxu0 0.0
    %2698 = vmatpush1.msra.mxu0 0.0
    %2699 = vmatprep.subr.mxu0 0.0
    %2700 = vmatpush1.msra.mxu0 0.0
    %2701 = vmatprep.subr.mxu0 0.0
    %2702 = vmatpush1.msra.mxu0 0.0
    %2703 = vmatprep.subr.mxu0 0.0
    %2704 = vmatpush1.msra.mxu0 0.0
    %2705 = vmatprep.subr.mxu0 0.0
    %2706 = vmatpush1.msra.mxu0 0.0
    %2707 = vmatprep.subr.mxu0 0.0
    %2708 = vmatpush1.msra.mxu0 0.0
    %2709 = vmatprep.subr.mxu0 0.0
    %2710 = vmatpush1.msra.mxu0 0.0
    %2711 = vmatprep.subr.mxu0 0.0
    %2712 = vmatpush1.msra.mxu0 0.0
    %2713 = vmatprep.subr.mxu0 0.0
    %2714 = vmatpush1.msra.mxu0 0.0
    %2715 = vmatprep.subr.mxu0 0.0
    %2716 = vmatpush1.msra.mxu0 0.0
    %2717 = vmatprep.subr.mxu0 0.0
    %2718 = vmatpush1.msra.mxu0 0.0
    %2719 = vmatprep.subr.mxu0 0.0
    %2720 = vmatpush1.msra.mxu0 0.0
    %2721 = vmatprep.subr.mxu0 0.0
    %2722 = vmatpush1.msra.mxu0 0.0
    %2723 = vmatprep.subr.mxu0 0.0
    %2724 = vmatpush1.msra.mxu0 0.0
    %2725 = vmatprep.subr.mxu0 0.0
    %2726 = vmatpush1.msra.mxu0 0.0
    %2727 = vmatprep.subr.mxu0 0.0
    %2728 = vmatpush1.msra.mxu0 0.0
    %2729 = vmatprep.subr.mxu0 0.0
    %2730 = vmatpush1.msra.mxu0 0.0
    %2731 = vmatprep.subr.mxu0 0.0
    %2732 = vmatpush1.msra.mxu0 0.0
    %2733 = vmatprep.subr.mxu0 0.0
    %2734 = vmatpush1.msra.mxu0 0.0
    %2735 = vmatprep.subr.mxu0 0.0
    %2736 = vmatpush1.msra.mxu0 0.0
    %2737 = vmatprep.subr.mxu0 0.0
    %2738 = vmatpush1.msra.mxu0 0.0
    %2739 = vmatprep.subr.mxu0 0.0
    %2740 = vmatpush1.msra.mxu0 0.0
    %2741 = vmatprep.subr.mxu0 0.0
    %2742 = vmatpush1.msra.mxu0 0.0
    %2743 = vmatprep.subr.mxu0 0.0
    %2744 = vmatpush1.msra.mxu0 0.0
    %2745 = vmatprep.subr.mxu0 0.0
    %2746 = vmatpush1.msra.mxu0 0.0
    %2747 = vmatprep.subr.mxu0 0.0
    %2748 = vmatpush1.msra.mxu0 0.0
    %2749 = vmatprep.subr.mxu0 0.0
    %2750 = vmatpush1.msra.mxu0 0.0
    %2751 = vmatprep.subr.mxu0 0.0
    %2752 = vmatpush1.msra.mxu0 0.0
    %2753 = vmatprep.subr.mxu0 0.0
    %2754 = vmatpush1.msra.mxu0 0.0
    %2755 = vmatprep.mubr.f32.mxu0 0.0
    %2756 = vmatmul.mubr.f32.gmra.mrb[0].mxu0 %v2689
    %v2757 = vpop.f32.mrb[0].mxu0
    %v2758 = vadd.f32 0.0, %v2757
    %v2759 = vpop.f32.mrb[0].mxu0
    %2760 = vdwg.mxu0
    %2761 = vst.msk [vmem:[#allocation2 + $0xd] sm:$0x1] %vm484, %v2758
    %2762 = vrot.lane.b32.xlu0 %v2313, 32
    %v2763 = vpop.permute.xlu0 %2762
    %v2764 = vsel %vm410, %v2763, 0
    %2766 = vmatprep.subr.mxu0 0.0
    %2767 = vmatpush1.msra.mxu0 %v404
    %2768 = vmatprep.subr.mxu0 0.0
    %2769 = vmatpush1.msra.mxu0 %v405
    %2770 = vmatprep.subr.mxu0 0.0
    %2771 = vmatpush1.msra.mxu0 0.0
    %2772 = vmatprep.subr.mxu0 0.0
    %2773 = vmatpush1.msra.mxu0 0.0
    %2774 = vmatprep.subr.mxu0 0.0
    %2775 = vmatpush1.msra.mxu0 0.0
    %2776 = vmatprep.subr.mxu0 0.0
    %2777 = vmatpush1.msra.mxu0 0.0
    %2778 = vmatprep.subr.mxu0 0.0
    %2779 = vmatpush1.msra.mxu0 0.0
    %2780 = vmatprep.subr.mxu0 0.0
    %2781 = vmatpush1.msra.mxu0 0.0
    %2782 = vmatprep.subr.mxu0 0.0
    %2783 = vmatpush1.msra.mxu0 0.0
    %2784 = vmatprep.subr.mxu0 0.0
    %2785 = vmatpush1.msra.mxu0 0.0
    %2786 = vmatprep.subr.mxu0 0.0
    %2787 = vmatpush1.msra.mxu0 0.0
    %2788 = vmatprep.subr.mxu0 0.0
    %2789 = vmatpush1.msra.mxu0 0.0
    %2790 = vmatprep.subr.mxu0 0.0
    %2791 = vmatpush1.msra.mxu0 0.0
    %2792 = vmatprep.subr.mxu0 0.0
    %2793 = vmatpush1.msra.mxu0 0.0
    %2794 = vmatprep.subr.mxu0 0.0
    %2795 = vmatpush1.msra.mxu0 0.0
    %2796 = vmatprep.subr.mxu0 0.0
    %2797 = vmatpush1.msra.mxu0 0.0
    %2798 = vmatprep.subr.mxu0 0.0
    %2799 = vmatpush1.msra.mxu0 0.0
    %2800 = vmatprep.subr.mxu0 0.0
    %2801 = vmatpush1.msra.mxu0 0.0
    %2802 = vmatprep.subr.mxu0 0.0
    %2803 = vmatpush1.msra.mxu0 0.0
    %2804 = vmatprep.subr.mxu0 0.0
    %2805 = vmatpush1.msra.mxu0 0.0
    %2806 = vmatprep.subr.mxu0 0.0
    %2807 = vmatpush1.msra.mxu0 0.0
    %2808 = vmatprep.subr.mxu0 0.0
    %2809 = vmatpush1.msra.mxu0 0.0
    %2810 = vmatprep.subr.mxu0 0.0
    %2811 = vmatpush1.msra.mxu0 0.0
    %2812 = vmatprep.subr.mxu0 0.0
    %2813 = vmatpush1.msra.mxu0 0.0
    %2814 = vmatprep.subr.mxu0 0.0
    %2815 = vmatpush1.msra.mxu0 0.0
    %2816 = vmatprep.subr.mxu0 0.0
    %2817 = vmatpush1.msra.mxu0 0.0
    %2818 = vmatprep.subr.mxu0 0.0
    %2819 = vmatpush1.msra.mxu0 0.0
    %2820 = vmatprep.subr.mxu0 0.0
    %2821 = vmatpush1.msra.mxu0 0.0
    %2822 = vmatprep.subr.mxu0 0.0
    %2823 = vmatpush1.msra.mxu0 0.0
    %2824 = vmatprep.subr.mxu0 0.0
    %2825 = vmatpush1.msra.mxu0 0.0
    %2826 = vmatprep.subr.mxu0 0.0
    %2827 = vmatpush1.msra.mxu0 0.0
    %2828 = vmatprep.subr.mxu0 0.0
    %2829 = vmatpush1.msra.mxu0 0.0
    %2830 = vmatprep.mubr.f32.mxu0 0.0
    %2831 = vmatmul.mubr.f32.gmra.mrb[0].mxu0 %v2764
    %v2832 = vpop.f32.mrb[0].mxu0
    %v2833 = vadd.f32 0.0, %v2832
    %v2834 = vpop.f32.mrb[0].mxu0
    %2835 = vdwg.mxu0
    %2836 = vst.msk [vmem:[#allocation2 + $0xe] sm:$0x1] %vm484, %v2833
    %2837 = vrot.lane.b32.xlu0 %v2313, 16
    %v2838 = vpop.permute.xlu0 %2837
    %v2839 = vsel %vm410, %v2838, 0
    %2841 = vmatprep.subr.mxu0 0.0
    %2842 = vmatpush1.msra.mxu0 %v404
    %2843 = vmatprep.subr.mxu0 0.0
    %2844 = vmatpush1.msra.mxu0 %v405
    %2845 = vmatprep.subr.mxu0 0.0
    %2846 = vmatpush1.msra.mxu0 0.0
    %2847 = vmatprep.subr.mxu0 0.0
    %2848 = vmatpush1.msra.mxu0 0.0
    %2849 = vmatprep.subr.mxu0 0.0
    %2850 = vmatpush1.msra.mxu0 0.0
    %2851 = vmatprep.subr.mxu0 0.0
    %2852 = vmatpush1.msra.mxu0 0.0
    %2853 = vmatprep.subr.mxu0 0.0
    %2854 = vmatpush1.msra.mxu0 0.0
    %2855 = vmatprep.subr.mxu0 0.0
    %2856 = vmatpush1.msra.mxu0 0.0
    %2857 = vmatprep.subr.mxu0 0.0
    %2858 = vmatpush1.msra.mxu0 0.0
    %2859 = vmatprep.subr.mxu0 0.0
    %2860 = vmatpush1.msra.mxu0 0.0
    %2861 = vmatprep.subr.mxu0 0.0
    %2862 = vmatpush1.msra.mxu0 0.0
    %2863 = vmatprep.subr.mxu0 0.0
    %2864 = vmatpush1.msra.mxu0 0.0
    %2865 = vmatprep.subr.mxu0 0.0
    %2866 = vmatpush1.msra.mxu0 0.0
    %2867 = vmatprep.subr.mxu0 0.0
    %2868 = vmatpush1.msra.mxu0 0.0
    %2869 = vmatprep.subr.mxu0 0.0
    %2870 = vmatpush1.msra.mxu0 0.0
    %2871 = vmatprep.subr.mxu0 0.0
    %2872 = vmatpush1.msra.mxu0 0.0
    %2873 = vmatprep.subr.mxu0 0.0
    %2874 = vmatpush1.msra.mxu0 0.0
    %2875 = vmatprep.subr.mxu0 0.0
    %2876 = vmatpush1.msra.mxu0 0.0
    %2877 = vmatprep.subr.mxu0 0.0
    %2878 = vmatpush1.msra.mxu0 0.0
    %2879 = vmatprep.subr.mxu0 0.0
    %2880 = vmatpush1.msra.mxu0 0.0
    %2881 = vmatprep.subr.mxu0 0.0
    %2882 = vmatpush1.msra.mxu0 0.0
    %2883 = vmatprep.subr.mxu0 0.0
    %2884 = vmatpush1.msra.mxu0 0.0
    %2885 = vmatprep.subr.mxu0 0.0
    %2886 = vmatpush1.msra.mxu0 0.0
    %2887 = vmatprep.subr.mxu0 0.0
    %2888 = vmatpush1.msra.mxu0 0.0
    %2889 = vmatprep.subr.mxu0 0.0
    %2890 = vmatpush1.msra.mxu0 0.0
    %2891 = vmatprep.subr.mxu0 0.0
    %2892 = vmatpush1.msra.mxu0 0.0
    %2893 = vmatprep.subr.mxu0 0.0
    %2894 = vmatpush1.msra.mxu0 0.0
    %2895 = vmatprep.subr.mxu0 0.0
    %2896 = vmatpush1.msra.mxu0 0.0
    %2897 = vmatprep.subr.mxu0 0.0
    %2898 = vmatpush1.msra.mxu0 0.0
    %2899 = vmatprep.subr.mxu0 0.0
    %2900 = vmatpush1.msra.mxu0 0.0
    %2901 = vmatprep.subr.mxu0 0.0
    %2902 = vmatpush1.msra.mxu0 0.0
    %2903 = vmatprep.subr.mxu0 0.0
    %2904 = vmatpush1.msra.mxu0 0.0
    %2905 = vmatprep.mubr.f32.mxu0 0.0
    %2906 = vmatmul.mubr.f32.gmra.mrb[0].mxu0 %v2839
    %v2907 = vpop.f32.mrb[0].mxu0
    %v2908 = vadd.f32 0.0, %v2907
    %v2909 = vpop.f32.mrb[0].mxu0
    %2910 = vdwg.mxu0
    %2911 = vst.msk [vmem:[#allocation2 + $0xf] sm:$0x1] %vm484, %v2908
    %v2912 = vld [vmem:[#allocation2] sm:$0xff]
    %v2913 = vld [vmem:[#allocation2 + $0x8] sm:$0xff]
    %2914 = vmatprep.subr.mxu0 0.0
    %2915 = vmatpush1.msra.mxu0 %v2912
    %2916 = vmatprep.subr.mxu0 0.0
    %2917 = vmatpush1.msra.mxu0 %v2913
    %2918 = vmatprep.subr.mxu0 0.0
    %2919 = vmatpush1.msra.mxu0 0.0
    %2920 = vmatprep.subr.mxu0 0.0
    %2921 = vmatpush1.msra.mxu0 0.0
    %2922 = vmatprep.subr.mxu0 0.0
    %2923 = vmatpush1.msra.mxu0 0.0
    %2924 = vmatprep.subr.mxu0 0.0
    %2925 = vmatpush1.msra.mxu0 0.0
    %2926 = vmatprep.subr.mxu0 0.0
    %2927 = vmatpush1.msra.mxu0 0.0
    %2928 = vmatprep.subr.mxu0 0.0
    %2929 = vmatpush1.msra.mxu0 0.0
    %2930 = vmatprep.subr.mxu0 0.0
    %2931 = vmatpush1.msra.mxu0 0.0
    %2932 = vmatprep.subr.mxu0 0.0
    %2933 = vmatpush1.msra.mxu0 0.0
    %2934 = vmatprep.subr.mxu0 0.0
    %2935 = vmatpush1.msra.mxu0 0.0
    %2936 = vmatprep.subr.mxu0 0.0
    %2937 = vmatpush1.msra.mxu0 0.0
    %2938 = vmatprep.subr.mxu0 0.0
    %2939 = vmatpush1.msra.mxu0 0.0
    %2940 = vmatprep.subr.mxu0 0.0
    %2941 = vmatpush1.msra.mxu0 0.0
    %2942 = vmatprep.subr.mxu0 0.0
    %2943 = vmatpush1.msra.mxu0 0.0
    %2944 = vmatprep.subr.mxu0 0.0
    %2945 = vmatpush1.msra.mxu0 0.0
    %2946 = vmatprep.subr.mxu0 0.0
    %2947 = vmatpush1.msra.mxu0 0.0
    %2948 = vmatprep.subr.mxu0 0.0
    %2949 = vmatpush1.msra.mxu0 0.0
    %2950 = vmatprep.subr.mxu0 0.0
    %2951 = vmatpush1.msra.mxu0 0.0
    %2952 = vmatprep.subr.mxu0 0.0
    %2953 = vmatpush1.msra.mxu0 0.0
    %2954 = vmatprep.subr.mxu0 0.0
    %2955 = vmatpush1.msra.mxu0 0.0
    %2956 = vmatprep.subr.mxu0 0.0
    %2957 = vmatpush1.msra.mxu0 0.0
    %2958 = vmatprep.subr.mxu0 0.0
    %2959 = vmatpush1.msra.mxu0 0.0
    %2960 = vmatprep.subr.mxu0 0.0
    %2961 = vmatpush1.msra.mxu0 0.0
    %2962 = vmatprep.subr.mxu0 0.0
    %2963 = vmatpush1.msra.mxu0 0.0
    %2964 = vmatprep.subr.mxu0 0.0
    %2965 = vmatpush1.msra.mxu0 0.0
    %2966 = vmatprep.subr.mxu0 0.0
    %2967 = vmatpush1.msra.mxu0 0.0
    %2968 = vmatprep.subr.mxu0 0.0
    %2969 = vmatpush1.msra.mxu0 0.0
    %2970 = vmatprep.subr.mxu0 0.0
    %2971 = vmatpush1.msra.mxu0 0.0
    %2972 = vmatprep.subr.mxu0 0.0
    %2973 = vmatpush1.msra.mxu0 0.0
    %2974 = vmatprep.subr.mxu0 0.0
    %2975 = vmatpush1.msra.mxu0 0.0
    %2976 = vmatprep.subr.mxu0 0.0
    %2977 = vmatpush1.msra.mxu0 0.0
    %2978 = vmatprep.mubr.f32.mxu0 0.0
    %2979 = vmatmul.mubr.f32.gmra.mrb[0].mxu0 %v1613
    %v2980 = vpop.f32.mrb[0].mxu0
    %v2981 = vadd.f32 0.0, %v2980
    %v2982 = vpop.f32.mrb[0].mxu0
    %2983 = vmatprep.mubr.f32.mxu0 0.0
    %2984 = vmatmul.mubr.f32.gmra.mrb[0].mxu0 %v1616
    %v2985 = vpop.f32.mrb[0].mxu0
    %v2986 = vadd.f32 0.0, %v2985
    %v2987 = vpop.f32.mrb[0].mxu0
    %2988 = vmatprep.mubr.f32.mxu0 0.0
    %2989 = vmatmul.mubr.f32.gmra.mrb[0].mxu0 %v1619
    %v2990 = vpop.f32.mrb[0].mxu0
    %v2991 = vadd.f32 0.0, %v2990
    %v2992 = vpop.f32.mrb[0].mxu0
    %2993 = vmatprep.mubr.f32.mxu0 0.0
    %2994 = vmatmul.mubr.f32.gmra.mrb[0].mxu0 %v1622
    %v2995 = vpop.f32.mrb[0].mxu0
    %v2996 = vadd.f32 0.0, %v2995
    %v2997 = vpop.f32.mrb[0].mxu0
    %2998 = vdwg.mxu0
    %2999 = vst.msk [vmem:[%s6 + $0x20] sm:$0xff] %vm1709, %v2981
    %3000 = vst.msk [vmem:[%s6 + $0x28] sm:$0xff] %vm1709, %v2986
    %3001 = vst.msk [vmem:[%s6 + $0x30] sm:$0xff] %vm1709, %v2991
    %3002 = vst.msk [vmem:[%s6 + $0x38] sm:$0xff] %vm1709, %v2996
    // Predicated region
    $region30: #{tpu_custom_call.1} parent=1 // pred_check
      _
    $region31: #{tpu_custom_call.1} parent=1 // pred_check_branch
      %3004 = sbr.rel (0) target = $region33
    $region32: #{tpu_custom_call.1} parent=1 // pred_region
      _
    $region33: #{tpu_custom_call.1} parent=1 // pred_fallthru
      _
    // Predicated region
    $region34: #{tpu_custom_call.1} parent=1 // pred_check
      _
    $region35: #{tpu_custom_call.1} parent=1 // pred_check_branch
      %3006 = sbr.rel (0) target = $region37
    $region36: #{tpu_custom_call.1} parent=1 // pred_region
      _
    $region37: #{tpu_custom_call.1} parent=1 // pred_fallthru
      _
    %3007 = vsyncpa [#allocation4], 1

</llo_original>
